<compile_context>
chip_gen: v7x
topology: tpu7x:2x2x1
jax: 0.10.0
libtpu: 0.0.40
codegen_flags: <defaults>
</compile_context>

<pallas_src>
import functools

import jax
import jax.numpy as jnp
from jax import lax
from jax.experimental import pallas as pl
from jax.experimental.pallas import tpu as pltpu


_INV_SQRT2 = 0.7071067811865476


def _on_tpu():
    try:
        return jax.devices()[0].platform == "tpu"
    except Exception:
        return False


def _layernorm(x, gamma, beta, eps=1e-5):
    # single-pass statistics (mean and E[x^2] in one sweep over the lane axis);
    # variance clamped at 0 to guard against cancellation.
    mean = jnp.mean(x, axis=-1, keepdims=True)
    m2 = jnp.mean(x * x, axis=-1, keepdims=True)
    var = jnp.maximum(m2 - mean * mean, 0.0)
    return (x - mean) * lax.rsqrt(var + eps) * gamma + beta


def _gelu_exact(x):
    # exact (erf-based) GELU == torch.nn.functional.gelu default
    return 0.5 * x * (1.0 + lax.erf(x * _INV_SQRT2))


# contract dim-1 of both operands: (Dout, Din) x (T, Din) -> (Dout, T)
_DN_WX = (((1,), (1,)), ((), ()))
# contract lhs dim-0 with rhs dim-1: (Din, T) x (Dout, Din) -> (T, Dout)
_DN_XT_W = (((0,), (1,)), ((), ()))


def encoder_block_kernel(x_ref, ln1g_ref, ln1b_ref, wq_ref, wk_ref, wv_ref,
                         wo_ref, bo_ref, ln2g_ref, ln2b_ref, w1_ref, b1_ref,
                         w2_ref, b2_ref, out_ref, k_s, v_s, *, heads, cdtype):
    N, D = x_ref.shape
    tq = out_ref.shape[0]
    dh = D // heads
    qi = pl.program_id(1)

    # ---- K / V projections: computed once per batch element (query-tile 0)
    # into persistent VMEM scratch, re-used by later query tiles.  Two separate
    # dots (no (2D, N) f32 transient); results cast to cdtype immediately. ----
    @pl.when(qi == 0)
    def _():
        xn = _layernorm(x_ref[...].astype(jnp.float32),
                        ln1g_ref[...], ln1b_ref[...])                  # (N, D) f32
        xn_c = xn.astype(cdtype)
        k_s[...] = lax.dot_general(wk_ref[...], xn_c, _DN_WX,
                                   preferred_element_type=jnp.float32
                                   ).astype(cdtype)                    # K^T (D, N)
        v_s[...] = lax.dot_general(wv_ref[...], xn_c, _DN_WX,
                                   preferred_element_type=jnp.float32
                                   ).astype(cdtype)                    # V^T (D, N)

    # ---- query tile ---------------------------------------------------------
    q_start = pl.multiple_of(qi * tq, tq)
    x_q = x_ref[pl.ds(q_start, tq), :].astype(jnp.float32)             # (tq, D)
    xn_q = _layernorm(x_q, ln1g_ref[...], ln1b_ref[...])
    # Q^T = W_q (scale folded) . xn_q^T, contraction over D (no materialized .T)
    q_t = lax.dot_general(wq_ref[...], xn_q.astype(cdtype), _DN_WX,
                          preferred_element_type=jnp.float32)          # (D, tq)

    # head-major views are free leading-dim reshapes in the transposed dataflow
    q3 = q_t.astype(cdtype).reshape(heads, dh, tq)                     # (h, dh, tq)
    k3 = k_s[...].reshape(heads, dh, N)                                # (h, dh, N)
    v3 = v_s[...].reshape(heads, dh, N)                                # (h, dh, N)

    # scores / softmax (f32); normalization deferred until after PV
    # TODO(synk): flash-style KV-tile loop when (h, tq, N) f32 does not fit VMEM.
    s = jnp.einsum('hdq,hdk->hqk', q3, k3,
                   preferred_element_type=jnp.float32)                 # (h, tq, N)
    s = s - jnp.max(s, axis=-1, keepdims=True)
    p = jnp.exp(s)
    denom = jnp.sum(p, axis=-1)                                        # (h, tq)

    # PV with unnormalized p, then scale the small (h, dh, tq) result
    o_t = jnp.einsum('hdn,hqn->hdq', v3, p.astype(cdtype),
                     preferred_element_type=jnp.float32)               # (h, dh, tq)
    o_t = o_t * pl.reciprocal(denom, approx=True)[:, None, :]
    o2 = o_t.astype(cdtype).reshape(D, tq)                             # (D, tq), rows = (h, d)

    # output projection straight into (tq, D): contract o2 dim-0 with W_o dim-1
    att = lax.dot_general(o2, wo_ref[...], _DN_XT_W,
                          preferred_element_type=jnp.float32) + bo_ref[...]
    x1 = x_q + att                                                     # MSA residual

    # ---- MLP residual branch ------------------------------------------------
    xn2 = _layernorm(x1, ln2g_ref[...], ln2b_ref[...])
    h1 = jnp.dot(xn2.astype(cdtype), w1_ref[...],
                 preferred_element_type=jnp.float32) + b1_ref[...]
    h1 = _gelu_exact(h1)
    h2 = jnp.dot(h1.astype(cdtype), w2_ref[...],
                 preferred_element_type=jnp.float32) + b2_ref[...]
    out_ref[...] = (x1 + h2).astype(out_ref.dtype)                     # MLP residual


# ---------------------------------------------------------------------------
# host-side sizing helpers
# ---------------------------------------------------------------------------

def _vmem_capacity_bytes():
    if _on_tpu():
        try:
            cap = getattr(pltpu.get_tpu_info(), "vmem_capacity_bytes", None)
            if cap:
                return int(cap)
        except Exception:
            pass
    return 128 * 2**20


def _vmem_bytes(n, d, heads, mlp_dim, tq, citm, xitm):
    """Advisory VMEM estimate for one grid step (includes the qi==0 spike)."""
    f32 = 4
    w = (4 * d * d + 2 * d * mlp_dim) * citm + (mlp_dim + 7 * d) * f32   # single-buffered
    xblk = 2 * n * d * xitm                   # double-buffered full-seq x block
    oblk = 2 * tq * d * f32                   # double-buffered output tile
    kv = 2 * d * n * citm                     # persistent K^T / V^T scratch
    spike = n * d * (f32 + citm) + d * n * f32  # qi==0: f32 xn + cdtype xn + one f32 proj
    scores = heads * tq * n * (2 * f32 + citm)  # s, p (f32) + p cast (cdtype)
    tile = tq * d * 6 * f32 + 2 * tq * mlp_dim * f32 + d * tq * (f32 + citm)
    return w + xblk + oblk + kv + spike + scores + tile


def _pick_q_tile(n, d, heads, mlp_dim, citm, xitm, budget):
    """Largest 128-aligned divisor of n whose working set fits the VMEM budget.

    128 is full MXU width on v5e; multiples of 256 (when they divide n) also
    fill the 256-wide v6e/v7x MXU.  Never goes below 128 when n >= 128.
    """
    if n <= 128:
        return n
    cands = [t for t in range(n, 127, -1) if n % t == 0 and t % 128 == 0]
    if not cands:
        cands = [t for t in range(n, 7, -1) if n % t == 0 and t % 8 == 0] or [n]
    for t in cands:
        if _vmem_bytes(n, d, heads, mlp_dim, t, citm, xitm) <= budget:
            return t
    # TODO(synk): switch to the flash-style KV loop instead of over-subscribing VMEM.
    return cands[-1]


def _weight_spec_kwargs():
    # Constant-index weight blocks are never re-fetched across the grid, so
    # single-buffering them halves their resident VMEM (matters on v7x).
    try:
        pl.BlockSpec((8, 128), lambda i: (0, 0), pipeline_mode=pl.Buffered(1))
        return {"pipeline_mode": pl.Buffered(1)}
    except Exception:   # older jax without pipeline_mode / Buffered
        return {}


# ---------------------------------------------------------------------------
# wrapper
# ---------------------------------------------------------------------------

def encoder_block(x, params, heads, *, compute_dtype=None, q_tile=None):
    B, N, D = x.shape
    mlp_dim = params["w1"].shape[0]
    dh = D // heads
    if dh * heads != D:
        raise ValueError("dim must be divisible by heads")
    if dh % 8 != 0:
        # TODO(synk): per-head fori_loop fallback for head_dim below the sublane pack.
        raise ValueError("head_dim must be a multiple of 8 for the fused head reshape")
    scale = float(D) ** (-0.5)          # module scales by dim**-0.5 (not head_dim)

    if compute_dtype is None:
        # bf16 operands only where the MXU actually is (real TPU); f32 elsewhere
        compute_dtype = jnp.bfloat16 if _on_tpu() else jnp.float32
    cdtype = jnp.dtype(compute_dtype)
    citm = cdtype.itemsize

    # cast x to the compute dtype at the boundary (halves x DMA/VMEM for bf16);
    # the kernel promotes to f32 for LN / softmax / residual math.
    x_in = x if x.dtype == cdtype else x.astype(cdtype)
    xitm = x_in.dtype.itemsize

    # ---- VMEM budget / tile selection ---------------------------------------
    vmem_cap = _vmem_capacity_bytes()
    if vmem_cap <= 64 * 2**20:                       # v7x-class: leave headroom
        hard_cap = vmem_cap - 8 * 2**20
    else:                                            # v5e / v6e (128 MiB physical)
        hard_cap = min(vmem_cap, 100 * 2**20)
    budget = int(hard_cap * 0.8)

    if q_tile is not None:
        tq = q_tile
    else:
        tq = _pick_q_tile(N, D, heads, mlp_dim, citm, xitm, budget)
    assert N % tq == 0
    n_q = N // tq

    est = _vmem_bytes(N, D, heads, mlp_dim, tq, citm, xitm)
    vmem_limit = int(min(hard_cap, max(32 * 2**20, int(est * 1.25))))

    # ---- host-side weight prep ----------------------------------------------
    # torch Linear weights are (out, in).  Attention runs in a transposed
    # dataflow (features x tokens) so W_q / W_k / W_v / W_o are used as-is; the
    # MLP weights are pre-transposed to (in, out).  The attention scale is
    # folded into the Q rows and matmul weights are cast to the compute dtype.
    wqkv = params["w_qkv"]                                  # (3D, D)
    wq = (wqkv[:D] * scale).astype(cdtype)                  # (D, D), scale folded
    wk = wqkv[D:2 * D].astype(cdtype)                       # (D, D)
    wv = wqkv[2 * D:].astype(cdtype)                        # (D, D)
    wo = params["w_o"].astype(cdtype)                       # (D, D)
    bo = params["b_o"].reshape(1, D).astype(jnp.float32)
    w1_t = params["w1"].T.astype(cdtype)                    # (D, mlp)
    b1 = params["b1"].reshape(1, mlp_dim).astype(jnp.float32)
    w2_t = params["w2"].T.astype(cdtype)                    # (mlp, D)
    b2 = params["b2"].reshape(1, D).astype(jnp.float32)
    ln1g = params["ln1_g"].reshape(1, D).astype(jnp.float32)
    ln1b = params["ln1_b"].reshape(1, D).astype(jnp.float32)
    ln2g = params["ln2_g"].reshape(1, D).astype(jnp.float32)
    ln2b = params["ln2_b"].reshape(1, D).astype(jnp.float32)

    wkw = _weight_spec_kwargs()

    def const_spec(shape):
        nd = len(shape)
        return pl.BlockSpec(shape, lambda b, q: (0,) * nd, **wkw)

    flops = 4 * B * N * D * (2 * D + N + mlp_dim)
    transcendentals = B * (heads * N * N + N * mlp_dim + heads * N + 6 * N)
    bytes_accessed = B * N * D * (xitm + x.dtype.itemsize) + \
        (4 * D * D + 2 * D * mlp_dim) * citm

    kernel = functools.partial(encoder_block_kernel, heads=heads, cdtype=cdtype)

    return pl.pallas_call(
        kernel,
        out_shape=jax.ShapeDtypeStruct((B, N, D), x.dtype),
        grid=(B, n_q),
        in_specs=[
            pl.BlockSpec((None, N, D), lambda b, q: (b, 0, 0)),   # x (full sequence, cdtype)
            const_spec((1, D)), const_spec((1, D)),               # ln1 gamma/beta
            const_spec((D, D)),                                   # W_q (scale folded)
            const_spec((D, D)), const_spec((D, D)),               # W_k, W_v
            const_spec((D, D)), const_spec((1, D)),               # W_o, b_o
            const_spec((1, D)), const_spec((1, D)),               # ln2 gamma/beta
            const_spec((D, mlp_dim)), const_spec((1, mlp_dim)),   # W1^T, b1
            const_spec((mlp_dim, D)), const_spec((1, D)),         # W2^T, b2
        ],
        out_specs=pl.BlockSpec((None, tq, D), lambda b, q: (b, q, 0)),
        scratch_shapes=[
            pltpu.VMEM((D, N), cdtype),      # K^T, persists across query tiles
            pltpu.VMEM((D, N), cdtype),      # V^T, persists across query tiles
        ],
        compiler_params=pltpu.CompilerParams(
            # batch steps are independent -> megacore-shardable; the query-tile
            # axis reuses the K/V scratch so it stays sequential.
            dimension_semantics=("parallel", "arbitrary"),
            vmem_limit_bytes=vmem_limit,
        ),
        cost_estimate=pl.CostEstimate(
            flops=flops, transcendentals=transcendentals,
            bytes_accessed=bytes_accessed),
    )(x_in, ln1g, ln1b, wq, wk, wv, wo, bo, ln2g, ln2b, w1_t, b1, w2_t, b2)


# ---------------------------------------------------------------------------
# pure-JAX reference (identical math, eval mode)
# ---------------------------------------------------------------------------

def encoder_block_ref(x, params, heads):
    B, N, D = x.shape
    dh = D // heads
    scale = float(D) ** (-0.5)

    xn = _layernorm(x, params["ln1_g"], params["ln1_b"])
    qkv = xn @ params["w_qkv"].T                              # (B, N, 3D)
    qkv = qkv.reshape(B, N, 3, heads, dh)
    q = jnp.transpose(qkv[:, :, 0], (0, 2, 1, 3))             # (B, H, N, dh)
    k = jnp.transpose(qkv[:, :, 1], (0, 2, 1, 3))
    v = jnp.transpose(qkv[:, :, 2], (0, 2, 1, 3))
    s = jnp.einsum("bhnd,bhmd->bhnm", q, k) * scale
    p = jax.nn.softmax(s, axis=-1)
    o = jnp.einsum("bhnm,bhmd->bhnd", p, v)
    o = jnp.transpose(o, (0, 2, 1, 3)).reshape(B, N, D)
    o = o @ params["w_o"].T + params["b_o"]
    x1 = x + o

    xn2 = _layernorm(x1, params["ln2_g"], params["ln2_b"])
    h1 = _gelu_exact(xn2 @ params["w1"].T + params["b1"])
    h2 = h1 @ params["w2"].T + params["b2"]
    return x1 + h2


def make_params(key, dim, heads, mlp_dim):
    ks = jax.random.split(key, 8)
    std = 0.02
    return {
        "ln1_g": jnp.ones((dim,), jnp.float32),
        "ln1_b": jnp.zeros((dim,), jnp.float32),
        "w_qkv": jax.random.normal(ks[0], (3 * dim, dim), jnp.float32) * std,
        "w_o": jax.random.normal(ks[1], (dim, dim), jnp.float32) * std,
        "b_o": jax.random.normal(ks[2], (dim,), jnp.float32) * std,
        "ln2_g": jnp.ones((dim,), jnp.float32),
        "ln2_b": jnp.zeros((dim,), jnp.float32),
        "w1": jax.random.normal(ks[3], (mlp_dim, dim), jnp.float32) * std,
        "b1": jax.random.normal(ks[4], (mlp_dim,), jnp.float32) * std,
        "w2": jax.random.normal(ks[5], (dim, mlp_dim), jnp.float32) * std,
        "b2": jax.random.normal(ks[6], (dim,), jnp.float32) * std,
    }


if __name__ == "__main__":
    key = jax.random.PRNGKey(0)

    # small shapes consistent with the module: batch=2, seq=8, dim=64, heads=8
    # (head_dim=8 = one f32 sublane pack), mlp=128
    B, N, dim, heads, mlp_dim = 2, 8, 64, 8, 128
    kx, kp = jax.random.split(key)
    x = jax.random.normal(kx, (B, N, dim), jnp.float32)
    params = make_params(kp, dim, heads, mlp_dim)
    ref = encoder_block_ref(x, params, heads)

    # f32 compute path (single query tile)
    out = jax.block_until_ready(
        encoder_block(x, params, heads, compute_dtype=jnp.float32))
    assert out.shape == (B, N, dim)
    err = float(jnp.max(jnp.abs(out - ref)))
    assert jnp.allclose(out, ref, atol=2e-3, rtol=2e-3), f"f32 max abs err {err}"

    # multi-query-tile path (exercises the persistent K/V scratch reuse)
    B2, N2 = 2, 16
    kx2, _ = jax.random.split(kx)
    x2 = jax.random.normal(kx2, (B2, N2, dim), jnp.float32)
    ref2 = encoder_block_ref(x2, params, heads)
    out2 = jax.block_until_ready(
        encoder_block(x2, params, heads, compute_dtype=jnp.float32, q_tile=8))
    err2 = float(jnp.max(jnp.abs(out2 - ref2)))
    assert jnp.allclose(out2, ref2, atol=2e-3, rtol=2e-3), f"tiled max abs err {err2}"

    # default compute dtype: bf16 MXU operands (f32 accumulation) on real TPU
    # hardware only -- non-TPU backends cannot execute BF16xBF16=F32 dots.
    if _on_tpu():
        out_def = jax.block_until_ready(encoder_block(x, params, heads))
        err3 = float(jnp.max(jnp.abs(out_def - ref)))
        assert jnp.allclose(out_def, ref, atol=5e-2, rtol=5e-2), \
            f"default-dtype max abs err {err3}"

    print("KERNEL_OK")
</pallas_src>

<mosaic_0001>
module attributes {stable_mosaic.version = 11 : i64} {
  func.func @encoder_block_kernel(%arg0: i32, %arg1: i32, %arg2: memref<1x8x64xf32, #tpu.memory_space<vmem>>, %arg3: memref<1x64xf32, #tpu.memory_space<vmem>>, %arg4: memref<1x64xf32, #tpu.memory_space<vmem>>, %arg5: memref<64x64xf32, #tpu.memory_space<vmem>>, %arg6: memref<64x64xf32, #tpu.memory_space<vmem>>, %arg7: memref<64x64xf32, #tpu.memory_space<vmem>>, %arg8: memref<64x64xf32, #tpu.memory_space<vmem>>, %arg9: memref<1x64xf32, #tpu.memory_space<vmem>>, %arg10: memref<1x64xf32, #tpu.memory_space<vmem>>, %arg11: memref<1x64xf32, #tpu.memory_space<vmem>>, %arg12: memref<64x128xf32, #tpu.memory_space<vmem>>, %arg13: memref<1x128xf32, #tpu.memory_space<vmem>>, %arg14: memref<128x64xf32, #tpu.memory_space<vmem>>, %arg15: memref<1x64xf32, #tpu.memory_space<vmem>>, %arg16: memref<1x8x64xf32, #tpu.memory_space<vmem>>, %arg17: memref<64x8xf32, #tpu.memory_space<vmem>>, %arg18: memref<64x8xf32, #tpu.memory_space<vmem>>) attributes {dimension_semantics = [#tpu.dimension_semantics<parallel>, #tpu.dimension_semantics<arbitrary>], iteration_bounds = array<i64: 2, 1>, scalar_prefetch = 0 : i64, scratch_operands = 2 : i64, tpu.core_type = #tpu.core_type<tc>, window_params = [{transform_indices = @transform_0, window_bounds = array<i64: 1, 8, 64>}, {pipeline_mode = #tpu.pipeline_mode<synchronous>, transform_indices = @transform_1, window_bounds = array<i64: 1, 64>}, {pipeline_mode = #tpu.pipeline_mode<synchronous>, transform_indices = @transform_2, window_bounds = array<i64: 1, 64>}, {pipeline_mode = #tpu.pipeline_mode<synchronous>, transform_indices = @transform_3, window_bounds = array<i64: 64, 64>}, {pipeline_mode = #tpu.pipeline_mode<synchronous>, transform_indices = @transform_4, window_bounds = array<i64: 64, 64>}, {pipeline_mode = #tpu.pipeline_mode<synchronous>, transform_indices = @transform_5, window_bounds = array<i64: 64, 64>}, {pipeline_mode = #tpu.pipeline_mode<synchronous>, transform_indices = @transform_6, window_bounds = array<i64: 64, 64>}, {pipeline_mode = #tpu.pipeline_mode<synchronous>, transform_indices = @transform_7, window_bounds = array<i64: 1, 64>}, {pipeline_mode = #tpu.pipeline_mode<synchronous>, transform_indices = @transform_8, window_bounds = array<i64: 1, 64>}, {pipeline_mode = #tpu.pipeline_mode<synchronous>, transform_indices = @transform_9, window_bounds = array<i64: 1, 64>}, {pipeline_mode = #tpu.pipeline_mode<synchronous>, transform_indices = @transform_10, window_bounds = array<i64: 64, 128>}, {pipeline_mode = #tpu.pipeline_mode<synchronous>, transform_indices = @transform_11, window_bounds = array<i64: 1, 128>}, {pipeline_mode = #tpu.pipeline_mode<synchronous>, transform_indices = @transform_12, window_bounds = array<i64: 128, 64>}, {pipeline_mode = #tpu.pipeline_mode<synchronous>, transform_indices = @transform_13, window_bounds = array<i64: 1, 64>}, {transform_indices = @transform_14, window_bounds = array<i64: 1, 8, 64>}]} {
    %c0_i32 = arith.constant 0 : i32
    %0 = arith.cmpi eq, %arg1, %c0_i32 : i32
    %1 = arith.extui %0 : i1 to i32
    %c0_i32_0 = arith.constant 0 : i32
    %2 = arith.cmpi ne, %1, %c0_i32_0 : i32
    scf.if %2 {
      %c0_53 = arith.constant 0 : index
      %c0_54 = arith.constant 0 : index
      %c0_55 = arith.constant 0 : index
      %108 = vector.load %arg2[%c0_53, %c0_54, %c0_55] : memref<1x8x64xf32, #tpu.memory_space<vmem>>, vector<1x8x64xf32>
      %109 = vector.shape_cast %108 : vector<1x8x64xf32> to vector<8x64xf32>
      %c0_56 = arith.constant 0 : index
      %c0_57 = arith.constant 0 : index
      %110 = vector.load %arg3[%c0_56, %c0_57] : memref<1x64xf32, #tpu.memory_space<vmem>>, vector<1x64xf32>
      %c0_58 = arith.constant 0 : index
      %c0_59 = arith.constant 0 : index
      %111 = vector.load %arg4[%c0_58, %c0_59] : memref<1x64xf32, #tpu.memory_space<vmem>>, vector<1x64xf32>
      %cst_60 = arith.constant dense<0.000000e+00> : vector<8xf32>
      %112 = vector.multi_reduction <add>, %109, %cst_60 [1] : vector<8x64xf32> to vector<8xf32>
      %113 = vector.shape_cast %112 : vector<8xf32> to vector<8x1xf32>
      %cst_61 = arith.constant 6.400000e+01 : f32
      %114 = vector.broadcast %cst_61 : f32 to vector<8x1xf32>
      %115 = arith.divf %113, %114 : vector<8x1xf32>
      %116 = arith.mulf %109, %109 : vector<8x64xf32>
      %cst_62 = arith.constant dense<0.000000e+00> : vector<8xf32>
      %117 = vector.multi_reduction <add>, %116, %cst_62 [1] : vector<8x64xf32> to vector<8xf32>
      %118 = vector.shape_cast %117 : vector<8xf32> to vector<8x1xf32>
      %cst_63 = arith.constant 6.400000e+01 : f32
      %119 = vector.broadcast %cst_63 : f32 to vector<8x1xf32>
      %120 = arith.divf %118, %119 : vector<8x1xf32>
      %121 = arith.mulf %115, %115 : vector<8x1xf32>
      %122 = arith.subf %120, %121 : vector<8x1xf32>
      %cst_64 = arith.constant 0.000000e+00 : f32
      %123 = vector.broadcast %cst_64 : f32 to vector<8x1xf32>
      %124 = arith.maximumf %122, %123 : vector<8x1xf32>
      %125 = vector.broadcast %115 : vector<8x1xf32> to vector<8x64xf32>
      %126 = arith.subf %109, %125 : vector<8x64xf32>
      %cst_65 = arith.constant 9.99999974E-6 : f32
      %127 = vector.broadcast %cst_65 : f32 to vector<8x1xf32>
      %128 = arith.addf %124, %127 : vector<8x1xf32>
      %129 = math.rsqrt %128 : vector<8x1xf32>
      %130 = vector.broadcast %129 : vector<8x1xf32> to vector<8x64xf32>
      %131 = arith.mulf %126, %130 : vector<8x64xf32>
      %132 = vector.broadcast %110 : vector<1x64xf32> to vector<8x64xf32>
      %133 = arith.mulf %131, %132 : vector<8x64xf32>
      %134 = vector.broadcast %111 : vector<1x64xf32> to vector<8x64xf32>
      %135 = arith.addf %133, %134 : vector<8x64xf32>
      %c0_66 = arith.constant 0 : index
      %c0_67 = arith.constant 0 : index
      %136 = vector.load %arg6[%c0_66, %c0_67] : memref<64x64xf32, #tpu.memory_space<vmem>>, vector<64x64xf32>
      %cst_68 = arith.constant dense<0.000000e+00> : vector<64x8xf32>
      %137 = tpu.matmul %136, %135, %cst_68 {dimension_numbers = #tpu.dot_dimension_numbers<[1], [1], [0], [0], [0, 0, 1, 0], [], []>} : vector<64x64xf32>, vector<8x64xf32>, vector<64x8xf32> -> vector<64x8xf32>
      %c0_69 = arith.constant 0 : index
      %c0_70 = arith.constant 0 : index
      %138 = vector.load %arg17[%c0_69, %c0_70] : memref<64x8xf32, #tpu.memory_space<vmem>>, vector<64x8xf32>
      tpu.vector_store %arg17[%c0_69, %c0_70], %137 {strides = array<i32>} : memref<64x8xf32, #tpu.memory_space<vmem>>, vector<64x8xf32>,
      %c0_71 = arith.constant 0 : index
      %c0_72 = arith.constant 0 : index
      %139 = vector.load %arg7[%c0_71, %c0_72] : memref<64x64xf32, #tpu.memory_space<vmem>>, vector<64x64xf32>
      %cst_73 = arith.constant dense<0.000000e+00> : vector<64x8xf32>
      %140 = tpu.matmul %139, %135, %cst_73 {dimension_numbers = #tpu.dot_dimension_numbers<[1], [1], [0], [0], [0, 0, 1, 0], [], []>} : vector<64x64xf32>, vector<8x64xf32>, vector<64x8xf32> -> vector<64x8xf32>
      %c0_74 = arith.constant 0 : index
      %c0_75 = arith.constant 0 : index
      %141 = vector.load %arg18[%c0_74, %c0_75] : memref<64x8xf32, #tpu.memory_space<vmem>>, vector<64x8xf32>
      tpu.vector_store %arg18[%c0_74, %c0_75], %140 {strides = array<i32>} : memref<64x8xf32, #tpu.memory_space<vmem>>, vector<64x8xf32>,
    } else {
    }
    %c8_i32 = arith.constant 8 : i32
    %3 = arith.muli %arg1, %c8_i32 : i32
    %4 = tpu.assume_multiple %3, 8 : i32
    %c0 = arith.constant 0 : index
    %5 = arith.index_cast %4 : i32 to index
    %c0_1 = arith.constant 0 : index
    %6 = vector.load %arg2[%c0, %5, %c0_1] : memref<1x8x64xf32, #tpu.memory_space<vmem>>, vector<1x8x64xf32>
    %7 = vector.shape_cast %6 : vector<1x8x64xf32> to vector<8x64xf32>
    %c0_2 = arith.constant 0 : index
    %c0_3 = arith.constant 0 : index
    %8 = vector.load %arg3[%c0_2, %c0_3] : memref<1x64xf32, #tpu.memory_space<vmem>>, vector<1x64xf32>
    %c0_4 = arith.constant 0 : index
    %c0_5 = arith.constant 0 : index
    %9 = vector.load %arg4[%c0_4, %c0_5] : memref<1x64xf32, #tpu.memory_space<vmem>>, vector<1x64xf32>
    %cst = arith.constant dense<0.000000e+00> : vector<8xf32>
    %10 = vector.multi_reduction <add>, %7, %cst [1] : vector<8x64xf32> to vector<8xf32>
    %11 = vector.shape_cast %10 : vector<8xf32> to vector<8x1xf32>
    %cst_6 = arith.constant 6.400000e+01 : f32
    %12 = vector.broadcast %cst_6 : f32 to vector<8x1xf32>
    %13 = arith.divf %11, %12 : vector<8x1xf32>
    %14 = arith.mulf %7, %7 : vector<8x64xf32>
    %cst_7 = arith.constant dense<0.000000e+00> : vector<8xf32>
    %15 = vector.multi_reduction <add>, %14, %cst_7 [1] : vector<8x64xf32> to vector<8xf32>
    %16 = vector.shape_cast %15 : vector<8xf32> to vector<8x1xf32>
    %cst_8 = arith.constant 6.400000e+01 : f32
    %17 = vector.broadcast %cst_8 : f32 to vector<8x1xf32>
    %18 = arith.divf %16, %17 : vector<8x1xf32>
    %19 = arith.mulf %13, %13 : vector<8x1xf32>
    %20 = arith.subf %18, %19 : vector<8x1xf32>
    %cst_9 = arith.constant 0.000000e+00 : f32
    %21 = vector.broadcast %cst_9 : f32 to vector<8x1xf32>
    %22 = arith.maximumf %20, %21 : vector<8x1xf32>
    %23 = vector.broadcast %13 : vector<8x1xf32> to vector<8x64xf32>
    %24 = arith.subf %7, %23 : vector<8x64xf32>
    %cst_10 = arith.constant 9.99999974E-6 : f32
    %25 = vector.broadcast %cst_10 : f32 to vector<8x1xf32>
    %26 = arith.addf %22, %25 : vector<8x1xf32>
    %27 = math.rsqrt %26 : vector<8x1xf32>
    %28 = vector.broadcast %27 : vector<8x1xf32> to vector<8x64xf32>
    %29 = arith.mulf %24, %28 : vector<8x64xf32>
    %30 = vector.broadcast %8 : vector<1x64xf32> to vector<8x64xf32>
    %31 = arith.mulf %29, %30 : vector<8x64xf32>
    %32 = vector.broadcast %9 : vector<1x64xf32> to vector<8x64xf32>
    %33 = arith.addf %31, %32 : vector<8x64xf32>
    %c0_11 = arith.constant 0 : index
    %c0_12 = arith.constant 0 : index
    %34 = vector.load %arg5[%c0_11, %c0_12] : memref<64x64xf32, #tpu.memory_space<vmem>>, vector<64x64xf32>
    %cst_13 = arith.constant dense<0.000000e+00> : vector<64x8xf32>
    %35 = tpu.matmul %34, %33, %cst_13 {dimension_numbers = #tpu.dot_dimension_numbers<[1], [1], [0], [0], [0, 0, 1, 0], [], []>} : vector<64x64xf32>, vector<8x64xf32>, vector<64x8xf32> -> vector<64x8xf32>
    %36 = vector.shape_cast %35 : vector<64x8xf32> to vector<8x8x8xf32>
    %c0_14 = arith.constant 0 : index
    %c0_15 = arith.constant 0 : index
    %37 = vector.load %arg17[%c0_14, %c0_15] : memref<64x8xf32, #tpu.memory_space<vmem>>, vector<64x8xf32>
    %38 = vector.shape_cast %37 : vector<64x8xf32> to vector<8x8x8xf32>
    %c0_16 = arith.constant 0 : index
    %c0_17 = arith.constant 0 : index
    %39 = vector.load %arg18[%c0_16, %c0_17] : memref<64x8xf32, #tpu.memory_space<vmem>>, vector<64x8xf32>
    %40 = vector.shape_cast %39 : vector<64x8xf32> to vector<8x8x8xf32>
    "tpu.trace_start"() <{level = 10 : i32, message = "hdq,hdk->hqk"}> : () -> ()
    %cst_18 = arith.constant dense<0.000000e+00> : vector<8x8x8xf32>
    %41 = tpu.matmul %36, %38, %cst_18 {dimension_numbers = #tpu.dot_dimension_numbers<[1], [1], [2], [2], [0, 0, 0, 2, 1, 2], [0], [0]>} : vector<8x8x8xf32>, vector<8x8x8xf32>, vector<8x8x8xf32> -> vector<8x8x8xf32>
    "tpu.trace_stop"() : () -> ()
    %cst_19 = arith.constant dense<0xFF800000> : vector<8x8xf32>
    %42 = vector.multi_reduction <maximumf>, %41, %cst_19 [2] : vector<8x8x8xf32> to vector<8x8xf32>
    %43 = vector.shape_cast %42 : vector<8x8xf32> to vector<8x8x1xf32>
    %44 = vector.broadcast %43 : vector<8x8x1xf32> to vector<8x8x8xf32>
    %45 = arith.subf %41, %44 : vector<8x8x8xf32>
    %46 = math.exp %45 : vector<8x8x8xf32>
    %cst_20 = arith.constant dense<0.000000e+00> : vector<8x8xf32>
    %47 = vector.multi_reduction <add>, %46, %cst_20 [2] : vector<8x8x8xf32> to vector<8x8xf32>
    "tpu.trace_start"() <{level = 10 : i32, message = "hdn,hqn->hdq"}> : () -> ()
    %cst_21 = arith.constant dense<0.000000e+00> : vector<8x8x8xf32>
    %48 = tpu.matmul %40, %46, %cst_21 {dimension_numbers = #tpu.dot_dimension_numbers<[2], [2], [1], [1], [0, 0, 0, 1, 1, 1], [0], [0]>} : vector<8x8x8xf32>, vector<8x8x8xf32>, vector<8x8x8xf32> -> vector<8x8x8xf32>
    "tpu.trace_stop"() : () -> ()
    %49 = tpu.reciprocal %47 {approx = true} : vector<8x8xf32> -> vector<8x8xf32>
    %50 = vector.shape_cast %49 : vector<8x8xf32> to vector<8x1x8xf32>
    %51 = vector.broadcast %50 : vector<8x1x8xf32> to vector<8x8x8xf32>
    %52 = arith.mulf %48, %51 : vector<8x8x8xf32>
    %53 = vector.shape_cast %52 : vector<8x8x8xf32> to vector<64x8xf32>
    %c0_22 = arith.constant 0 : index
    %c0_23 = arith.constant 0 : index
    %54 = vector.load %arg8[%c0_22, %c0_23] : memref<64x64xf32, #tpu.memory_space<vmem>>, vector<64x64xf32>
    %cst_24 = arith.constant dense<0.000000e+00> : vector<8x64xf32>
    %55 = tpu.matmul %53, %54, %cst_24 {dimension_numbers = #tpu.dot_dimension_numbers<[0], [1], [1], [0], [0, 1, 1, 0], [], []>} : vector<64x8xf32>, vector<64x64xf32>, vector<8x64xf32> -> vector<8x64xf32>
    %c0_25 = arith.constant 0 : index
    %c0_26 = arith.constant 0 : index
    %56 = vector.load %arg9[%c0_25, %c0_26] : memref<1x64xf32, #tpu.memory_space<vmem>>, vector<1x64xf32>
    %57 = vector.broadcast %56 : vector<1x64xf32> to vector<8x64xf32>
    %58 = arith.addf %55, %57 : vector<8x64xf32>
    %59 = arith.addf %7, %58 : vector<8x64xf32>
    %c0_27 = arith.constant 0 : index
    %c0_28 = arith.constant 0 : index
    %60 = vector.load %arg10[%c0_27, %c0_28] : memref<1x64xf32, #tpu.memory_space<vmem>>, vector<1x64xf32>
    %c0_29 = arith.constant 0 : index
    %c0_30 = arith.constant 0 : index
    %61 = vector.load %arg11[%c0_29, %c0_30] : memref<1x64xf32, #tpu.memory_space<vmem>>, vector<1x64xf32>
    %cst_31 = arith.constant dense<0.000000e+00> : vector<8xf32>
    %62 = vector.multi_reduction <add>, %59, %cst_31 [1] : vector<8x64xf32> to vector<8xf32>
    %63 = vector.shape_cast %62 : vector<8xf32> to vector<8x1xf32>
    %cst_32 = arith.constant 6.400000e+01 : f32
    %64 = vector.broadcast %cst_32 : f32 to vector<8x1xf32>
    %65 = arith.divf %63, %64 : vector<8x1xf32>
    %66 = arith.mulf %59, %59 : vector<8x64xf32>
    %cst_33 = arith.constant dense<0.000000e+00> : vector<8xf32>
    %67 = vector.multi_reduction <add>, %66, %cst_33 [1] : vector<8x64xf32> to vector<8xf32>
    %68 = vector.shape_cast %67 : vector<8xf32> to vector<8x1xf32>
    %cst_34 = arith.constant 6.400000e+01 : f32
    %69 = vector.broadcast %cst_34 : f32 to vector<8x1xf32>
    %70 = arith.divf %68, %69 : vector<8x1xf32>
    %71 = arith.mulf %65, %65 : vector<8x1xf32>
    %72 = arith.subf %70, %71 : vector<8x1xf32>
    %cst_35 = arith.constant 0.000000e+00 : f32
    %73 = vector.broadcast %cst_35 : f32 to vector<8x1xf32>
    %74 = arith.maximumf %72, %73 : vector<8x1xf32>
    %75 = vector.broadcast %65 : vector<8x1xf32> to vector<8x64xf32>
    %76 = arith.subf %59, %75 : vector<8x64xf32>
    %cst_36 = arith.constant 9.99999974E-6 : f32
    %77 = vector.broadcast %cst_36 : f32 to vector<8x1xf32>
    %78 = arith.addf %74, %77 : vector<8x1xf32>
    %79 = math.rsqrt %78 : vector<8x1xf32>
    %80 = vector.broadcast %79 : vector<8x1xf32> to vector<8x64xf32>
    %81 = arith.mulf %76, %80 : vector<8x64xf32>
    %82 = vector.broadcast %60 : vector<1x64xf32> to vector<8x64xf32>
    %83 = arith.mulf %81, %82 : vector<8x64xf32>
    %84 = vector.broadcast %61 : vector<1x64xf32> to vector<8x64xf32>
    %85 = arith.addf %83, %84 : vector<8x64xf32>
    %c0_37 = arith.constant 0 : index
    %c0_38 = arith.constant 0 : index
    %86 = vector.load %arg12[%c0_37, %c0_38] : memref<64x128xf32, #tpu.memory_space<vmem>>, vector<64x128xf32>
    %cst_39 = arith.constant dense<0.000000e+00> : vector<8x128xf32>
    %87 = tpu.matmul %85, %86, %cst_39 {dimension_numbers = #tpu.dot_dimension_numbers<[1], [0], [0], [1], [0, 0, 1, 1], [], []>} : vector<8x64xf32>, vector<64x128xf32>, vector<8x128xf32> -> vector<8x128xf32>
    %c0_40 = arith.constant 0 : index
    %c0_41 = arith.constant 0 : index
    %88 = vector.load %arg13[%c0_40, %c0_41] : memref<1x128xf32, #tpu.memory_space<vmem>>, vector<1x128xf32>
    %89 = vector.broadcast %88 : vector<1x128xf32> to vector<8x128xf32>
    %90 = arith.addf %87, %89 : vector<8x128xf32>
    %cst_42 = arith.constant 5.000000e-01 : f32
    %91 = vector.broadcast %cst_42 : f32 to vector<8x128xf32>
    %92 = arith.mulf %91, %90 : vector<8x128xf32>
    %cst_43 = arith.constant 0.707106769 : f32
    %93 = vector.broadcast %cst_43 : f32 to vector<8x128xf32>
    %94 = arith.mulf %90, %93 : vector<8x128xf32>
    %95 = math.erf %94 : vector<8x128xf32>
    %cst_44 = arith.constant 1.000000e+00 : f32
    %96 = vector.broadcast %cst_44 : f32 to vector<8x128xf32>
    %97 = arith.addf %96, %95 : vector<8x128xf32>
    %98 = arith.mulf %92, %97 : vector<8x128xf32>
    %c0_45 = arith.constant 0 : index
    %c0_46 = arith.constant 0 : index
    %99 = vector.load %arg14[%c0_45, %c0_46] : memref<128x64xf32, #tpu.memory_space<vmem>>, vector<128x64xf32>
    %cst_47 = arith.constant dense<0.000000e+00> : vector<8x64xf32>
    %100 = tpu.matmul %98, %99, %cst_47 {dimension_numbers = #tpu.dot_dimension_numbers<[1], [0], [0], [1], [0, 0, 1, 1], [], []>} : vector<8x128xf32>, vector<128x64xf32>, vector<8x64xf32> -> vector<8x64xf32>
    %c0_48 = arith.constant 0 : index
    %c0_49 = arith.constant 0 : index
    %101 = vector.load %arg15[%c0_48, %c0_49] : memref<1x64xf32, #tpu.memory_space<vmem>>, vector<1x64xf32>
    %102 = vector.broadcast %101 : vector<1x64xf32> to vector<8x64xf32>
    %103 = arith.addf %100, %102 : vector<8x64xf32>
    %104 = arith.addf %59, %103 : vector<8x64xf32>
    %c0_50 = arith.constant 0 : index
    %c0_51 = arith.constant 0 : index
    %c0_52 = arith.constant 0 : index
    %105 = vector.load %arg16[%c0_50, %c0_51, %c0_52] : memref<1x8x64xf32, #tpu.memory_space<vmem>>, vector<1x8x64xf32>
    %106 = vector.shape_cast %105 : vector<1x8x64xf32> to vector<8x64xf32>
    %107 = vector.shape_cast %104 : vector<8x64xf32> to vector<1x8x64xf32>
    tpu.vector_store %arg16[%c0_50, %c0_51, %c0_52], %107 {strides = array<i32>} : memref<1x8x64xf32, #tpu.memory_space<vmem>>, vector<1x8x64xf32>,
    return
  }
  func.func @transform_0(%arg0: i32, %arg1: i32) -> (i32, i32, i32) {
    %c0_i32 = arith.constant 0 : i32
    %c0_i32_0 = arith.constant 0 : i32
    %c0_i32_1 = arith.constant 0 : i32
    return %arg0, %c0_i32, %c0_i32_0 : i32, i32, i32
  }
  func.func @transform_1(%arg0: i32, %arg1: i32) -> (i32, i32) {
    %c0_i32 = arith.constant 0 : i32
    %c0_i32_0 = arith.constant 0 : i32
    %c0_i32_1 = arith.constant 0 : i32
    return %c0_i32, %c0_i32_0 : i32, i32
  }
  func.func @transform_2(%arg0: i32, %arg1: i32) -> (i32, i32) {
    %c0_i32 = arith.constant 0 : i32
    %c0_i32_0 = arith.constant 0 : i32
    %c0_i32_1 = arith.constant 0 : i32
    return %c0_i32, %c0_i32_0 : i32, i32
  }
  func.func @transform_3(%arg0: i32, %arg1: i32) -> (i32, i32) {
    %c0_i32 = arith.constant 0 : i32
    %c0_i32_0 = arith.constant 0 : i32
    %c0_i32_1 = arith.constant 0 : i32
    return %c0_i32, %c0_i32_0 : i32, i32
  }
  func.func @transform_4(%arg0: i32, %arg1: i32) -> (i32, i32) {
    %c0_i32 = arith.constant 0 : i32
    %c0_i32_0 = arith.constant 0 : i32
    %c0_i32_1 = arith.constant 0 : i32
    return %c0_i32, %c0_i32_0 : i32, i32
  }
  func.func @transform_5(%arg0: i32, %arg1: i32) -> (i32, i32) {
    %c0_i32 = arith.constant 0 : i32
    %c0_i32_0 = arith.constant 0 : i32
    %c0_i32_1 = arith.constant 0 : i32
    return %c0_i32, %c0_i32_0 : i32, i32
  }
  func.func @transform_6(%arg0: i32, %arg1: i32) -> (i32, i32) {
    %c0_i32 = arith.constant 0 : i32
    %c0_i32_0 = arith.constant 0 : i32
    %c0_i32_1 = arith.constant 0 : i32
    return %c0_i32, %c0_i32_0 : i32, i32
  }
  func.func @transform_7(%arg0: i32, %arg1: i32) -> (i32, i32) {
    %c0_i32 = arith.constant 0 : i32
    %c0_i32_0 = arith.constant 0 : i32
    %c0_i32_1 = arith.constant 0 : i32
    return %c0_i32, %c0_i32_0 : i32, i32
  }
  func.func @transform_8(%arg0: i32, %arg1: i32) -> (i32, i32) {
    %c0_i32 = arith.constant 0 : i32
    %c0_i32_0 = arith.constant 0 : i32
    %c0_i32_1 = arith.constant 0 : i32
    return %c0_i32, %c0_i32_0 : i32, i32
  }
  func.func @transform_9(%arg0: i32, %arg1: i32) -> (i32, i32) {
    %c0_i32 = arith.constant 0 : i32
    %c0_i32_0 = arith.constant 0 : i32
    %c0_i32_1 = arith.constant 0 : i32
    return %c0_i32, %c0_i32_0 : i32, i32
  }
  func.func @transform_10(%arg0: i32, %arg1: i32) -> (i32, i32) {
    %c0_i32 = arith.constant 0 : i32
    %c0_i32_0 = arith.constant 0 : i32
    %c0_i32_1 = arith.constant 0 : i32
    return %c0_i32, %c0_i32_0 : i32, i32
  }
  func.func @transform_11(%arg0: i32, %arg1: i32) -> (i32, i32) {
    %c0_i32 = arith.constant 0 : i32
    %c0_i32_0 = arith.constant 0 : i32
    %c0_i32_1 = arith.constant 0 : i32
    return %c0_i32, %c0_i32_0 : i32, i32
  }
  func.func @transform_12(%arg0: i32, %arg1: i32) -> (i32, i32) {
    %c0_i32 = arith.constant 0 : i32
    %c0_i32_0 = arith.constant 0 : i32
    %c0_i32_1 = arith.constant 0 : i32
    return %c0_i32, %c0_i32_0 : i32, i32
  }
  func.func @transform_13(%arg0: i32, %arg1: i32) -> (i32, i32) {
    %c0_i32 = arith.constant 0 : i32
    %c0_i32_0 = arith.constant 0 : i32
    %c0_i32_1 = arith.constant 0 : i32
    return %c0_i32, %c0_i32_0 : i32, i32
  }
  func.func @transform_14(%arg0: i32, %arg1: i32) -> (i32, i32, i32) {
    %c0_i32 = arith.constant 0 : i32
    %c0_i32_0 = arith.constant 0 : i32
    return %arg0, %arg1, %c0_i32 : i32, i32, i32
  }
}

</mosaic_0001>

<llo_original>
// kernel: tpu_custom_call.1
$region0: #{tpu_custom_call.1}
  #allocation0 [shape = 'u32[]', space=smem, size = 0x4, offset = 0x4, fixed_abs, tag = 'smem constant byte address 0x4 - core index']
  #allocation1 [shape = 'u32[144,128]{1,0:T(1,128)}', space=vmem, size = 0x12000, scoped, tag = 'internal scratch']
  #allocation2 [shape = 'f32[64,8]{1,0:T(8,128)}', space=vmem, size = 0x8000, scoped, tag = 'scratch operand']
  #allocation3 [shape = 'f32[64,8]{1,0:T(8,128)}', space=vmem, size = 0x8000, scoped, tag = 'scratch operand']
  %s0 = inlined_call_operand.hbm [shape: f32[2,8,64], index: 0, kind: input, shape index: {}]
  %s1 = inlined_call_operand.vmem [shape: f32[1,64], index: 1, kind: input, shape index: {}]
  %s2 = inlined_call_operand.vmem [shape: f32[1,64], index: 2, kind: input, shape index: {}]
  %s3 = inlined_call_operand.vmem [shape: f32[64,64], index: 3, kind: input, shape index: {}]
  %s4 = inlined_call_operand.vmem [shape: f32[64,64], index: 4, kind: input, shape index: {}]
  %s5 = inlined_call_operand.vmem [shape: f32[64,64], index: 5, kind: input, shape index: {}]
  %s6 = inlined_call_operand.hbm [shape: f32[64,64], index: 6, kind: input, shape index: {}]
  %s7 = inlined_call_operand.vmem [shape: f32[1,64], index: 7, kind: input, shape index: {}]
  %s8 = inlined_call_operand.vmem [shape: f32[1,64], index: 8, kind: input, shape index: {}]
  %s9 = inlined_call_operand.vmem [shape: f32[1,64], index: 9, kind: input, shape index: {}]
  %s10 = inlined_call_operand.hbm [shape: f32[64,128], index: 10, kind: input, shape index: {}]
  %s11 = inlined_call_operand.vmem [shape: f32[1,128], index: 11, kind: input, shape index: {}]
  %s12 = inlined_call_operand.vmem [shape: f32[128,64], index: 12, kind: input, shape index: {}]
  %s13 = inlined_call_operand.vmem [shape: f32[1,64], index: 13, kind: input, shape index: {}]
  %s14 = inlined_call_operand.hbm [shape: f32[2,8,64], index: 14, kind: output, shape index: {}]
  %s15 = sld [smem:[#allocation0]]
  $region105: #{tpu_custom_call.1} parent=0
    _
  %s17 = ssub.s32 1, %s15
  %s18 = scalar_select 0, %s17, %s15
  $region1: #{tpu_custom_call.1} parent=0
    #allocation4 [shape = 'u8[8192]{0}', space=vmem, size = 0x2000, scoped, tag = 'input window, operand 0']
    #allocation5 [shape = 's32[2]{0}', space=sflag, size = 0x8, scoped, tag = 'scoped memory for tpu_custom_call.1']
    #allocation6 [shape = 's32[2]{0}', space=sflag, size = 0x8, scoped, tag = 'scoped memory for tpu_custom_call.1']
    #allocation7 [shape = 'u8[32768]{0}', space=vmem, size = 0x8000, scoped, tag = 'input window, operand 6, single buffered']
    #allocation8 [shape = 's32[1]{0}', space=sflag, size = 0x4, scoped, tag = 'scoped memory for tpu_custom_call.1']
    #allocation9 [shape = 'u8[32768]{0}', space=vmem, size = 0x8000, scoped, tag = 'input window, operand 10, single buffered']
    #allocation10 [shape = 'u8[8192]{0}', space=vmem, size = 0x2000, scoped, tag = 'output window, operand 0']
    %19 = vsyncpa [#allocation5], 0
    %s20 = scalar_lea.sflag [#allocation5], 1
    %21 = vsyncpa %s20, 0
    %22 = vsyncpa [#allocation8], 0
    %23 = vsyncpa [#allocation6], 0
    %s24 = scalar_lea.sflag [#allocation6], 1
    %25 = vsyncpa %s24, 0
    loop: start=0, step=1, limit=4
    $region2: #{tpu_custom_call.1} parent=1 // loop_pre_header
      _
    $region3: #{tpu_custom_call.1} parent=1 // loop_header
      %s27 = sphi 0, %s31
      %p28 = scmp.ge.s32.totalorder %s27, 4
      %s34 = sphi 0, %s46
      %s35 = sphi 0, %s42
      %s36 = sphi 0, %s34
      %s37 = sphi 0, %s35
      %s38 = sphi 0, %s36
      %s39 = sphi 0, %s37
      %s49 = sphi 0, %s51
      %s52 = sphi 0, %s49
      %s53 = sphi 0, %s52
      %s69 = sphi 0, %s53
      %s73 = sphi 0, %s73
      %s75 = sphi 0, %s73
      %s76 = sphi 0, %s75
      %s90 = sphi 0, %s76
      %s94 = sphi 0, %s94
      %s96 = sphi 0, %s94
      %s97 = sphi 0, %s96
      %s111 = sphi 0, %s97
      %s115 = sphi 0, %s115
      %s117 = sphi 0, %s115
      %s118 = sphi 0, %s117
      %s132 = sphi 0, %s118
      %s136 = sphi 0, %s136
      %s138 = sphi 0, %s136
      %s139 = sphi 0, %s138
      %s153 = sphi 0, %s139
      %s157 = sphi 0, %s157
      %s159 = sphi 0, %s157
      %s160 = sphi 0, %s159
      %s174 = sphi 0, %s160
      %s178 = sphi 0, %s178
      %s180 = sphi 0, %s178
      %s181 = sphi 0, %s180
      %s195 = sphi 0, %s181
      %s199 = sphi 0, %s199
      %s201 = sphi 0, %s199
      %s202 = sphi 0, %s201
      %s216 = sphi 0, %s202
      %s220 = sphi 0, %s220
      %s222 = sphi 0, %s220
      %s223 = sphi 0, %s222
      %s237 = sphi 0, %s223
      %s241 = sphi 0, %s241
      %s243 = sphi 0, %s241
      %s244 = sphi 0, %s243
      %s258 = sphi 0, %s244
      %s262 = sphi 0, %s262
      %s264 = sphi 0, %s262
      %s265 = sphi 0, %s264
      %s279 = sphi 0, %s265
      %s283 = sphi 0, %s283
      %s285 = sphi 0, %s283
      %s286 = sphi 0, %s285
      %s300 = sphi 0, %s286
      %s304 = sphi 0, %s304
      %s306 = sphi 0, %s304
      %s307 = sphi 0, %s306
      %s321 = sphi 0, %s307
      %s325 = sphi 0, %s325
      %s327 = sphi 0, %s325
      %s328 = sphi 0, %s327
      %s342 = sphi 0, %s328
      %s350 = sphi 0, %s352
      %s353 = sphi 0, %s350
      %s354 = sphi 0, %s353
      %s370 = sphi 0, %s354
    $region4: #{tpu_custom_call.1} parent=1 // loop_header_branch
      %30 = sbr.rel (%p28) target = $region8
    $region5: #{tpu_custom_call.1} parent=1 // loop_body
      %s32 = ssub.s32 %s27, 1
      %s33 = ssub.s32 %s27, 2
      %s40 = sadd.s32 1, %s35
      %p41 = scmp.ge.s32.totalorder %s40, 1
      %s42 = scalar_select %p41, 0, %s40
      %s43 = sadd.s32 1, %s34
      %s44 = scalar_select %p41, %s43, %s34
      %p45 = scmp.ge.s32.totalorder %s44, 2
      %s46 = scalar_select %p45, 0, %s44
      %s47 = ssub.s32 %s34, %s46
      %p48 = scmp.eq.s32.totalorder %s47, 0
      %s50 = sadd.s32 %s49, 1
      %s51 = scalar_select %p48, %s49, %s50
      %p54 = pneg %p48
      %p55 = scmp.eq.s32.totalorder %s27, 1
      %p56 = por %p54, %p55
      %p57 = scmp.ne.s32.totalorder %s49, %s52
      %p58 = scmp.eq.s32.totalorder %s27, 0
      %p59 = por %p57, %p58
      %p60 = scmp.ne.s32.totalorder %s49, %s52
      %p61 = scmp.eq.s32.totalorder %s32, 1
      %p62 = por %p60, %p61
      %p63 = scmp.ne.s32.totalorder %s52, %s53
      %p64 = scmp.eq.s32.totalorder %s32, 0
      %p65 = por %p63, %p64
      %p66 = scmp.ne.s32.totalorder %s52, %s53
      %p67 = scmp.eq.s32.totalorder %s33, 1
      %p68 = por %p66, %p67
      %p70 = scmp.ne.s32.totalorder %s53, %s69
      %p71 = scmp.eq.s32.totalorder %s33, 0
      %p72 = por %p70, %p71
      %s74 = sadd.s32 %s73, 1
      %p77 = scmp.eq.s32.totalorder %s27, 1
      %p78 = scmp.ne.s32.totalorder %s73, %s75
      %p79 = scmp.eq.s32.totalorder %s27, 0
      %p80 = por %p78, %p79
      %p81 = scmp.ne.s32.totalorder %s73, %s75
      %p82 = scmp.eq.s32.totalorder %s32, 1
      %p83 = por %p81, %p82
      %p84 = scmp.ne.s32.totalorder %s75, %s76
      %p85 = scmp.eq.s32.totalorder %s32, 0
      %p86 = por %p84, %p85
      %p87 = scmp.ne.s32.totalorder %s75, %s76
      %p88 = scmp.eq.s32.totalorder %s33, 1
      %p89 = por %p87, %p88
      %p91 = scmp.ne.s32.totalorder %s76, %s90
      %p92 = scmp.eq.s32.totalorder %s33, 0
      %p93 = por %p91, %p92
      %s95 = sadd.s32 %s94, 1
      %p98 = scmp.eq.s32.totalorder %s27, 1
      %p99 = scmp.ne.s32.totalorder %s94, %s96
      %p100 = scmp.eq.s32.totalorder %s27, 0
      %p101 = por %p99, %p100
      %p102 = scmp.ne.s32.totalorder %s94, %s96
      %p103 = scmp.eq.s32.totalorder %s32, 1
      %p104 = por %p102, %p103
      %p105 = scmp.ne.s32.totalorder %s96, %s97
      %p106 = scmp.eq.s32.totalorder %s32, 0
      %p107 = por %p105, %p106
      %p108 = scmp.ne.s32.totalorder %s96, %s97
      %p109 = scmp.eq.s32.totalorder %s33, 1
      %p110 = por %p108, %p109
      %p112 = scmp.ne.s32.totalorder %s97, %s111
      %p113 = scmp.eq.s32.totalorder %s33, 0
      %p114 = por %p112, %p113
      %s116 = sadd.s32 %s115, 1
      %p119 = scmp.eq.s32.totalorder %s27, 1
      %p120 = scmp.ne.s32.totalorder %s115, %s117
      %p121 = scmp.eq.s32.totalorder %s27, 0
      %p122 = por %p120, %p121
      %p123 = scmp.ne.s32.totalorder %s115, %s117
      %p124 = scmp.eq.s32.totalorder %s32, 1
      %p125 = por %p123, %p124
      %p126 = scmp.ne.s32.totalorder %s117, %s118
      %p127 = scmp.eq.s32.totalorder %s32, 0
      %p128 = por %p126, %p127
      %p129 = scmp.ne.s32.totalorder %s117, %s118
      %p130 = scmp.eq.s32.totalorder %s33, 1
      %p131 = por %p129, %p130
      %p133 = scmp.ne.s32.totalorder %s118, %s132
      %p134 = scmp.eq.s32.totalorder %s33, 0
      %p135 = por %p133, %p134
      %s137 = sadd.s32 %s136, 1
      %p140 = scmp.eq.s32.totalorder %s27, 1
      %p141 = scmp.ne.s32.totalorder %s136, %s138
      %p142 = scmp.eq.s32.totalorder %s27, 0
      %p143 = por %p141, %p142
      %p144 = scmp.ne.s32.totalorder %s136, %s138
      %p145 = scmp.eq.s32.totalorder %s32, 1
      %p146 = por %p144, %p145
      %p147 = scmp.ne.s32.totalorder %s138, %s139
      %p148 = scmp.eq.s32.totalorder %s32, 0
      %p149 = por %p147, %p148
      %p150 = scmp.ne.s32.totalorder %s138, %s139
      %p151 = scmp.eq.s32.totalorder %s33, 1
      %p152 = por %p150, %p151
      %p154 = scmp.ne.s32.totalorder %s139, %s153
      %p155 = scmp.eq.s32.totalorder %s33, 0
      %p156 = por %p154, %p155
      %s158 = sadd.s32 %s157, 1
      %p161 = scmp.eq.s32.totalorder %s27, 1
      %p162 = scmp.ne.s32.totalorder %s157, %s159
      %p163 = scmp.eq.s32.totalorder %s27, 0
      %p164 = por %p162, %p163
      %p165 = scmp.ne.s32.totalorder %s157, %s159
      %p166 = scmp.eq.s32.totalorder %s32, 1
      %p167 = por %p165, %p166
      %p168 = scmp.ne.s32.totalorder %s159, %s160
      %p169 = scmp.eq.s32.totalorder %s32, 0
      %p170 = por %p168, %p169
      %p171 = scmp.ne.s32.totalorder %s159, %s160
      %p172 = scmp.eq.s32.totalorder %s33, 1
      %p173 = por %p171, %p172
      %p175 = scmp.ne.s32.totalorder %s160, %s174
      %p176 = scmp.eq.s32.totalorder %s33, 0
      %p177 = por %p175, %p176
      %s179 = sadd.s32 %s178, 1
      %p182 = scmp.eq.s32.totalorder %s27, 1
      %p183 = scmp.ne.s32.totalorder %s178, %s180
      %p184 = scmp.eq.s32.totalorder %s27, 0
      %p185 = por %p183, %p184
      %p186 = scmp.ne.s32.totalorder %s178, %s180
      %p187 = scmp.eq.s32.totalorder %s32, 1
      %p188 = por %p186, %p187
      %p189 = scmp.ne.s32.totalorder %s180, %s181
      %p190 = scmp.eq.s32.totalorder %s32, 0
      %p191 = por %p189, %p190
      %p192 = scmp.ne.s32.totalorder %s180, %s181
      %p193 = scmp.eq.s32.totalorder %s33, 1
      %p194 = por %p192, %p193
      %p196 = scmp.ne.s32.totalorder %s181, %s195
      %p197 = scmp.eq.s32.totalorder %s33, 0
      %p198 = por %p196, %p197
      %s200 = sadd.s32 %s199, 1
      %p203 = scmp.eq.s32.totalorder %s27, 1
      %p204 = scmp.ne.s32.totalorder %s199, %s201
      %p205 = scmp.eq.s32.totalorder %s27, 0
      %p206 = por %p204, %p205
      %p207 = scmp.ne.s32.totalorder %s199, %s201
      %p208 = scmp.eq.s32.totalorder %s32, 1
      %p209 = por %p207, %p208
      %p210 = scmp.ne.s32.totalorder %s201, %s202
      %p211 = scmp.eq.s32.totalorder %s32, 0
      %p212 = por %p210, %p211
      %p213 = scmp.ne.s32.totalorder %s201, %s202
      %p214 = scmp.eq.s32.totalorder %s33, 1
      %p215 = por %p213, %p214
      %p217 = scmp.ne.s32.totalorder %s202, %s216
      %p218 = scmp.eq.s32.totalorder %s33, 0
      %p219 = por %p217, %p218
      %s221 = sadd.s32 %s220, 1
      %p224 = scmp.eq.s32.totalorder %s27, 1
      %p225 = scmp.ne.s32.totalorder %s220, %s222
      %p226 = scmp.eq.s32.totalorder %s27, 0
      %p227 = por %p225, %p226
      %p228 = scmp.ne.s32.totalorder %s220, %s222
      %p229 = scmp.eq.s32.totalorder %s32, 1
      %p230 = por %p228, %p229
      %p231 = scmp.ne.s32.totalorder %s222, %s223
      %p232 = scmp.eq.s32.totalorder %s32, 0
      %p233 = por %p231, %p232
      %p234 = scmp.ne.s32.totalorder %s222, %s223
      %p235 = scmp.eq.s32.totalorder %s33, 1
      %p236 = por %p234, %p235
      %p238 = scmp.ne.s32.totalorder %s223, %s237
      %p239 = scmp.eq.s32.totalorder %s33, 0
      %p240 = por %p238, %p239
      %s242 = sadd.s32 %s241, 1
      %p245 = scmp.eq.s32.totalorder %s27, 1
      %p246 = scmp.ne.s32.totalorder %s241, %s243
      %p247 = scmp.eq.s32.totalorder %s27, 0
      %p248 = por %p246, %p247
      %p249 = scmp.ne.s32.totalorder %s241, %s243
      %p250 = scmp.eq.s32.totalorder %s32, 1
      %p251 = por %p249, %p250
      %p252 = scmp.ne.s32.totalorder %s243, %s244
      %p253 = scmp.eq.s32.totalorder %s32, 0
      %p254 = por %p252, %p253
      %p255 = scmp.ne.s32.totalorder %s243, %s244
      %p256 = scmp.eq.s32.totalorder %s33, 1
      %p257 = por %p255, %p256
      %p259 = scmp.ne.s32.totalorder %s244, %s258
      %p260 = scmp.eq.s32.totalorder %s33, 0
      %p261 = por %p259, %p260
      %s263 = sadd.s32 %s262, 1
      %p266 = scmp.eq.s32.totalorder %s27, 1
      %p267 = scmp.ne.s32.totalorder %s262, %s264
      %p268 = scmp.eq.s32.totalorder %s27, 0
      %p269 = por %p267, %p268
      %p270 = scmp.ne.s32.totalorder %s262, %s264
      %p271 = scmp.eq.s32.totalorder %s32, 1
      %p272 = por %p270, %p271
      %p273 = scmp.ne.s32.totalorder %s264, %s265
      %p274 = scmp.eq.s32.totalorder %s32, 0
      %p275 = por %p273, %p274
      %p276 = scmp.ne.s32.totalorder %s264, %s265
      %p277 = scmp.eq.s32.totalorder %s33, 1
      %p278 = por %p276, %p277
      %p280 = scmp.ne.s32.totalorder %s265, %s279
      %p281 = scmp.eq.s32.totalorder %s33, 0
      %p282 = por %p280, %p281
      %s284 = sadd.s32 %s283, 1
      %p287 = scmp.eq.s32.totalorder %s27, 1
      %p288 = scmp.ne.s32.totalorder %s283, %s285
      %p289 = scmp.eq.s32.totalorder %s27, 0
      %p290 = por %p288, %p289
      %p291 = scmp.ne.s32.totalorder %s283, %s285
      %p292 = scmp.eq.s32.totalorder %s32, 1
      %p293 = por %p291, %p292
      %p294 = scmp.ne.s32.totalorder %s285, %s286
      %p295 = scmp.eq.s32.totalorder %s32, 0
      %p296 = por %p294, %p295
      %p297 = scmp.ne.s32.totalorder %s285, %s286
      %p298 = scmp.eq.s32.totalorder %s33, 1
      %p299 = por %p297, %p298
      %p301 = scmp.ne.s32.totalorder %s286, %s300
      %p302 = scmp.eq.s32.totalorder %s33, 0
      %p303 = por %p301, %p302
      %s305 = sadd.s32 %s304, 1
      %p308 = scmp.eq.s32.totalorder %s27, 1
      %p309 = scmp.ne.s32.totalorder %s304, %s306
      %p310 = scmp.eq.s32.totalorder %s27, 0
      %p311 = por %p309, %p310
      %p312 = scmp.ne.s32.totalorder %s304, %s306
      %p313 = scmp.eq.s32.totalorder %s32, 1
      %p314 = por %p312, %p313
      %p315 = scmp.ne.s32.totalorder %s306, %s307
      %p316 = scmp.eq.s32.totalorder %s32, 0
      %p317 = por %p315, %p316
      %p318 = scmp.ne.s32.totalorder %s306, %s307
      %p319 = scmp.eq.s32.totalorder %s33, 1
      %p320 = por %p318, %p319
      %p322 = scmp.ne.s32.totalorder %s307, %s321
      %p323 = scmp.eq.s32.totalorder %s33, 0
      %p324 = por %p322, %p323
      %s326 = sadd.s32 %s325, 1
      %p329 = scmp.eq.s32.totalorder %s27, 1
      %p330 = scmp.ne.s32.totalorder %s325, %s327
      %p331 = scmp.eq.s32.totalorder %s27, 0
      %p332 = por %p330, %p331
      %p333 = scmp.ne.s32.totalorder %s325, %s327
      %p334 = scmp.eq.s32.totalorder %s32, 1
      %p335 = por %p333, %p334
      %p336 = scmp.ne.s32.totalorder %s327, %s328
      %p337 = scmp.eq.s32.totalorder %s32, 0
      %p338 = por %p336, %p337
      %p339 = scmp.ne.s32.totalorder %s327, %s328
      %p340 = scmp.eq.s32.totalorder %s33, 1
      %p341 = por %p339, %p340
      %p343 = scmp.ne.s32.totalorder %s328, %s342
      %p344 = scmp.eq.s32.totalorder %s33, 0
      %p345 = por %p343, %p344
      %s346 = ssub.s32 %s34, %s46
      %s347 = ssub.s32 %s35, %s42
      %s348 = sor.u32 %s346, %s347
      %p349 = scmp.eq.s32.totalorder %s348, 0
      %s351 = sadd.s32 %s350, 1
      %s352 = scalar_select %p349, %s350, %s351
      %p355 = pneg %p349
      %p356 = scmp.eq.s32.totalorder %s27, 1
      %p357 = por %p355, %p356
      %p358 = scmp.ne.s32.totalorder %s350, %s353
      %p359 = scmp.eq.s32.totalorder %s27, 0
      %p360 = por %p358, %p359
      %p361 = scmp.ne.s32.totalorder %s350, %s353
      %p362 = scmp.eq.s32.totalorder %s32, 1
      %p363 = por %p361, %p362
      %p364 = scmp.ne.s32.totalorder %s353, %s354
      %p365 = scmp.eq.s32.totalorder %s32, 0
      %p366 = por %p364, %p365
      %p367 = scmp.ne.s32.totalorder %s353, %s354
      %p368 = scmp.eq.s32.totalorder %s33, 1
      %p369 = por %p367, %p368
      %p371 = scmp.ne.s32.totalorder %s354, %s370
      %p372 = scmp.eq.s32.totalorder %s33, 0
      %p373 = por %p371, %p372
      %p374 = scmp.le.s32.totalorder 1, %s27
      %p375 = scmp.lt.s32.totalorder %s27, 3
      %p376 = pnand %p374, %p375
      %p377 = pneg %p376
      // Predicated region
      $region9: #{tpu_custom_call.1} parent=5 // pred_check
        _
      $region10: #{tpu_custom_call.1} parent=5 // pred_check_branch
        %379 = sbr.rel (%p376) target = $region12
      $region11: #{tpu_custom_call.1} parent=5 // pred_region
        %s380 = ssub.s32 %s27, 1
        // Predicated region
        $region13: #{tpu_custom_call.1} parent=11 // pred_check
          %p381 = pneg %p86
        $region14: #{tpu_custom_call.1} parent=11 // pred_check_branch
          %383 = sbr.rel (%p381) target = $region16
        $region15: #{tpu_custom_call.1} parent=11 // pred_region
          _
        $region16: #{tpu_custom_call.1} parent=11 // pred_fallthru
          _
        // Predicated region
        $region17: #{tpu_custom_call.1} parent=11 // pred_check
          %p384 = pneg %p107
        $region18: #{tpu_custom_call.1} parent=11 // pred_check_branch
          %386 = sbr.rel (%p384) target = $region20
        $region19: #{tpu_custom_call.1} parent=11 // pred_region
          _
        $region20: #{tpu_custom_call.1} parent=11 // pred_fallthru
          _
        // Predicated region
        $region21: #{tpu_custom_call.1} parent=11 // pred_check
          %p387 = pneg %p128
        $region22: #{tpu_custom_call.1} parent=11 // pred_check_branch
          %389 = sbr.rel (%p387) target = $region24
        $region23: #{tpu_custom_call.1} parent=11 // pred_region
          _
        $region24: #{tpu_custom_call.1} parent=11 // pred_fallthru
          _
        // Predicated region
        $region25: #{tpu_custom_call.1} parent=11 // pred_check
          %p390 = pneg %p149
        $region26: #{tpu_custom_call.1} parent=11 // pred_check_branch
          %392 = sbr.rel (%p390) target = $region28
        $region27: #{tpu_custom_call.1} parent=11 // pred_region
          _
        $region28: #{tpu_custom_call.1} parent=11 // pred_fallthru
          _
        // Predicated region
        $region29: #{tpu_custom_call.1} parent=11 // pred_check
          %p393 = pneg %p170
        $region30: #{tpu_custom_call.1} parent=11 // pred_check_branch
          %395 = sbr.rel (%p393) target = $region32
        $region31: #{tpu_custom_call.1} parent=11 // pred_region
          _
        $region32: #{tpu_custom_call.1} parent=11 // pred_fallthru
          _
        // Predicated region
        $region33: #{tpu_custom_call.1} parent=11 // pred_check
          %p396 = pneg %p191
        $region34: #{tpu_custom_call.1} parent=11 // pred_check_branch
          %398 = sbr.rel (%p396) target = $region36
        $region35: #{tpu_custom_call.1} parent=11 // pred_region
          %s400 = ssub.s32 1024, 1024
          %401 = vsyncadd [#allocation8], %s400
          %s402 = sshll.u32 [#allocation7], 4
          %s403 = int_to_ptr.vmem [resolvable:$true] %s402
          %408 = dma.hbm_to_vmem [thread:$0]  %s6, 1024, %s403, [#allocation8], 128, 128, 8
        $region36: #{tpu_custom_call.1} parent=11 // pred_fallthru
          _
        // Predicated region
        $region37: #{tpu_custom_call.1} parent=11 // pred_check
          %p409 = pneg %p212
        $region38: #{tpu_custom_call.1} parent=11 // pred_check_branch
          %411 = sbr.rel (%p409) target = $region40
        $region39: #{tpu_custom_call.1} parent=11 // pred_region
          _
        $region40: #{tpu_custom_call.1} parent=11 // pred_fallthru
          _
        // Predicated region
        $region41: #{tpu_custom_call.1} parent=11 // pred_check
          %p412 = pneg %p233
        $region42: #{tpu_custom_call.1} parent=11 // pred_check_branch
          %414 = sbr.rel (%p412) target = $region44
        $region43: #{tpu_custom_call.1} parent=11 // pred_region
          _
        $region44: #{tpu_custom_call.1} parent=11 // pred_fallthru
          _
        // Predicated region
        $region45: #{tpu_custom_call.1} parent=11 // pred_check
          %p415 = pneg %p254
        $region46: #{tpu_custom_call.1} parent=11 // pred_check_branch
          %417 = sbr.rel (%p415) target = $region48
        $region47: #{tpu_custom_call.1} parent=11 // pred_region
          _
        $region48: #{tpu_custom_call.1} parent=11 // pred_fallthru
          _
        // Predicated region
        $region49: #{tpu_custom_call.1} parent=11 // pred_check
          %p418 = pneg %p275
        $region50: #{tpu_custom_call.1} parent=11 // pred_check_branch
          %420 = sbr.rel (%p418) target = $region52
        $region51: #{tpu_custom_call.1} parent=11 // pred_region
          %s422 = ssub.s32 1024, 1024
          %423 = vsyncadd [#allocation8], %s422
          %s424 = sshll.u32 [#allocation9], 4
          %s425 = int_to_ptr.vmem [resolvable:$true] %s424
          %430 = dma.hbm_to_vmem [thread:$0]  %s10, 1024, %s425, [#allocation8], 128, 128, 8
        $region52: #{tpu_custom_call.1} parent=11 // pred_fallthru
          _
        // Predicated region
        $region53: #{tpu_custom_call.1} parent=11 // pred_check
          %p431 = pneg %p296
        $region54: #{tpu_custom_call.1} parent=11 // pred_check_branch
          %433 = sbr.rel (%p431) target = $region56
        $region55: #{tpu_custom_call.1} parent=11 // pred_region
          _
        $region56: #{tpu_custom_call.1} parent=11 // pred_fallthru
          _
        // Predicated region
        $region57: #{tpu_custom_call.1} parent=11 // pred_check
          %p434 = pneg %p317
        $region58: #{tpu_custom_call.1} parent=11 // pred_check_branch
          %436 = sbr.rel (%p434) target = $region60
        $region59: #{tpu_custom_call.1} parent=11 // pred_region
          _
        $region60: #{tpu_custom_call.1} parent=11 // pred_fallthru
          _
        // Predicated region
        $region61: #{tpu_custom_call.1} parent=11 // pred_check
          %p437 = pneg %p338
        $region62: #{tpu_custom_call.1} parent=11 // pred_check_branch
          %439 = sbr.rel (%p437) target = $region64
        $region63: #{tpu_custom_call.1} parent=11 // pred_region
          _
        $region64: #{tpu_custom_call.1} parent=11 // pred_fallthru
          _
      $region12: #{tpu_custom_call.1} parent=5 // pred_fallthru
        _
      %p440 = scmp.lt.s32.totalorder %s27, 2
      // Predicated region
      $region65: #{tpu_custom_call.1} parent=5 // pred_check
        %p441 = pneg %p440
      $region66: #{tpu_custom_call.1} parent=5 // pred_check_branch
        %443 = sbr.rel (%p441) target = $region68
      $region67: #{tpu_custom_call.1} parent=5 // pred_region
        // Predicated region
        $region69: #{tpu_custom_call.1} parent=67 // pred_check
          %p444 = pneg %p59
        $region70: #{tpu_custom_call.1} parent=67 // pred_check_branch
          %446 = sbr.rel (%p444) target = $region72
        $region71: #{tpu_custom_call.1} parent=67 // pred_region
          %s447 = sand.u32 %s49, 1
          %s448 = scalar_lea.sflag [#allocation5], %s447
          %s449 = sand.u32 %s49, 1
          %s450 = smul.addr %s449, 8
          %s451 = scalar_lea.vmem [#allocation4], %s450
          %s453 = ssub.s32 128, 128
          %454 = vsyncadd %s448, %s453
          %s455 = smul.addr %s34, 128
          %s456 = scalar_lea.hbm %s0, %s455
          %s458 = sshll.u32 %s451, 4
          %s459 = int_to_ptr.vmem [resolvable:$true] %s458
          %461 = dma.hbm_to_vmem [thread:$0]  %s456, 128, %s459, %s448
        $region72: #{tpu_custom_call.1} parent=67 // pred_fallthru
          _
      $region68: #{tpu_custom_call.1} parent=5 // pred_fallthru
        _
      %p462 = scmp.le.s32.totalorder 1, %s27
      %p463 = scmp.lt.s32.totalorder %s27, 3
      %p464 = pnand %p462, %p463
      %p465 = pneg %p464
      // Predicated region
      $region73: #{tpu_custom_call.1} parent=5 // pred_check
        _
      $region74: #{tpu_custom_call.1} parent=5 // pred_check_branch
        %467 = sbr.rel (%p464) target = $region76
      $region75: #{tpu_custom_call.1} parent=5 // pred_region
        %s468 = ssub.s32 %s27, 1
        %s469 = sand.u32 %s52, 1
        %s470 = scalar_lea.sflag [#allocation5], %s469
        %s471 = sand.u32 %s52, 1
        %s472 = smul.addr %s471, 8
        %s473 = scalar_lea.vmem [#allocation4], %s472
        // Predicated region
        $region77: #{tpu_custom_call.1} parent=75 // pred_check
          %p474 = pneg %p65
        $region78: #{tpu_custom_call.1} parent=75 // pred_check_branch
          %476 = sbr.rel (%p474) target = $region80
        $region79: #{tpu_custom_call.1} parent=75 // pred_region
          %477 = dma.done %s470, 128
        $region80: #{tpu_custom_call.1} parent=75 // pred_fallthru
          _
        // Predicated region
        $region81: #{tpu_custom_call.1} parent=75 // pred_check
          %p478 = pneg %p191
        $region82: #{tpu_custom_call.1} parent=75 // pred_check_branch
          %480 = sbr.rel (%p478) target = $region84
        $region83: #{tpu_custom_call.1} parent=75 // pred_region
          %481 = dma.done [#allocation8], 1024
        $region84: #{tpu_custom_call.1} parent=75 // pred_fallthru
          _
        // Predicated region
        $region85: #{tpu_custom_call.1} parent=75 // pred_check
          %p482 = pneg %p275
        $region86: #{tpu_custom_call.1} parent=75 // pred_check_branch
          %484 = sbr.rel (%p482) target = $region88
        $region87: #{tpu_custom_call.1} parent=75 // pred_region
          %485 = dma.done [#allocation8], 1024
        $region88: #{tpu_custom_call.1} parent=75 // pred_fallthru
          _
        %s486 = sand.u32 %s52, 1
        %s487 = scalar_lea.sflag [#allocation5], %s486
        %s488 = sand.u32 %s52, 1
        %s489 = smul.addr %s488, 8
        %s490 = scalar_lea.vmem [#allocation4], %s489
        %p491 = pneg %p65
        %p492 = pneg %p62
        %p493 = pneg %p86
        %p494 = pneg %p83
        %p495 = pneg %p107
        %p496 = pneg %p104
        %p497 = pneg %p128
        %p498 = pneg %p125
        %p499 = pneg %p149
        %p500 = pneg %p146
        %p501 = pneg %p170
        %p502 = pneg %p167
        %p503 = pneg %p191
        %p504 = pneg %p188
        %p505 = pneg %p212
        %p506 = pneg %p209
        %p507 = pneg %p233
        %p508 = pneg %p230
        %p509 = pneg %p254
        %p510 = pneg %p251
        %p511 = pneg %p275
        %p512 = pneg %p272
        %p513 = pneg %p296
        %p514 = pneg %p293
        %p515 = pneg %p317
        %p516 = pneg %p314
        %p517 = pneg %p338
        %p518 = pneg %p335
        %p519 = pneg %p366
        %p520 = pneg %p363
        %s521 = sand.u32 %s353, 1
        %s522 = scalar_lea.sflag [#allocation6], %s521
        %s523 = sand.u32 %s353, 1
        %s524 = smul.addr %s523, 8
        %s525 = scalar_lea.vmem [#allocation10], %s524
        %p526 = scmp.eq.s32.totalorder %s37, 0
        // Predicated region
        $region89: #{tpu_custom_call.1} parent=75 // pred_check
          %p527 = pneg %p526
        $region90: #{tpu_custom_call.1} parent=75 // pred_check_branch
          %529 = sbr.rel (%p527) target = $region92
        $region91: #{tpu_custom_call.1} parent=75 // pred_region
          %v530 = vld [vmem:[%s473] sm:$0xff]
          %v531 = vld [vmem:[%s1] sm:$0x1]
          %v532 = vld [vmem:[%s2] sm:$0x1]
          %vm533 = vcmask 523264
          %v534 = vsel %vm533, %v530, 0.0
          %535 = vadd.xlane.f32.xlu0 %v534
          %v536 = vpop.xlane.xlu0 %535
          %v537 = vrcp.pop 64.0
          %v538 = vmul.f32 %v536, %v537
          %v539 = vmul.f32 %v530, %v530
          %v540 = vsel %vm533, %v539, 0.0
          %541 = vadd.xlane.f32.xlu0 %v540
          %v542 = vpop.xlane.xlu0 %541
          %v543 = vmul.f32 %v542, %v537
          %v544 = vmul.f32 %v538, %v538
          %v545 = vsub.f32 %v543, %v544
          %v546 = vmax.f32 %v545, 0.0
          %v547 = vsub.f32 %v530, %v538
          %v548 = vadd.f32 %v546, 1e-05
          %v549 = vrsqrt.pop %v548
          %v550 = vmul.f32 %v547, %v549
          %v552 = vlaneseq
          %v553 = vshrl.u32 %v552, 7
          %v554 = vsub.s32 0, %v553
          %v555 = vrot.slane %v531, %v554
          %v557 = vmul.f32 %v550, %v555
          %v559 = vlaneseq
          %v560 = vshrl.u32 %v559, 7
          %v561 = vsub.s32 0, %v560
          %v562 = vrot.slane %v532, %v561
          %v564 = vadd.f32 %v557, %v562
          %v565 = vld [vmem:[%s4] sm:$0xff]
          %v566 = vld [vmem:[%s4 + $0x8] sm:$0xff]
          %v567 = vld [vmem:[%s4 + $0x10] sm:$0xff]
          %v568 = vld [vmem:[%s4 + $0x18] sm:$0xff]
          %v569 = vld [vmem:[%s4 + $0x20] sm:$0xff]
          %v570 = vld [vmem:[%s4 + $0x28] sm:$0xff]
          %v571 = vld [vmem:[%s4 + $0x30] sm:$0xff]
          %v572 = vld [vmem:[%s4 + $0x38] sm:$0xff]
          %v574 = vsel %vm533, %v565, 0
          %v577 = vsel %vm533, %v566, 0
          %v580 = vsel %vm533, %v567, 0
          %v583 = vsel %vm533, %v568, 0
          %v586 = vsel %vm533, %v569, 0
          %v589 = vsel %vm533, %v570, 0
          %v592 = vsel %vm533, %v571, 0
          %v595 = vsel %vm533, %v572, 0
          %v598 = vsel %vm533, %v564, 0
          %600 = vmatprep.subr.mxu0 0.0
          %601 = vmatpush1.xpose.msra.mxu0 %v598
          %602 = vmatprep.subr.mxu0 0.0
          %603 = vmatpush1.xpose.msra.mxu0 0.0
          %604 = vmatprep.subr.mxu0 0.0
          %605 = vmatpush1.xpose.msra.mxu0 0.0
          %606 = vmatprep.subr.mxu0 0.0
          %607 = vmatpush1.xpose.msra.mxu0 0.0
          %608 = vmatprep.subr.mxu0 0.0
          %609 = vmatpush1.xpose.msra.mxu0 0.0
          %610 = vmatprep.subr.mxu0 0.0
          %611 = vmatpush1.xpose.msra.mxu0 0.0
          %612 = vmatprep.subr.mxu0 0.0
          %613 = vmatpush1.xpose.msra.mxu0 0.0
          %614 = vmatprep.subr.mxu0 0.0
          %615 = vmatpush1.xpose.msra.mxu0 0.0
          %616 = vmatprep.subr.mxu0 0.0
          %617 = vmatpush1.xpose.msra.mxu0 0.0
          %618 = vmatprep.subr.mxu0 0.0
          %619 = vmatpush1.xpose.msra.mxu0 0.0
          %620 = vmatprep.subr.mxu0 0.0
          %621 = vmatpush1.xpose.msra.mxu0 0.0
          %622 = vmatprep.subr.mxu0 0.0
          %623 = vmatpush1.xpose.msra.mxu0 0.0
          %624 = vmatprep.subr.mxu0 0.0
          %625 = vmatpush1.xpose.msra.mxu0 0.0
          %626 = vmatprep.subr.mxu0 0.0
          %627 = vmatpush1.xpose.msra.mxu0 0.0
          %628 = vmatprep.subr.mxu0 0.0
          %629 = vmatpush1.xpose.msra.mxu0 0.0
          %630 = vmatprep.subr.mxu0 0.0
          %631 = vmatpush1.xpose.msra.mxu0 0.0
          %632 = vmatprep.subr.mxu0 0.0
          %633 = vmatpush1.xpose.msra.mxu0 0.0
          %634 = vmatprep.subr.mxu0 0.0
          %635 = vmatpush1.xpose.msra.mxu0 0.0
          %636 = vmatprep.subr.mxu0 0.0
          %637 = vmatpush1.xpose.msra.mxu0 0.0
          %638 = vmatprep.subr.mxu0 0.0
          %639 = vmatpush1.xpose.msra.mxu0 0.0
          %640 = vmatprep.subr.mxu0 0.0
          %641 = vmatpush1.xpose.msra.mxu0 0.0
          %642 = vmatprep.subr.mxu0 0.0
          %643 = vmatpush1.xpose.msra.mxu0 0.0
          %644 = vmatprep.subr.mxu0 0.0
          %645 = vmatpush1.xpose.msra.mxu0 0.0
          %646 = vmatprep.subr.mxu0 0.0
          %647 = vmatpush1.xpose.msra.mxu0 0.0
          %648 = vmatprep.subr.mxu0 0.0
          %649 = vmatpush1.xpose.msra.mxu0 0.0
          %650 = vmatprep.subr.mxu0 0.0
          %651 = vmatpush1.xpose.msra.mxu0 0.0
          %652 = vmatprep.subr.mxu0 0.0
          %653 = vmatpush1.xpose.msra.mxu0 0.0
          %654 = vmatprep.subr.mxu0 0.0
          %655 = vmatpush1.xpose.msra.mxu0 0.0
          %656 = vmatprep.subr.mxu0 0.0
          %657 = vmatpush1.xpose.msra.mxu0 0.0
          %658 = vmatprep.subr.mxu0 0.0
          %659 = vmatpush1.xpose.msra.mxu0 0.0
          %660 = vmatprep.subr.mxu0 0.0
          %661 = vmatpush1.xpose.msra.mxu0 0.0
          %662 = vmatprep.subr.mxu0 0.0
          %663 = vmatpush1.xpose.msra.mxu0 0.0
          %664 = vmatprep.mubr.f32.mxu0 0.0
          %665 = vmatmul.mubr.f32.gmra.mrb[0].mxu0 %v574
          %v666 = vpop.f32.mrb[0].mxu0
          %v667 = vadd.f32 0.0, %v666
          %v668 = vpop.f32.mrb[0].mxu0
          %669 = vmatprep.mubr.f32.mxu0 0.0
          %670 = vmatmul.mubr.f32.gmra.mrb[0].mxu0 %v577
          %v671 = vpop.f32.mrb[0].mxu0
          %v672 = vadd.f32 0.0, %v671
          %v673 = vpop.f32.mrb[0].mxu0
          %674 = vmatprep.mubr.f32.mxu0 0.0
          %675 = vmatmul.mubr.f32.gmra.mrb[0].mxu0 %v580
          %v676 = vpop.f32.mrb[0].mxu0
          %v677 = vadd.f32 0.0, %v676
          %v678 = vpop.f32.mrb[0].mxu0
          %679 = vmatprep.mubr.f32.mxu0 0.0
          %680 = vmatmul.mubr.f32.gmra.mrb[0].mxu0 %v583
          %v681 = vpop.f32.mrb[0].mxu0
          %v682 = vadd.f32 0.0, %v681
          %v683 = vpop.f32.mrb[0].mxu0
          %684 = vmatprep.mubr.f32.mxu0 0.0
          %685 = vmatmul.mubr.f32.gmra.mrb[0].mxu0 %v586
          %v686 = vpop.f32.mrb[0].mxu0
          %v687 = vadd.f32 0.0, %v686
          %v688 = vpop.f32.mrb[0].mxu0
          %689 = vmatprep.mubr.f32.mxu0 0.0
          %690 = vmatmul.mubr.f32.gmra.mrb[0].mxu0 %v589
          %v691 = vpop.f32.mrb[0].mxu0
          %v692 = vadd.f32 0.0, %v691
          %v693 = vpop.f32.mrb[0].mxu0
          %694 = vmatprep.mubr.f32.mxu0 0.0
          %695 = vmatmul.mubr.f32.gmra.mrb[0].mxu0 %v592
          %v696 = vpop.f32.mrb[0].mxu0
          %v697 = vadd.f32 0.0, %v696
          %v698 = vpop.f32.mrb[0].mxu0
          %699 = vmatprep.mubr.f32.mxu0 0.0
          %700 = vmatmul.mubr.f32.gmra.mrb[0].mxu0 %v595
          %v701 = vpop.f32.mrb[0].mxu0
          %v702 = vadd.f32 0.0, %v701
          %v703 = vpop.f32.mrb[0].mxu0
          %704 = vdwg.mxu0
          %vm705 = vcmask 64512
          %706 = vst.msk [vmem:[#allocation2] sm:$0xff] %vm705, %v667
          %707 = vst.msk [vmem:[#allocation2 + $0x8] sm:$0xff] %vm705, %v672
          %708 = vst.msk [vmem:[#allocation2 + $0x10] sm:$0xff] %vm705, %v677
          %709 = vst.msk [vmem:[#allocation2 + $0x18] sm:$0xff] %vm705, %v682
          %710 = vst.msk [vmem:[#allocation2 + $0x20] sm:$0xff] %vm705, %v687
          %711 = vst.msk [vmem:[#allocation2 + $0x28] sm:$0xff] %vm705, %v692
          %712 = vst.msk [vmem:[#allocation2 + $0x30] sm:$0xff] %vm705, %v697
          %713 = vst.msk [vmem:[#allocation2 + $0x38] sm:$0xff] %vm705, %v702
          %v714 = vld [vmem:[%s5] sm:$0xff]
          %v715 = vld [vmem:[%s5 + $0x8] sm:$0xff]
          %v716 = vld [vmem:[%s5 + $0x10] sm:$0xff]
          %v717 = vld [vmem:[%s5 + $0x18] sm:$0xff]
          %v718 = vld [vmem:[%s5 + $0x20] sm:$0xff]
          %v719 = vld [vmem:[%s5 + $0x28] sm:$0xff]
          %v720 = vld [vmem:[%s5 + $0x30] sm:$0xff]
          %v721 = vld [vmem:[%s5 + $0x38] sm:$0xff]
          %v723 = vsel %vm533, %v714, 0
          %v726 = vsel %vm533, %v715, 0
          %v729 = vsel %vm533, %v716, 0
          %v732 = vsel %vm533, %v717, 0
          %v735 = vsel %vm533, %v718, 0
          %v738 = vsel %vm533, %v719, 0
          %v741 = vsel %vm533, %v720, 0
          %v744 = vsel %vm533, %v721, 0
          %746 = vmatprep.subr.mxu0 0.0
          %747 = vmatpush1.xpose.msra.mxu0 %v598
          %748 = vmatprep.subr.mxu0 0.0
          %749 = vmatpush1.xpose.msra.mxu0 0.0
          %750 = vmatprep.subr.mxu0 0.0
          %751 = vmatpush1.xpose.msra.mxu0 0.0
          %752 = vmatprep.subr.mxu0 0.0
          %753 = vmatpush1.xpose.msra.mxu0 0.0
          %754 = vmatprep.subr.mxu0 0.0
          %755 = vmatpush1.xpose.msra.mxu0 0.0
          %756 = vmatprep.subr.mxu0 0.0
          %757 = vmatpush1.xpose.msra.mxu0 0.0
          %758 = vmatprep.subr.mxu0 0.0
          %759 = vmatpush1.xpose.msra.mxu0 0.0
          %760 = vmatprep.subr.mxu0 0.0
          %761 = vmatpush1.xpose.msra.mxu0 0.0
          %762 = vmatprep.subr.mxu0 0.0
          %763 = vmatpush1.xpose.msra.mxu0 0.0
          %764 = vmatprep.subr.mxu0 0.0
          %765 = vmatpush1.xpose.msra.mxu0 0.0
          %766 = vmatprep.subr.mxu0 0.0
          %767 = vmatpush1.xpose.msra.mxu0 0.0
          %768 = vmatprep.subr.mxu0 0.0
          %769 = vmatpush1.xpose.msra.mxu0 0.0
          %770 = vmatprep.subr.mxu0 0.0
          %771 = vmatpush1.xpose.msra.mxu0 0.0
          %772 = vmatprep.subr.mxu0 0.0
          %773 = vmatpush1.xpose.msra.mxu0 0.0
          %774 = vmatprep.subr.mxu0 0.0
          %775 = vmatpush1.xpose.msra.mxu0 0.0
          %776 = vmatprep.subr.mxu0 0.0
          %777 = vmatpush1.xpose.msra.mxu0 0.0
          %778 = vmatprep.subr.mxu0 0.0
          %779 = vmatpush1.xpose.msra.mxu0 0.0
          %780 = vmatprep.subr.mxu0 0.0
          %781 = vmatpush1.xpose.msra.mxu0 0.0
          %782 = vmatprep.subr.mxu0 0.0
          %783 = vmatpush1.xpose.msra.mxu0 0.0
          %784 = vmatprep.subr.mxu0 0.0
          %785 = vmatpush1.xpose.msra.mxu0 0.0
          %786 = vmatprep.subr.mxu0 0.0
          %787 = vmatpush1.xpose.msra.mxu0 0.0
          %788 = vmatprep.subr.mxu0 0.0
          %789 = vmatpush1.xpose.msra.mxu0 0.0
          %790 = vmatprep.subr.mxu0 0.0
          %791 = vmatpush1.xpose.msra.mxu0 0.0
          %792 = vmatprep.subr.mxu0 0.0
          %793 = vmatpush1.xpose.msra.mxu0 0.0
          %794 = vmatprep.subr.mxu0 0.0
          %795 = vmatpush1.xpose.msra.mxu0 0.0
          %796 = vmatprep.subr.mxu0 0.0
          %797 = vmatpush1.xpose.msra.mxu0 0.0
          %798 = vmatprep.subr.mxu0 0.0
          %799 = vmatpush1.xpose.msra.mxu0 0.0
          %800 = vmatprep.subr.mxu0 0.0
          %801 = vmatpush1.xpose.msra.mxu0 0.0
          %802 = vmatprep.subr.mxu0 0.0
          %803 = vmatpush1.xpose.msra.mxu0 0.0
          %804 = vmatprep.subr.mxu0 0.0
          %805 = vmatpush1.xpose.msra.mxu0 0.0
          %806 = vmatprep.subr.mxu0 0.0
          %807 = vmatpush1.xpose.msra.mxu0 0.0
          %808 = vmatprep.subr.mxu0 0.0
          %809 = vmatpush1.xpose.msra.mxu0 0.0
          %810 = vmatprep.mubr.f32.mxu0 0.0
          %811 = vmatmul.mubr.f32.gmra.mrb[0].mxu0 %v723
          %v812 = vpop.f32.mrb[0].mxu0
          %v813 = vadd.f32 0.0, %v812
          %v814 = vpop.f32.mrb[0].mxu0
          %815 = vmatprep.mubr.f32.mxu0 0.0
          %816 = vmatmul.mubr.f32.gmra.mrb[0].mxu0 %v726
          %v817 = vpop.f32.mrb[0].mxu0
          %v818 = vadd.f32 0.0, %v817
          %v819 = vpop.f32.mrb[0].mxu0
          %820 = vmatprep.mubr.f32.mxu0 0.0
          %821 = vmatmul.mubr.f32.gmra.mrb[0].mxu0 %v729
          %v822 = vpop.f32.mrb[0].mxu0
          %v823 = vadd.f32 0.0, %v822
          %v824 = vpop.f32.mrb[0].mxu0
          %825 = vmatprep.mubr.f32.mxu0 0.0
          %826 = vmatmul.mubr.f32.gmra.mrb[0].mxu0 %v732
          %v827 = vpop.f32.mrb[0].mxu0
          %v828 = vadd.f32 0.0, %v827
          %v829 = vpop.f32.mrb[0].mxu0
          %830 = vmatprep.mubr.f32.mxu0 0.0
          %831 = vmatmul.mubr.f32.gmra.mrb[0].mxu0 %v735
          %v832 = vpop.f32.mrb[0].mxu0
          %v833 = vadd.f32 0.0, %v832
          %v834 = vpop.f32.mrb[0].mxu0
          %835 = vmatprep.mubr.f32.mxu0 0.0
          %836 = vmatmul.mubr.f32.gmra.mrb[0].mxu0 %v738
          %v837 = vpop.f32.mrb[0].mxu0
          %v838 = vadd.f32 0.0, %v837
          %v839 = vpop.f32.mrb[0].mxu0
          %840 = vmatprep.mubr.f32.mxu0 0.0
          %841 = vmatmul.mubr.f32.gmra.mrb[0].mxu0 %v741
          %v842 = vpop.f32.mrb[0].mxu0
          %v843 = vadd.f32 0.0, %v842
          %v844 = vpop.f32.mrb[0].mxu0
          %845 = vmatprep.mubr.f32.mxu0 0.0
          %846 = vmatmul.mubr.f32.gmra.mrb[0].mxu0 %v744
          %v847 = vpop.f32.mrb[0].mxu0
          %v848 = vadd.f32 0.0, %v847
          %v849 = vpop.f32.mrb[0].mxu0
          %850 = vdwg.mxu0
          %851 = vst.msk [vmem:[#allocation3] sm:$0xff] %vm705, %v813
          %852 = vst.msk [vmem:[#allocation3 + $0x8] sm:$0xff] %vm705, %v818
          %853 = vst.msk [vmem:[#allocation3 + $0x10] sm:$0xff] %vm705, %v823
          %854 = vst.msk [vmem:[#allocation3 + $0x18] sm:$0xff] %vm705, %v828
          %855 = vst.msk [vmem:[#allocation3 + $0x20] sm:$0xff] %vm705, %v833
          %856 = vst.msk [vmem:[#allocation3 + $0x28] sm:$0xff] %vm705, %v838
          %857 = vst.msk [vmem:[#allocation3 + $0x30] sm:$0xff] %vm705, %v843
          %858 = vst.msk [vmem:[#allocation3 + $0x38] sm:$0xff] %vm705, %v848
        $region92: #{tpu_custom_call.1} parent=75 // pred_fallthru
          _
        %s859 = smul.u32 %s37, 8
        %s860 = scalar_lea.vmem %s473, %s859 [#allocation4]
        %v861 = vld [vmem:[%s860] sm:$0xff]
        %v862 = vld [vmem:[%s1] sm:$0x1]
        %v863 = vld [vmem:[%s2] sm:$0x1]
        %vm864 = vcmask 523264
        %v865 = vsel %vm864, %v861, 0.0
        %866 = vadd.xlane.f32.xlu0 %v865
        %v867 = vpop.xlane.xlu0 %866
        %v868 = vrcp.pop 64.0
        %v869 = vmul.f32 %v867, %v868
        %v870 = vmul.f32 %v861, %v861
        %v871 = vsel %vm864, %v870, 0.0
        %872 = vadd.xlane.f32.xlu0 %v871
        %v873 = vpop.xlane.xlu0 %872
        %v874 = vmul.f32 %v873, %v868
        %v875 = vmul.f32 %v869, %v869
        %v876 = vsub.f32 %v874, %v875
        %v877 = vmax.f32 %v876, 0.0
        %v878 = vsub.f32 %v861, %v869
        %v879 = vadd.f32 %v877, 1e-05
        %v880 = vrsqrt.pop %v879
        %v881 = vmul.f32 %v878, %v880
        %v883 = vlaneseq
        %v884 = vshrl.u32 %v883, 7
        %v885 = vsub.s32 0, %v884
        %v886 = vrot.slane %v862, %v885
        %v888 = vmul.f32 %v881, %v886
        %v890 = vlaneseq
        %v891 = vshrl.u32 %v890, 7
        %v892 = vsub.s32 0, %v891
        %v893 = vrot.slane %v863, %v892
        %v895 = vadd.f32 %v888, %v893
        %v896 = vld [vmem:[%s3] sm:$0xff]
        %v897 = vld [vmem:[%s3 + $0x8] sm:$0xff]
        %v898 = vld [vmem:[%s3 + $0x10] sm:$0xff]
        %v899 = vld [vmem:[%s3 + $0x18] sm:$0xff]
        %v900 = vld [vmem:[%s3 + $0x20] sm:$0xff]
        %v901 = vld [vmem:[%s3 + $0x28] sm:$0xff]
        %v902 = vld [vmem:[%s3 + $0x30] sm:$0xff]
        %v903 = vld [vmem:[%s3 + $0x38] sm:$0xff]
        %v905 = vsel %vm864, %v896, 0
        %v908 = vsel %vm864, %v897, 0
        %v911 = vsel %vm864, %v898, 0
        %v914 = vsel %vm864, %v899, 0
        %v917 = vsel %vm864, %v900, 0
        %v920 = vsel %vm864, %v901, 0
        %v923 = vsel %vm864, %v902, 0
        %v926 = vsel %vm864, %v903, 0
        %v929 = vsel %vm864, %v895, 0
        %931 = vmatprep.subr.mxu0 0.0
        %932 = vmatpush1.xpose.msra.mxu0 %v929
        %933 = vmatprep.subr.mxu0 0.0
        %934 = vmatpush1.xpose.msra.mxu0 0.0
        %935 = vmatprep.subr.mxu0 0.0
        %936 = vmatpush1.xpose.msra.mxu0 0.0
        %937 = vmatprep.subr.mxu0 0.0
        %938 = vmatpush1.xpose.msra.mxu0 0.0
        %939 = vmatprep.subr.mxu0 0.0
        %940 = vmatpush1.xpose.msra.mxu0 0.0
        %941 = vmatprep.subr.mxu0 0.0
        %942 = vmatpush1.xpose.msra.mxu0 0.0
        %943 = vmatprep.subr.mxu0 0.0
        %944 = vmatpush1.xpose.msra.mxu0 0.0
        %945 = vmatprep.subr.mxu0 0.0
        %946 = vmatpush1.xpose.msra.mxu0 0.0
        %947 = vmatprep.subr.mxu0 0.0
        %948 = vmatpush1.xpose.msra.mxu0 0.0
        %949 = vmatprep.subr.mxu0 0.0
        %950 = vmatpush1.xpose.msra.mxu0 0.0
        %951 = vmatprep.subr.mxu0 0.0
        %952 = vmatpush1.xpose.msra.mxu0 0.0
        %953 = vmatprep.subr.mxu0 0.0
        %954 = vmatpush1.xpose.msra.mxu0 0.0
        %955 = vmatprep.subr.mxu0 0.0
        %956 = vmatpush1.xpose.msra.mxu0 0.0
        %957 = vmatprep.subr.mxu0 0.0
        %958 = vmatpush1.xpose.msra.mxu0 0.0
        %959 = vmatprep.subr.mxu0 0.0
        %960 = vmatpush1.xpose.msra.mxu0 0.0
        %961 = vmatprep.subr.mxu0 0.0
        %962 = vmatpush1.xpose.msra.mxu0 0.0
        %963 = vmatprep.subr.mxu0 0.0
        %964 = vmatpush1.xpose.msra.mxu0 0.0
        %965 = vmatprep.subr.mxu0 0.0
        %966 = vmatpush1.xpose.msra.mxu0 0.0
        %967 = vmatprep.subr.mxu0 0.0
        %968 = vmatpush1.xpose.msra.mxu0 0.0
        %969 = vmatprep.subr.mxu0 0.0
        %970 = vmatpush1.xpose.msra.mxu0 0.0
        %971 = vmatprep.subr.mxu0 0.0
        %972 = vmatpush1.xpose.msra.mxu0 0.0
        %973 = vmatprep.subr.mxu0 0.0
        %974 = vmatpush1.xpose.msra.mxu0 0.0
        %975 = vmatprep.subr.mxu0 0.0
        %976 = vmatpush1.xpose.msra.mxu0 0.0
        %977 = vmatprep.subr.mxu0 0.0
        %978 = vmatpush1.xpose.msra.mxu0 0.0
        %979 = vmatprep.subr.mxu0 0.0
        %980 = vmatpush1.xpose.msra.mxu0 0.0
        %981 = vmatprep.subr.mxu0 0.0
        %982 = vmatpush1.xpose.msra.mxu0 0.0
        %983 = vmatprep.subr.mxu0 0.0
        %984 = vmatpush1.xpose.msra.mxu0 0.0
        %985 = vmatprep.subr.mxu0 0.0
        %986 = vmatpush1.xpose.msra.mxu0 0.0
        %987 = vmatprep.subr.mxu0 0.0
        %988 = vmatpush1.xpose.msra.mxu0 0.0
        %989 = vmatprep.subr.mxu0 0.0
        %990 = vmatpush1.xpose.msra.mxu0 0.0
        %991 = vmatprep.subr.mxu0 0.0
        %992 = vmatpush1.xpose.msra.mxu0 0.0
        %993 = vmatprep.subr.mxu0 0.0
        %994 = vmatpush1.xpose.msra.mxu0 0.0
        %995 = vmatprep.mubr.f32.mxu0 0.0
        %996 = vmatmul.mubr.f32.gmra.mrb[0].mxu0 %v905
        %v997 = vpop.f32.mrb[0].mxu0
        %v998 = vadd.f32 0.0, %v997
        %v999 = vpop.f32.mrb[0].mxu0
        %1000 = vmatprep.mubr.f32.mxu0 0.0
        %1001 = vmatmul.mubr.f32.gmra.mrb[0].mxu0 %v908
        %v1002 = vpop.f32.mrb[0].mxu0
        %v1003 = vadd.f32 0.0, %v1002
        %v1004 = vpop.f32.mrb[0].mxu0
        %1005 = vmatprep.mubr.f32.mxu0 0.0
        %1006 = vmatmul.mubr.f32.gmra.mrb[0].mxu0 %v911
        %v1007 = vpop.f32.mrb[0].mxu0
        %v1008 = vadd.f32 0.0, %v1007
        %v1009 = vpop.f32.mrb[0].mxu0
        %1010 = vmatprep.mubr.f32.mxu0 0.0
        %1011 = vmatmul.mubr.f32.gmra.mrb[0].mxu0 %v914
        %v1012 = vpop.f32.mrb[0].mxu0
        %v1013 = vadd.f32 0.0, %v1012
        %v1014 = vpop.f32.mrb[0].mxu0
        %1015 = vmatprep.mubr.f32.mxu0 0.0
        %1016 = vmatmul.mubr.f32.gmra.mrb[0].mxu0 %v917
        %v1017 = vpop.f32.mrb[0].mxu0
        %v1018 = vadd.f32 0.0, %v1017
        %v1019 = vpop.f32.mrb[0].mxu0
        %1020 = vmatprep.mubr.f32.mxu0 0.0
        %1021 = vmatmul.mubr.f32.gmra.mrb[0].mxu0 %v920
        %v1022 = vpop.f32.mrb[0].mxu0
        %v1023 = vadd.f32 0.0, %v1022
        %v1024 = vpop.f32.mrb[0].mxu0
        %1025 = vmatprep.mubr.f32.mxu0 0.0
        %1026 = vmatmul.mubr.f32.gmra.mrb[0].mxu0 %v923
        %v1027 = vpop.f32.mrb[0].mxu0
        %v1028 = vadd.f32 0.0, %v1027
        %v1029 = vpop.f32.mrb[0].mxu0
        %1030 = vmatprep.mubr.f32.mxu0 0.0
        %1031 = vmatmul.mubr.f32.gmra.mrb[0].mxu0 %v926
        %v1032 = vpop.f32.mrb[0].mxu0
        %v1033 = vadd.f32 0.0, %v1032
        %v1034 = vpop.f32.mrb[0].mxu0
        %1035 = vdwg.mxu0
        %v1036 = vld [vmem:[#allocation2] sm:$0xff]
        %v1037 = vld [vmem:[#allocation2 + $0x8] sm:$0xff]
        %v1038 = vld [vmem:[#allocation2 + $0x10] sm:$0xff]
        %v1039 = vld [vmem:[#allocation2 + $0x18] sm:$0xff]
        %v1040 = vld [vmem:[#allocation2 + $0x20] sm:$0xff]
        %v1041 = vld [vmem:[#allocation2 + $0x28] sm:$0xff]
        %v1042 = vld [vmem:[#allocation2 + $0x30] sm:$0xff]
        %v1043 = vld [vmem:[#allocation2 + $0x38] sm:$0xff]
        %v1044 = vld [vmem:[#allocation3] sm:$0xff]
        %v1045 = vld [vmem:[#allocation3 + $0x8] sm:$0xff]
        %v1046 = vld [vmem:[#allocation3 + $0x10] sm:$0xff]
        %v1047 = vld [vmem:[#allocation3 + $0x18] sm:$0xff]
        %v1048 = vld [vmem:[#allocation3 + $0x20] sm:$0xff]
        %v1049 = vld [vmem:[#allocation3 + $0x28] sm:$0xff]
        %v1050 = vld [vmem:[#allocation3 + $0x30] sm:$0xff]
        %v1051 = vld [vmem:[#allocation3 + $0x38] sm:$0xff]
        %1052 = vxpose.xlu0.b32.start [1/16] %v998, 128
        %1053 = vxpose.xlu0.b32.cont [2/16] 0.0, 128
        %1054 = vxpose.xlu0.b32.cont [3/16] 0.0, 128
        %1055 = vxpose.xlu0.b32.cont [4/16] 0.0, 128
        %1056 = vxpose.xlu0.b32.cont [5/16] 0.0, 128
        %1057 = vxpose.xlu0.b32.cont [6/16] 0.0, 128
        %1058 = vxpose.xlu0.b32.cont [7/16] 0.0, 128
        %1059 = vxpose.xlu0.b32.cont [8/16] 0.0, 128
        %1060 = vxpose.xlu0.b32.cont [9/16] 0.0, 128
        %1061 = vxpose.xlu0.b32.cont [10/16] 0.0, 128
        %1062 = vxpose.xlu0.b32.cont [11/16] 0.0, 128
        %1063 = vxpose.xlu0.b32.cont [12/16] 0.0, 128
        %1064 = vxpose.xlu0.b32.cont [13/16] 0.0, 128
        %1065 = vxpose.xlu0.b32.cont [14/16] 0.0, 128
        %1066 = vxpose.xlu0.b32.cont [15/16] 0.0, 128
        %1067 = vxpose.xlu0.b32.end [16/16] 0.0, 128
        %v1068 = vpop.trf.xlu0
        %v1069 = vpop.trf.xlu0
        %v1070 = vpop.trf.xlu0
        %v1071 = vpop.trf.xlu0
        %v1072 = vpop.trf.xlu0
        %v1073 = vpop.trf.xlu0
        %v1074 = vpop.trf.xlu0
        %v1075 = vpop.trf.xlu0
        %v1076 = vpop.trf.xlu0
        %v1077 = vpop.trf.xlu0
        %v1078 = vpop.trf.xlu0
        %v1079 = vpop.trf.xlu0
        %v1080 = vpop.trf.xlu0
        %v1081 = vpop.trf.xlu0
        %v1082 = vpop.trf.xlu0
        %v1083 = vpop.trf.xlu0
        %vm1084 = vcmask 64512
        %v1086 = vsel %vm1084, %v1068, 0
        %1088 = vmatprep.subr.mxu0 0.0
        %1089 = vmatpush1.msra.mxu0 %v1036
        %1090 = vmatprep.subr.mxu0 0.0
        %1091 = vmatpush1.msra.mxu0 0.0
        %1092 = vmatprep.subr.mxu0 0.0
        %1093 = vmatpush1.msra.mxu0 0.0
        %1094 = vmatprep.subr.mxu0 0.0
        %1095 = vmatpush1.msra.mxu0 0.0
        %1096 = vmatprep.subr.mxu0 0.0
        %1097 = vmatpush1.msra.mxu0 0.0
        %1098 = vmatprep.subr.mxu0 0.0
        %1099 = vmatpush1.msra.mxu0 0.0
        %1100 = vmatprep.subr.mxu0 0.0
        %1101 = vmatpush1.msra.mxu0 0.0
        %1102 = vmatprep.subr.mxu0 0.0
        %1103 = vmatpush1.msra.mxu0 0.0
        %1104 = vmatprep.subr.mxu0 0.0
        %1105 = vmatpush1.msra.mxu0 0.0
        %1106 = vmatprep.subr.mxu0 0.0
        %1107 = vmatpush1.msra.mxu0 0.0
        %1108 = vmatprep.subr.mxu0 0.0
        %1109 = vmatpush1.msra.mxu0 0.0
        %1110 = vmatprep.subr.mxu0 0.0
        %1111 = vmatpush1.msra.mxu0 0.0
        %1112 = vmatprep.subr.mxu0 0.0
        %1113 = vmatpush1.msra.mxu0 0.0
        %1114 = vmatprep.subr.mxu0 0.0
        %1115 = vmatpush1.msra.mxu0 0.0
        %1116 = vmatprep.subr.mxu0 0.0
        %1117 = vmatpush1.msra.mxu0 0.0
        %1118 = vmatprep.subr.mxu0 0.0
        %1119 = vmatpush1.msra.mxu0 0.0
        %1120 = vmatprep.subr.mxu0 0.0
        %1121 = vmatpush1.msra.mxu0 0.0
        %1122 = vmatprep.subr.mxu0 0.0
        %1123 = vmatpush1.msra.mxu0 0.0
        %1124 = vmatprep.subr.mxu0 0.0
        %1125 = vmatpush1.msra.mxu0 0.0
        %1126 = vmatprep.subr.mxu0 0.0
        %1127 = vmatpush1.msra.mxu0 0.0
        %1128 = vmatprep.subr.mxu0 0.0
        %1129 = vmatpush1.msra.mxu0 0.0
        %1130 = vmatprep.subr.mxu0 0.0
        %1131 = vmatpush1.msra.mxu0 0.0
        %1132 = vmatprep.subr.mxu0 0.0
        %1133 = vmatpush1.msra.mxu0 0.0
        %1134 = vmatprep.subr.mxu0 0.0
        %1135 = vmatpush1.msra.mxu0 0.0
        %1136 = vmatprep.subr.mxu0 0.0
        %1137 = vmatpush1.msra.mxu0 0.0
        %1138 = vmatprep.subr.mxu0 0.0
        %1139 = vmatpush1.msra.mxu0 0.0
        %1140 = vmatprep.subr.mxu0 0.0
        %1141 = vmatpush1.msra.mxu0 0.0
        %1142 = vmatprep.subr.mxu0 0.0
        %1143 = vmatpush1.msra.mxu0 0.0
        %1144 = vmatprep.subr.mxu0 0.0
        %1145 = vmatpush1.msra.mxu0 0.0
        %1146 = vmatprep.subr.mxu0 0.0
        %1147 = vmatpush1.msra.mxu0 0.0
        %1148 = vmatprep.subr.mxu0 0.0
        %1149 = vmatpush1.msra.mxu0 0.0
        %1150 = vmatprep.subr.mxu0 0.0
        %1151 = vmatpush1.msra.mxu0 0.0
        %1152 = vmatprep.mubr.f32.mxu0 0.0
        %1153 = vmatmul.mubr.f32.gmra.mrb[0].mxu0 %v1086
        %v1154 = vpop.f32.mrb[0].mxu0
        %v1155 = vadd.f32 0.0, %v1154
        %v1156 = vpop.f32.mrb[0].mxu0
        %1157 = vdwg.mxu0
        %1158 = vxpose.xlu0.b32.start [1/16] %v1003, 128
        %1159 = vxpose.xlu0.b32.cont [2/16] 0.0, 128
        %1160 = vxpose.xlu0.b32.cont [3/16] 0.0, 128
        %1161 = vxpose.xlu0.b32.cont [4/16] 0.0, 128
        %1162 = vxpose.xlu0.b32.cont [5/16] 0.0, 128
        %1163 = vxpose.xlu0.b32.cont [6/16] 0.0, 128
        %1164 = vxpose.xlu0.b32.cont [7/16] 0.0, 128
        %1165 = vxpose.xlu0.b32.cont [8/16] 0.0, 128
        %1166 = vxpose.xlu0.b32.cont [9/16] 0.0, 128
        %1167 = vxpose.xlu0.b32.cont [10/16] 0.0, 128
        %1168 = vxpose.xlu0.b32.cont [11/16] 0.0, 128
        %1169 = vxpose.xlu0.b32.cont [12/16] 0.0, 128
        %1170 = vxpose.xlu0.b32.cont [13/16] 0.0, 128
        %1171 = vxpose.xlu0.b32.cont [14/16] 0.0, 128
        %1172 = vxpose.xlu0.b32.cont [15/16] 0.0, 128
        %1173 = vxpose.xlu0.b32.end [16/16] 0.0, 128
        %v1174 = vpop.trf.xlu0
        %v1175 = vpop.trf.xlu0
        %v1176 = vpop.trf.xlu0
        %v1177 = vpop.trf.xlu0
        %v1178 = vpop.trf.xlu0
        %v1179 = vpop.trf.xlu0
        %v1180 = vpop.trf.xlu0
        %v1181 = vpop.trf.xlu0
        %v1182 = vpop.trf.xlu0
        %v1183 = vpop.trf.xlu0
        %v1184 = vpop.trf.xlu0
        %v1185 = vpop.trf.xlu0
        %v1186 = vpop.trf.xlu0
        %v1187 = vpop.trf.xlu0
        %v1188 = vpop.trf.xlu0
        %v1189 = vpop.trf.xlu0
        %v1191 = vsel %vm1084, %v1174, 0
        %1193 = vmatprep.subr.mxu0 0.0
        %1194 = vmatpush1.msra.mxu0 %v1037
        %1195 = vmatprep.subr.mxu0 0.0
        %1196 = vmatpush1.msra.mxu0 0.0
        %1197 = vmatprep.subr.mxu0 0.0
        %1198 = vmatpush1.msra.mxu0 0.0
        %1199 = vmatprep.subr.mxu0 0.0
        %1200 = vmatpush1.msra.mxu0 0.0
        %1201 = vmatprep.subr.mxu0 0.0
        %1202 = vmatpush1.msra.mxu0 0.0
        %1203 = vmatprep.subr.mxu0 0.0
        %1204 = vmatpush1.msra.mxu0 0.0
        %1205 = vmatprep.subr.mxu0 0.0
        %1206 = vmatpush1.msra.mxu0 0.0
        %1207 = vmatprep.subr.mxu0 0.0
        %1208 = vmatpush1.msra.mxu0 0.0
        %1209 = vmatprep.subr.mxu0 0.0
        %1210 = vmatpush1.msra.mxu0 0.0
        %1211 = vmatprep.subr.mxu0 0.0
        %1212 = vmatpush1.msra.mxu0 0.0
        %1213 = vmatprep.subr.mxu0 0.0
        %1214 = vmatpush1.msra.mxu0 0.0
        %1215 = vmatprep.subr.mxu0 0.0
        %1216 = vmatpush1.msra.mxu0 0.0
        %1217 = vmatprep.subr.mxu0 0.0
        %1218 = vmatpush1.msra.mxu0 0.0
        %1219 = vmatprep.subr.mxu0 0.0
        %1220 = vmatpush1.msra.mxu0 0.0
        %1221 = vmatprep.subr.mxu0 0.0
        %1222 = vmatpush1.msra.mxu0 0.0
        %1223 = vmatprep.subr.mxu0 0.0
        %1224 = vmatpush1.msra.mxu0 0.0
        %1225 = vmatprep.subr.mxu0 0.0
        %1226 = vmatpush1.msra.mxu0 0.0
        %1227 = vmatprep.subr.mxu0 0.0
        %1228 = vmatpush1.msra.mxu0 0.0
        %1229 = vmatprep.subr.mxu0 0.0
        %1230 = vmatpush1.msra.mxu0 0.0
        %1231 = vmatprep.subr.mxu0 0.0
        %1232 = vmatpush1.msra.mxu0 0.0
        %1233 = vmatprep.subr.mxu0 0.0
        %1234 = vmatpush1.msra.mxu0 0.0
        %1235 = vmatprep.subr.mxu0 0.0
        %1236 = vmatpush1.msra.mxu0 0.0
        %1237 = vmatprep.subr.mxu0 0.0
        %1238 = vmatpush1.msra.mxu0 0.0
        %1239 = vmatprep.subr.mxu0 0.0
        %1240 = vmatpush1.msra.mxu0 0.0
        %1241 = vmatprep.subr.mxu0 0.0
        %1242 = vmatpush1.msra.mxu0 0.0
        %1243 = vmatprep.subr.mxu0 0.0
        %1244 = vmatpush1.msra.mxu0 0.0
        %1245 = vmatprep.subr.mxu0 0.0
        %1246 = vmatpush1.msra.mxu0 0.0
        %1247 = vmatprep.subr.mxu0 0.0
        %1248 = vmatpush1.msra.mxu0 0.0
        %1249 = vmatprep.subr.mxu0 0.0
        %1250 = vmatpush1.msra.mxu0 0.0
        %1251 = vmatprep.subr.mxu0 0.0
        %1252 = vmatpush1.msra.mxu0 0.0
        %1253 = vmatprep.subr.mxu0 0.0
        %1254 = vmatpush1.msra.mxu0 0.0
        %1255 = vmatprep.subr.mxu0 0.0
        %1256 = vmatpush1.msra.mxu0 0.0
        %1257 = vmatprep.mubr.f32.mxu0 0.0
        %1258 = vmatmul.mubr.f32.gmra.mrb[0].mxu0 %v1191
        %v1259 = vpop.f32.mrb[0].mxu0
        %v1260 = vadd.f32 0.0, %v1259
        %v1261 = vpop.f32.mrb[0].mxu0
        %1262 = vdwg.mxu0
        %1263 = vxpose.xlu0.b32.start [1/16] %v1008, 128
        %1264 = vxpose.xlu0.b32.cont [2/16] 0.0, 128
        %1265 = vxpose.xlu0.b32.cont [3/16] 0.0, 128
        %1266 = vxpose.xlu0.b32.cont [4/16] 0.0, 128
        %1267 = vxpose.xlu0.b32.cont [5/16] 0.0, 128
        %1268 = vxpose.xlu0.b32.cont [6/16] 0.0, 128
        %1269 = vxpose.xlu0.b32.cont [7/16] 0.0, 128
        %1270 = vxpose.xlu0.b32.cont [8/16] 0.0, 128
        %1271 = vxpose.xlu0.b32.cont [9/16] 0.0, 128
        %1272 = vxpose.xlu0.b32.cont [10/16] 0.0, 128
        %1273 = vxpose.xlu0.b32.cont [11/16] 0.0, 128
        %1274 = vxpose.xlu0.b32.cont [12/16] 0.0, 128
        %1275 = vxpose.xlu0.b32.cont [13/16] 0.0, 128
        %1276 = vxpose.xlu0.b32.cont [14/16] 0.0, 128
        %1277 = vxpose.xlu0.b32.cont [15/16] 0.0, 128
        %1278 = vxpose.xlu0.b32.end [16/16] 0.0, 128
        %v1279 = vpop.trf.xlu0
        %v1280 = vpop.trf.xlu0
        %v1281 = vpop.trf.xlu0
        %v1282 = vpop.trf.xlu0
        %v1283 = vpop.trf.xlu0
        %v1284 = vpop.trf.xlu0
        %v1285 = vpop.trf.xlu0
        %v1286 = vpop.trf.xlu0
        %v1287 = vpop.trf.xlu0
        %v1288 = vpop.trf.xlu0
        %v1289 = vpop.trf.xlu0
        %v1290 = vpop.trf.xlu0
        %v1291 = vpop.trf.xlu0
        %v1292 = vpop.trf.xlu0
        %v1293 = vpop.trf.xlu0
        %v1294 = vpop.trf.xlu0
        %v1296 = vsel %vm1084, %v1279, 0
        %1298 = vmatprep.subr.mxu0 0.0
        %1299 = vmatpush1.msra.mxu0 %v1038
        %1300 = vmatprep.subr.mxu0 0.0
        %1301 = vmatpush1.msra.mxu0 0.0
        %1302 = vmatprep.subr.mxu0 0.0
        %1303 = vmatpush1.msra.mxu0 0.0
        %1304 = vmatprep.subr.mxu0 0.0
        %1305 = vmatpush1.msra.mxu0 0.0
        %1306 = vmatprep.subr.mxu0 0.0
        %1307 = vmatpush1.msra.mxu0 0.0
        %1308 = vmatprep.subr.mxu0 0.0
        %1309 = vmatpush1.msra.mxu0 0.0
        %1310 = vmatprep.subr.mxu0 0.0
        %1311 = vmatpush1.msra.mxu0 0.0
        %1312 = vmatprep.subr.mxu0 0.0
        %1313 = vmatpush1.msra.mxu0 0.0
        %1314 = vmatprep.subr.mxu0 0.0
        %1315 = vmatpush1.msra.mxu0 0.0
        %1316 = vmatprep.subr.mxu0 0.0
        %1317 = vmatpush1.msra.mxu0 0.0
        %1318 = vmatprep.subr.mxu0 0.0
        %1319 = vmatpush1.msra.mxu0 0.0
        %1320 = vmatprep.subr.mxu0 0.0
        %1321 = vmatpush1.msra.mxu0 0.0
        %1322 = vmatprep.subr.mxu0 0.0
        %1323 = vmatpush1.msra.mxu0 0.0
        %1324 = vmatprep.subr.mxu0 0.0
        %1325 = vmatpush1.msra.mxu0 0.0
        %1326 = vmatprep.subr.mxu0 0.0
        %1327 = vmatpush1.msra.mxu0 0.0
        %1328 = vmatprep.subr.mxu0 0.0
        %1329 = vmatpush1.msra.mxu0 0.0
        %1330 = vmatprep.subr.mxu0 0.0
        %1331 = vmatpush1.msra.mxu0 0.0
        %1332 = vmatprep.subr.mxu0 0.0
        %1333 = vmatpush1.msra.mxu0 0.0
        %1334 = vmatprep.subr.mxu0 0.0
        %1335 = vmatpush1.msra.mxu0 0.0
        %1336 = vmatprep.subr.mxu0 0.0
        %1337 = vmatpush1.msra.mxu0 0.0
        %1338 = vmatprep.subr.mxu0 0.0
        %1339 = vmatpush1.msra.mxu0 0.0
        %1340 = vmatprep.subr.mxu0 0.0
        %1341 = vmatpush1.msra.mxu0 0.0
        %1342 = vmatprep.subr.mxu0 0.0
        %1343 = vmatpush1.msra.mxu0 0.0
        %1344 = vmatprep.subr.mxu0 0.0
        %1345 = vmatpush1.msra.mxu0 0.0
        %1346 = vmatprep.subr.mxu0 0.0
        %1347 = vmatpush1.msra.mxu0 0.0
        %1348 = vmatprep.subr.mxu0 0.0
        %1349 = vmatpush1.msra.mxu0 0.0
        %1350 = vmatprep.subr.mxu0 0.0
        %1351 = vmatpush1.msra.mxu0 0.0
        %1352 = vmatprep.subr.mxu0 0.0
        %1353 = vmatpush1.msra.mxu0 0.0
        %1354 = vmatprep.subr.mxu0 0.0
        %1355 = vmatpush1.msra.mxu0 0.0
        %1356 = vmatprep.subr.mxu0 0.0
        %1357 = vmatpush1.msra.mxu0 0.0
        %1358 = vmatprep.subr.mxu0 0.0
        %1359 = vmatpush1.msra.mxu0 0.0
        %1360 = vmatprep.subr.mxu0 0.0
        %1361 = vmatpush1.msra.mxu0 0.0
        %1362 = vmatprep.mubr.f32.mxu0 0.0
        %1363 = vmatmul.mubr.f32.gmra.mrb[0].mxu0 %v1296
        %v1364 = vpop.f32.mrb[0].mxu0
        %v1365 = vadd.f32 0.0, %v1364
        %v1366 = vpop.f32.mrb[0].mxu0
        %1367 = vdwg.mxu0
        %1368 = vxpose.xlu0.b32.start [1/16] %v1013, 128
        %1369 = vxpose.xlu0.b32.cont [2/16] 0.0, 128
        %1370 = vxpose.xlu0.b32.cont [3/16] 0.0, 128
        %1371 = vxpose.xlu0.b32.cont [4/16] 0.0, 128
        %1372 = vxpose.xlu0.b32.cont [5/16] 0.0, 128
        %1373 = vxpose.xlu0.b32.cont [6/16] 0.0, 128
        %1374 = vxpose.xlu0.b32.cont [7/16] 0.0, 128
        %1375 = vxpose.xlu0.b32.cont [8/16] 0.0, 128
        %1376 = vxpose.xlu0.b32.cont [9/16] 0.0, 128
        %1377 = vxpose.xlu0.b32.cont [10/16] 0.0, 128
        %1378 = vxpose.xlu0.b32.cont [11/16] 0.0, 128
        %1379 = vxpose.xlu0.b32.cont [12/16] 0.0, 128
        %1380 = vxpose.xlu0.b32.cont [13/16] 0.0, 128
        %1381 = vxpose.xlu0.b32.cont [14/16] 0.0, 128
        %1382 = vxpose.xlu0.b32.cont [15/16] 0.0, 128
        %1383 = vxpose.xlu0.b32.end [16/16] 0.0, 128
        %v1384 = vpop.trf.xlu0
        %v1385 = vpop.trf.xlu0
        %v1386 = vpop.trf.xlu0
        %v1387 = vpop.trf.xlu0
        %v1388 = vpop.trf.xlu0
        %v1389 = vpop.trf.xlu0
        %v1390 = vpop.trf.xlu0
        %v1391 = vpop.trf.xlu0
        %v1392 = vpop.trf.xlu0
        %v1393 = vpop.trf.xlu0
        %v1394 = vpop.trf.xlu0
        %v1395 = vpop.trf.xlu0
        %v1396 = vpop.trf.xlu0
        %v1397 = vpop.trf.xlu0
        %v1398 = vpop.trf.xlu0
        %v1399 = vpop.trf.xlu0
        %v1401 = vsel %vm1084, %v1384, 0
        %1403 = vmatprep.subr.mxu0 0.0
        %1404 = vmatpush1.msra.mxu0 %v1039
        %1405 = vmatprep.subr.mxu0 0.0
        %1406 = vmatpush1.msra.mxu0 0.0
        %1407 = vmatprep.subr.mxu0 0.0
        %1408 = vmatpush1.msra.mxu0 0.0
        %1409 = vmatprep.subr.mxu0 0.0
        %1410 = vmatpush1.msra.mxu0 0.0
        %1411 = vmatprep.subr.mxu0 0.0
        %1412 = vmatpush1.msra.mxu0 0.0
        %1413 = vmatprep.subr.mxu0 0.0
        %1414 = vmatpush1.msra.mxu0 0.0
        %1415 = vmatprep.subr.mxu0 0.0
        %1416 = vmatpush1.msra.mxu0 0.0
        %1417 = vmatprep.subr.mxu0 0.0
        %1418 = vmatpush1.msra.mxu0 0.0
        %1419 = vmatprep.subr.mxu0 0.0
        %1420 = vmatpush1.msra.mxu0 0.0
        %1421 = vmatprep.subr.mxu0 0.0
        %1422 = vmatpush1.msra.mxu0 0.0
        %1423 = vmatprep.subr.mxu0 0.0
        %1424 = vmatpush1.msra.mxu0 0.0
        %1425 = vmatprep.subr.mxu0 0.0
        %1426 = vmatpush1.msra.mxu0 0.0
        %1427 = vmatprep.subr.mxu0 0.0
        %1428 = vmatpush1.msra.mxu0 0.0
        %1429 = vmatprep.subr.mxu0 0.0
        %1430 = vmatpush1.msra.mxu0 0.0
        %1431 = vmatprep.subr.mxu0 0.0
        %1432 = vmatpush1.msra.mxu0 0.0
        %1433 = vmatprep.subr.mxu0 0.0
        %1434 = vmatpush1.msra.mxu0 0.0
        %1435 = vmatprep.subr.mxu0 0.0
        %1436 = vmatpush1.msra.mxu0 0.0
        %1437 = vmatprep.subr.mxu0 0.0
        %1438 = vmatpush1.msra.mxu0 0.0
        %1439 = vmatprep.subr.mxu0 0.0
        %1440 = vmatpush1.msra.mxu0 0.0
        %1441 = vmatprep.subr.mxu0 0.0
        %1442 = vmatpush1.msra.mxu0 0.0
        %1443 = vmatprep.subr.mxu0 0.0
        %1444 = vmatpush1.msra.mxu0 0.0
        %1445 = vmatprep.subr.mxu0 0.0
        %1446 = vmatpush1.msra.mxu0 0.0
        %1447 = vmatprep.subr.mxu0 0.0
        %1448 = vmatpush1.msra.mxu0 0.0
        %1449 = vmatprep.subr.mxu0 0.0
        %1450 = vmatpush1.msra.mxu0 0.0
        %1451 = vmatprep.subr.mxu0 0.0
        %1452 = vmatpush1.msra.mxu0 0.0
        %1453 = vmatprep.subr.mxu0 0.0
        %1454 = vmatpush1.msra.mxu0 0.0
        %1455 = vmatprep.subr.mxu0 0.0
        %1456 = vmatpush1.msra.mxu0 0.0
        %1457 = vmatprep.subr.mxu0 0.0
        %1458 = vmatpush1.msra.mxu0 0.0
        %1459 = vmatprep.subr.mxu0 0.0
        %1460 = vmatpush1.msra.mxu0 0.0
        %1461 = vmatprep.subr.mxu0 0.0
        %1462 = vmatpush1.msra.mxu0 0.0
        %1463 = vmatprep.subr.mxu0 0.0
        %1464 = vmatpush1.msra.mxu0 0.0
        %1465 = vmatprep.subr.mxu0 0.0
        %1466 = vmatpush1.msra.mxu0 0.0
        %1467 = vmatprep.mubr.f32.mxu0 0.0
        %1468 = vmatmul.mubr.f32.gmra.mrb[0].mxu0 %v1401
        %v1469 = vpop.f32.mrb[0].mxu0
        %v1470 = vadd.f32 0.0, %v1469
        %v1471 = vpop.f32.mrb[0].mxu0
        %1472 = vdwg.mxu0
        %1473 = vxpose.xlu0.b32.start [1/16] %v1018, 128
        %1474 = vxpose.xlu0.b32.cont [2/16] 0.0, 128
        %1475 = vxpose.xlu0.b32.cont [3/16] 0.0, 128
        %1476 = vxpose.xlu0.b32.cont [4/16] 0.0, 128
        %1477 = vxpose.xlu0.b32.cont [5/16] 0.0, 128
        %1478 = vxpose.xlu0.b32.cont [6/16] 0.0, 128
        %1479 = vxpose.xlu0.b32.cont [7/16] 0.0, 128
        %1480 = vxpose.xlu0.b32.cont [8/16] 0.0, 128
        %1481 = vxpose.xlu0.b32.cont [9/16] 0.0, 128
        %1482 = vxpose.xlu0.b32.cont [10/16] 0.0, 128
        %1483 = vxpose.xlu0.b32.cont [11/16] 0.0, 128
        %1484 = vxpose.xlu0.b32.cont [12/16] 0.0, 128
        %1485 = vxpose.xlu0.b32.cont [13/16] 0.0, 128
        %1486 = vxpose.xlu0.b32.cont [14/16] 0.0, 128
        %1487 = vxpose.xlu0.b32.cont [15/16] 0.0, 128
        %1488 = vxpose.xlu0.b32.end [16/16] 0.0, 128
        %v1489 = vpop.trf.xlu0
        %v1490 = vpop.trf.xlu0
        %v1491 = vpop.trf.xlu0
        %v1492 = vpop.trf.xlu0
        %v1493 = vpop.trf.xlu0
        %v1494 = vpop.trf.xlu0
        %v1495 = vpop.trf.xlu0
        %v1496 = vpop.trf.xlu0
        %v1497 = vpop.trf.xlu0
        %v1498 = vpop.trf.xlu0
        %v1499 = vpop.trf.xlu0
        %v1500 = vpop.trf.xlu0
        %v1501 = vpop.trf.xlu0
        %v1502 = vpop.trf.xlu0
        %v1503 = vpop.trf.xlu0
        %v1504 = vpop.trf.xlu0
        %v1506 = vsel %vm1084, %v1489, 0
        %1508 = vmatprep.subr.mxu0 0.0
        %1509 = vmatpush1.msra.mxu0 %v1040
        %1510 = vmatprep.subr.mxu0 0.0
        %1511 = vmatpush1.msra.mxu0 0.0
        %1512 = vmatprep.subr.mxu0 0.0
        %1513 = vmatpush1.msra.mxu0 0.0
        %1514 = vmatprep.subr.mxu0 0.0
        %1515 = vmatpush1.msra.mxu0 0.0
        %1516 = vmatprep.subr.mxu0 0.0
        %1517 = vmatpush1.msra.mxu0 0.0
        %1518 = vmatprep.subr.mxu0 0.0
        %1519 = vmatpush1.msra.mxu0 0.0
        %1520 = vmatprep.subr.mxu0 0.0
        %1521 = vmatpush1.msra.mxu0 0.0
        %1522 = vmatprep.subr.mxu0 0.0
        %1523 = vmatpush1.msra.mxu0 0.0
        %1524 = vmatprep.subr.mxu0 0.0
        %1525 = vmatpush1.msra.mxu0 0.0
        %1526 = vmatprep.subr.mxu0 0.0
        %1527 = vmatpush1.msra.mxu0 0.0
        %1528 = vmatprep.subr.mxu0 0.0
        %1529 = vmatpush1.msra.mxu0 0.0
        %1530 = vmatprep.subr.mxu0 0.0
        %1531 = vmatpush1.msra.mxu0 0.0
        %1532 = vmatprep.subr.mxu0 0.0
        %1533 = vmatpush1.msra.mxu0 0.0
        %1534 = vmatprep.subr.mxu0 0.0
        %1535 = vmatpush1.msra.mxu0 0.0
        %1536 = vmatprep.subr.mxu0 0.0
        %1537 = vmatpush1.msra.mxu0 0.0
        %1538 = vmatprep.subr.mxu0 0.0
        %1539 = vmatpush1.msra.mxu0 0.0
        %1540 = vmatprep.subr.mxu0 0.0
        %1541 = vmatpush1.msra.mxu0 0.0
        %1542 = vmatprep.subr.mxu0 0.0
        %1543 = vmatpush1.msra.mxu0 0.0
        %1544 = vmatprep.subr.mxu0 0.0
        %1545 = vmatpush1.msra.mxu0 0.0
        %1546 = vmatprep.subr.mxu0 0.0
        %1547 = vmatpush1.msra.mxu0 0.0
        %1548 = vmatprep.subr.mxu0 0.0
        %1549 = vmatpush1.msra.mxu0 0.0
        %1550 = vmatprep.subr.mxu0 0.0
        %1551 = vmatpush1.msra.mxu0 0.0
        %1552 = vmatprep.subr.mxu0 0.0
        %1553 = vmatpush1.msra.mxu0 0.0
        %1554 = vmatprep.subr.mxu0 0.0
        %1555 = vmatpush1.msra.mxu0 0.0
        %1556 = vmatprep.subr.mxu0 0.0
        %1557 = vmatpush1.msra.mxu0 0.0
        %1558 = vmatprep.subr.mxu0 0.0
        %1559 = vmatpush1.msra.mxu0 0.0
        %1560 = vmatprep.subr.mxu0 0.0
        %1561 = vmatpush1.msra.mxu0 0.0
        %1562 = vmatprep.subr.mxu0 0.0
        %1563 = vmatpush1.msra.mxu0 0.0
        %1564 = vmatprep.subr.mxu0 0.0
        %1565 = vmatpush1.msra.mxu0 0.0
        %1566 = vmatprep.subr.mxu0 0.0
        %1567 = vmatpush1.msra.mxu0 0.0
        %1568 = vmatprep.subr.mxu0 0.0
        %1569 = vmatpush1.msra.mxu0 0.0
        %1570 = vmatprep.subr.mxu0 0.0
        %1571 = vmatpush1.msra.mxu0 0.0
        %1572 = vmatprep.mubr.f32.mxu0 0.0
        %1573 = vmatmul.mubr.f32.gmra.mrb[0].mxu0 %v1506
        %v1574 = vpop.f32.mrb[0].mxu0
        %v1575 = vadd.f32 0.0, %v1574
        %v1576 = vpop.f32.mrb[0].mxu0
        %1577 = vdwg.mxu0
        %1578 = vxpose.xlu0.b32.start [1/16] %v1023, 128
        %1579 = vxpose.xlu0.b32.cont [2/16] 0.0, 128
        %1580 = vxpose.xlu0.b32.cont [3/16] 0.0, 128
        %1581 = vxpose.xlu0.b32.cont [4/16] 0.0, 128
        %1582 = vxpose.xlu0.b32.cont [5/16] 0.0, 128
        %1583 = vxpose.xlu0.b32.cont [6/16] 0.0, 128
        %1584 = vxpose.xlu0.b32.cont [7/16] 0.0, 128
        %1585 = vxpose.xlu0.b32.cont [8/16] 0.0, 128
        %1586 = vxpose.xlu0.b32.cont [9/16] 0.0, 128
        %1587 = vxpose.xlu0.b32.cont [10/16] 0.0, 128
        %1588 = vxpose.xlu0.b32.cont [11/16] 0.0, 128
        %1589 = vxpose.xlu0.b32.cont [12/16] 0.0, 128
        %1590 = vxpose.xlu0.b32.cont [13/16] 0.0, 128
        %1591 = vxpose.xlu0.b32.cont [14/16] 0.0, 128
        %1592 = vxpose.xlu0.b32.cont [15/16] 0.0, 128
        %1593 = vxpose.xlu0.b32.end [16/16] 0.0, 128
        %v1594 = vpop.trf.xlu0
        %v1595 = vpop.trf.xlu0
        %v1596 = vpop.trf.xlu0
        %v1597 = vpop.trf.xlu0
        %v1598 = vpop.trf.xlu0
        %v1599 = vpop.trf.xlu0
        %v1600 = vpop.trf.xlu0
        %v1601 = vpop.trf.xlu0
        %v1602 = vpop.trf.xlu0
        %v1603 = vpop.trf.xlu0
        %v1604 = vpop.trf.xlu0
        %v1605 = vpop.trf.xlu0
        %v1606 = vpop.trf.xlu0
        %v1607 = vpop.trf.xlu0
        %v1608 = vpop.trf.xlu0
        %v1609 = vpop.trf.xlu0
        %v1611 = vsel %vm1084, %v1594, 0
        %1613 = vmatprep.subr.mxu0 0.0
        %1614 = vmatpush1.msra.mxu0 %v1041
        %1615 = vmatprep.subr.mxu0 0.0
        %1616 = vmatpush1.msra.mxu0 0.0
        %1617 = vmatprep.subr.mxu0 0.0
        %1618 = vmatpush1.msra.mxu0 0.0
        %1619 = vmatprep.subr.mxu0 0.0
        %1620 = vmatpush1.msra.mxu0 0.0
        %1621 = vmatprep.subr.mxu0 0.0
        %1622 = vmatpush1.msra.mxu0 0.0
        %1623 = vmatprep.subr.mxu0 0.0
        %1624 = vmatpush1.msra.mxu0 0.0
        %1625 = vmatprep.subr.mxu0 0.0
        %1626 = vmatpush1.msra.mxu0 0.0
        %1627 = vmatprep.subr.mxu0 0.0
        %1628 = vmatpush1.msra.mxu0 0.0
        %1629 = vmatprep.subr.mxu0 0.0
        %1630 = vmatpush1.msra.mxu0 0.0
        %1631 = vmatprep.subr.mxu0 0.0
        %1632 = vmatpush1.msra.mxu0 0.0
        %1633 = vmatprep.subr.mxu0 0.0
        %1634 = vmatpush1.msra.mxu0 0.0
        %1635 = vmatprep.subr.mxu0 0.0
        %1636 = vmatpush1.msra.mxu0 0.0
        %1637 = vmatprep.subr.mxu0 0.0
        %1638 = vmatpush1.msra.mxu0 0.0
        %1639 = vmatprep.subr.mxu0 0.0
        %1640 = vmatpush1.msra.mxu0 0.0
        %1641 = vmatprep.subr.mxu0 0.0
        %1642 = vmatpush1.msra.mxu0 0.0
        %1643 = vmatprep.subr.mxu0 0.0
        %1644 = vmatpush1.msra.mxu0 0.0
        %1645 = vmatprep.subr.mxu0 0.0
        %1646 = vmatpush1.msra.mxu0 0.0
        %1647 = vmatprep.subr.mxu0 0.0
        %1648 = vmatpush1.msra.mxu0 0.0
        %1649 = vmatprep.subr.mxu0 0.0
        %1650 = vmatpush1.msra.mxu0 0.0
        %1651 = vmatprep.subr.mxu0 0.0
        %1652 = vmatpush1.msra.mxu0 0.0
        %1653 = vmatprep.subr.mxu0 0.0
        %1654 = vmatpush1.msra.mxu0 0.0
        %1655 = vmatprep.subr.mxu0 0.0
        %1656 = vmatpush1.msra.mxu0 0.0
        %1657 = vmatprep.subr.mxu0 0.0
        %1658 = vmatpush1.msra.mxu0 0.0
        %1659 = vmatprep.subr.mxu0 0.0
        %1660 = vmatpush1.msra.mxu0 0.0
        %1661 = vmatprep.subr.mxu0 0.0
        %1662 = vmatpush1.msra.mxu0 0.0
        %1663 = vmatprep.subr.mxu0 0.0
        %1664 = vmatpush1.msra.mxu0 0.0
        %1665 = vmatprep.subr.mxu0 0.0
        %1666 = vmatpush1.msra.mxu0 0.0
        %1667 = vmatprep.subr.mxu0 0.0
        %1668 = vmatpush1.msra.mxu0 0.0
        %1669 = vmatprep.subr.mxu0 0.0
        %1670 = vmatpush1.msra.mxu0 0.0
        %1671 = vmatprep.subr.mxu0 0.0
        %1672 = vmatpush1.msra.mxu0 0.0
        %1673 = vmatprep.subr.mxu0 0.0
        %1674 = vmatpush1.msra.mxu0 0.0
        %1675 = vmatprep.subr.mxu0 0.0
        %1676 = vmatpush1.msra.mxu0 0.0
        %1677 = vmatprep.mubr.f32.mxu0 0.0
        %1678 = vmatmul.mubr.f32.gmra.mrb[0].mxu0 %v1611
        %v1679 = vpop.f32.mrb[0].mxu0
        %v1680 = vadd.f32 0.0, %v1679
        %v1681 = vpop.f32.mrb[0].mxu0
        %1682 = vdwg.mxu0
        %1683 = vxpose.xlu0.b32.start [1/16] %v1028, 128
        %1684 = vxpose.xlu0.b32.cont [2/16] 0.0, 128
        %1685 = vxpose.xlu0.b32.cont [3/16] 0.0, 128
        %1686 = vxpose.xlu0.b32.cont [4/16] 0.0, 128
        %1687 = vxpose.xlu0.b32.cont [5/16] 0.0, 128
        %1688 = vxpose.xlu0.b32.cont [6/16] 0.0, 128
        %1689 = vxpose.xlu0.b32.cont [7/16] 0.0, 128
        %1690 = vxpose.xlu0.b32.cont [8/16] 0.0, 128
        %1691 = vxpose.xlu0.b32.cont [9/16] 0.0, 128
        %1692 = vxpose.xlu0.b32.cont [10/16] 0.0, 128
        %1693 = vxpose.xlu0.b32.cont [11/16] 0.0, 128
        %1694 = vxpose.xlu0.b32.cont [12/16] 0.0, 128
        %1695 = vxpose.xlu0.b32.cont [13/16] 0.0, 128
        %1696 = vxpose.xlu0.b32.cont [14/16] 0.0, 128
        %1697 = vxpose.xlu0.b32.cont [15/16] 0.0, 128
        %1698 = vxpose.xlu0.b32.end [16/16] 0.0, 128
        %v1699 = vpop.trf.xlu0
        %v1700 = vpop.trf.xlu0
        %v1701 = vpop.trf.xlu0
        %v1702 = vpop.trf.xlu0
        %v1703 = vpop.trf.xlu0
        %v1704 = vpop.trf.xlu0
        %v1705 = vpop.trf.xlu0
        %v1706 = vpop.trf.xlu0
        %v1707 = vpop.trf.xlu0
        %v1708 = vpop.trf.xlu0
        %v1709 = vpop.trf.xlu0
        %v1710 = vpop.trf.xlu0
        %v1711 = vpop.trf.xlu0
        %v1712 = vpop.trf.xlu0
        %v1713 = vpop.trf.xlu0
        %v1714 = vpop.trf.xlu0
        %v1716 = vsel %vm1084, %v1699, 0
        %1718 = vmatprep.subr.mxu0 0.0
        %1719 = vmatpush1.msra.mxu0 %v1042
        %1720 = vmatprep.subr.mxu0 0.0
        %1721 = vmatpush1.msra.mxu0 0.0
        %1722 = vmatprep.subr.mxu0 0.0
        %1723 = vmatpush1.msra.mxu0 0.0
        %1724 = vmatprep.subr.mxu0 0.0
        %1725 = vmatpush1.msra.mxu0 0.0
        %1726 = vmatprep.subr.mxu0 0.0
        %1727 = vmatpush1.msra.mxu0 0.0
        %1728 = vmatprep.subr.mxu0 0.0
        %1729 = vmatpush1.msra.mxu0 0.0
        %1730 = vmatprep.subr.mxu0 0.0
        %1731 = vmatpush1.msra.mxu0 0.0
        %1732 = vmatprep.subr.mxu0 0.0
        %1733 = vmatpush1.msra.mxu0 0.0
        %1734 = vmatprep.subr.mxu0 0.0
        %1735 = vmatpush1.msra.mxu0 0.0
        %1736 = vmatprep.subr.mxu0 0.0
        %1737 = vmatpush1.msra.mxu0 0.0
        %1738 = vmatprep.subr.mxu0 0.0
        %1739 = vmatpush1.msra.mxu0 0.0
        %1740 = vmatprep.subr.mxu0 0.0
        %1741 = vmatpush1.msra.mxu0 0.0
        %1742 = vmatprep.subr.mxu0 0.0
        %1743 = vmatpush1.msra.mxu0 0.0
        %1744 = vmatprep.subr.mxu0 0.0
        %1745 = vmatpush1.msra.mxu0 0.0
        %1746 = vmatprep.subr.mxu0 0.0
        %1747 = vmatpush1.msra.mxu0 0.0
        %1748 = vmatprep.subr.mxu0 0.0
        %1749 = vmatpush1.msra.mxu0 0.0
        %1750 = vmatprep.subr.mxu0 0.0
        %1751 = vmatpush1.msra.mxu0 0.0
        %1752 = vmatprep.subr.mxu0 0.0
        %1753 = vmatpush1.msra.mxu0 0.0
        %1754 = vmatprep.subr.mxu0 0.0
        %1755 = vmatpush1.msra.mxu0 0.0
        %1756 = vmatprep.subr.mxu0 0.0
        %1757 = vmatpush1.msra.mxu0 0.0
        %1758 = vmatprep.subr.mxu0 0.0
        %1759 = vmatpush1.msra.mxu0 0.0
        %1760 = vmatprep.subr.mxu0 0.0
        %1761 = vmatpush1.msra.mxu0 0.0
        %1762 = vmatprep.subr.mxu0 0.0
        %1763 = vmatpush1.msra.mxu0 0.0
        %1764 = vmatprep.subr.mxu0 0.0
        %1765 = vmatpush1.msra.mxu0 0.0
        %1766 = vmatprep.subr.mxu0 0.0
        %1767 = vmatpush1.msra.mxu0 0.0
        %1768 = vmatprep.subr.mxu0 0.0
        %1769 = vmatpush1.msra.mxu0 0.0
        %1770 = vmatprep.subr.mxu0 0.0
        %1771 = vmatpush1.msra.mxu0 0.0
        %1772 = vmatprep.subr.mxu0 0.0
        %1773 = vmatpush1.msra.mxu0 0.0
        %1774 = vmatprep.subr.mxu0 0.0
        %1775 = vmatpush1.msra.mxu0 0.0
        %1776 = vmatprep.subr.mxu0 0.0
        %1777 = vmatpush1.msra.mxu0 0.0
        %1778 = vmatprep.subr.mxu0 0.0
        %1779 = vmatpush1.msra.mxu0 0.0
        %1780 = vmatprep.subr.mxu0 0.0
        %1781 = vmatpush1.msra.mxu0 0.0
        %1782 = vmatprep.mubr.f32.mxu0 0.0
        %1783 = vmatmul.mubr.f32.gmra.mrb[0].mxu0 %v1716
        %v1784 = vpop.f32.mrb[0].mxu0
        %v1785 = vadd.f32 0.0, %v1784
        %v1786 = vpop.f32.mrb[0].mxu0
        %1787 = vdwg.mxu0
        %1788 = vxpose.xlu0.b32.start [1/16] %v1033, 128
        %1789 = vxpose.xlu0.b32.cont [2/16] 0.0, 128
        %1790 = vxpose.xlu0.b32.cont [3/16] 0.0, 128
        %1791 = vxpose.xlu0.b32.cont [4/16] 0.0, 128
        %1792 = vxpose.xlu0.b32.cont [5/16] 0.0, 128
        %1793 = vxpose.xlu0.b32.cont [6/16] 0.0, 128
        %1794 = vxpose.xlu0.b32.cont [7/16] 0.0, 128
        %1795 = vxpose.xlu0.b32.cont [8/16] 0.0, 128
        %1796 = vxpose.xlu0.b32.cont [9/16] 0.0, 128
        %1797 = vxpose.xlu0.b32.cont [10/16] 0.0, 128
        %1798 = vxpose.xlu0.b32.cont [11/16] 0.0, 128
        %1799 = vxpose.xlu0.b32.cont [12/16] 0.0, 128
        %1800 = vxpose.xlu0.b32.cont [13/16] 0.0, 128
        %1801 = vxpose.xlu0.b32.cont [14/16] 0.0, 128
        %1802 = vxpose.xlu0.b32.cont [15/16] 0.0, 128
        %1803 = vxpose.xlu0.b32.end [16/16] 0.0, 128
        %v1804 = vpop.trf.xlu0
        %v1805 = vpop.trf.xlu0
        %v1806 = vpop.trf.xlu0
        %v1807 = vpop.trf.xlu0
        %v1808 = vpop.trf.xlu0
        %v1809 = vpop.trf.xlu0
        %v1810 = vpop.trf.xlu0
        %v1811 = vpop.trf.xlu0
        %v1812 = vpop.trf.xlu0
        %v1813 = vpop.trf.xlu0
        %v1814 = vpop.trf.xlu0
        %v1815 = vpop.trf.xlu0
        %v1816 = vpop.trf.xlu0
        %v1817 = vpop.trf.xlu0
        %v1818 = vpop.trf.xlu0
        %v1819 = vpop.trf.xlu0
        %v1821 = vsel %vm1084, %v1804, 0
        %1823 = vmatprep.subr.mxu0 0.0
        %1824 = vmatpush1.msra.mxu0 %v1043
        %1825 = vmatprep.subr.mxu0 0.0
        %1826 = vmatpush1.msra.mxu0 0.0
        %1827 = vmatprep.subr.mxu0 0.0
        %1828 = vmatpush1.msra.mxu0 0.0
        %1829 = vmatprep.subr.mxu0 0.0
        %1830 = vmatpush1.msra.mxu0 0.0
        %1831 = vmatprep.subr.mxu0 0.0
        %1832 = vmatpush1.msra.mxu0 0.0
        %1833 = vmatprep.subr.mxu0 0.0
        %1834 = vmatpush1.msra.mxu0 0.0
        %1835 = vmatprep.subr.mxu0 0.0
        %1836 = vmatpush1.msra.mxu0 0.0
        %1837 = vmatprep.subr.mxu0 0.0
        %1838 = vmatpush1.msra.mxu0 0.0
        %1839 = vmatprep.subr.mxu0 0.0
        %1840 = vmatpush1.msra.mxu0 0.0
        %1841 = vmatprep.subr.mxu0 0.0
        %1842 = vmatpush1.msra.mxu0 0.0
        %1843 = vmatprep.subr.mxu0 0.0
        %1844 = vmatpush1.msra.mxu0 0.0
        %1845 = vmatprep.subr.mxu0 0.0
        %1846 = vmatpush1.msra.mxu0 0.0
        %1847 = vmatprep.subr.mxu0 0.0
        %1848 = vmatpush1.msra.mxu0 0.0
        %1849 = vmatprep.subr.mxu0 0.0
        %1850 = vmatpush1.msra.mxu0 0.0
        %1851 = vmatprep.subr.mxu0 0.0
        %1852 = vmatpush1.msra.mxu0 0.0
        %1853 = vmatprep.subr.mxu0 0.0
        %1854 = vmatpush1.msra.mxu0 0.0
        %1855 = vmatprep.subr.mxu0 0.0
        %1856 = vmatpush1.msra.mxu0 0.0
        %1857 = vmatprep.subr.mxu0 0.0
        %1858 = vmatpush1.msra.mxu0 0.0
        %1859 = vmatprep.subr.mxu0 0.0
        %1860 = vmatpush1.msra.mxu0 0.0
        %1861 = vmatprep.subr.mxu0 0.0
        %1862 = vmatpush1.msra.mxu0 0.0
        %1863 = vmatprep.subr.mxu0 0.0
        %1864 = vmatpush1.msra.mxu0 0.0
        %1865 = vmatprep.subr.mxu0 0.0
        %1866 = vmatpush1.msra.mxu0 0.0
        %1867 = vmatprep.subr.mxu0 0.0
        %1868 = vmatpush1.msra.mxu0 0.0
        %1869 = vmatprep.subr.mxu0 0.0
        %1870 = vmatpush1.msra.mxu0 0.0
        %1871 = vmatprep.subr.mxu0 0.0
        %1872 = vmatpush1.msra.mxu0 0.0
        %1873 = vmatprep.subr.mxu0 0.0
        %1874 = vmatpush1.msra.mxu0 0.0
        %1875 = vmatprep.subr.mxu0 0.0
        %1876 = vmatpush1.msra.mxu0 0.0
        %1877 = vmatprep.subr.mxu0 0.0
        %1878 = vmatpush1.msra.mxu0 0.0
        %1879 = vmatprep.subr.mxu0 0.0
        %1880 = vmatpush1.msra.mxu0 0.0
        %1881 = vmatprep.subr.mxu0 0.0
        %1882 = vmatpush1.msra.mxu0 0.0
        %1883 = vmatprep.subr.mxu0 0.0
        %1884 = vmatpush1.msra.mxu0 0.0
        %1885 = vmatprep.subr.mxu0 0.0
        %1886 = vmatpush1.msra.mxu0 0.0
        %1887 = vmatprep.mubr.f32.mxu0 0.0
        %1888 = vmatmul.mubr.f32.gmra.mrb[0].mxu0 %v1821
        %v1889 = vpop.f32.mrb[0].mxu0
        %v1890 = vadd.f32 0.0, %v1889
        %v1891 = vpop.f32.mrb[0].mxu0
        %1892 = vdwg.mxu0
        %v1893 = vsel %vm1084, %v1155, -inf
        %1894 = vmax.xlane.f32.xlu0 %v1893
        %v1895 = vpop.xlane.xlu0 %1894
        %v1896 = vsel %vm1084, %v1260, -inf
        %1897 = vmax.xlane.f32.xlu0 %v1896
        %v1898 = vpop.xlane.xlu0 %1897
        %v1899 = vsel %vm1084, %v1365, -inf
        %1900 = vmax.xlane.f32.xlu0 %v1899
        %v1901 = vpop.xlane.xlu0 %1900
        %v1902 = vsel %vm1084, %v1470, -inf
        %1903 = vmax.xlane.f32.xlu0 %v1902
        %v1904 = vpop.xlane.xlu0 %1903
        %v1905 = vsel %vm1084, %v1575, -inf
        %1906 = vmax.xlane.f32.xlu0 %v1905
        %v1907 = vpop.xlane.xlu0 %1906
        %v1908 = vsel %vm1084, %v1680, -inf
        %1909 = vmax.xlane.f32.xlu0 %v1908
        %v1910 = vpop.xlane.xlu0 %1909
        %v1911 = vsel %vm1084, %v1785, -inf
        %1912 = vmax.xlane.f32.xlu0 %v1911
        %v1913 = vpop.xlane.xlu0 %1912
        %v1914 = vsel %vm1084, %v1890, -inf
        %1915 = vmax.xlane.f32.xlu0 %v1914
        %v1916 = vpop.xlane.xlu0 %1915
        %v1917 = vsub.f32 %v1155, %v1895
        %v1918 = vsub.f32 %v1260, %v1898
        %v1919 = vsub.f32 %v1365, %v1901
        %v1920 = vsub.f32 %v1470, %v1904
        %v1921 = vsub.f32 %v1575, %v1907
        %v1922 = vsub.f32 %v1680, %v1910
        %v1923 = vsub.f32 %v1785, %v1913
        %v1924 = vsub.f32 %v1890, %v1916
        %v1925 = vmul.f32 %v1917, 1.442695
        %v1926 = vpow.pop %v1925
        %v1927 = vmul.f32 %v1918, 1.442695
        %v1928 = vpow.pop %v1927
        %v1929 = vmul.f32 %v1919, 1.442695
        %v1930 = vpow.pop %v1929
        %v1931 = vmul.f32 %v1920, 1.442695
        %v1932 = vpow.pop %v1931
        %v1933 = vmul.f32 %v1921, 1.442695
        %v1934 = vpow.pop %v1933
        %v1935 = vmul.f32 %v1922, 1.442695
        %v1936 = vpow.pop %v1935
        %v1937 = vmul.f32 %v1923, 1.442695
        %v1938 = vpow.pop %v1937
        %v1939 = vmul.f32 %v1924, 1.442695
        %v1940 = vpow.pop %v1939
        %v1941 = vsel %vm1084, %v1926, 0.0
        %1942 = vadd.xlane.f32.xlu0 %v1941
        %v1943 = vpop.xlane.xlu0 %1942
        %v1944 = vsel %vm1084, %v1928, 0.0
        %1945 = vadd.xlane.f32.xlu0 %v1944
        %v1946 = vpop.xlane.xlu0 %1945
        %v1947 = vsel %vm1084, %v1930, 0.0
        %1948 = vadd.xlane.f32.xlu0 %v1947
        %v1949 = vpop.xlane.xlu0 %1948
        %v1950 = vsel %vm1084, %v1932, 0.0
        %1951 = vadd.xlane.f32.xlu0 %v1950
        %v1952 = vpop.xlane.xlu0 %1951
        %v1953 = vsel %vm1084, %v1934, 0.0
        %1954 = vadd.xlane.f32.xlu0 %v1953
        %v1955 = vpop.xlane.xlu0 %1954
        %v1956 = vsel %vm1084, %v1936, 0.0
        %1957 = vadd.xlane.f32.xlu0 %v1956
        %v1958 = vpop.xlane.xlu0 %1957
        %v1959 = vsel %vm1084, %v1938, 0.0
        %1960 = vadd.xlane.f32.xlu0 %v1959
        %v1961 = vpop.xlane.xlu0 %1960
        %v1962 = vsel %vm1084, %v1940, 0.0
        %1963 = vadd.xlane.f32.xlu0 %v1962
        %v1964 = vpop.xlane.xlu0 %1963
        %v1966 = vsel %vm1084, %v1044, 0
        %v1969 = vsel %vm1084, %v1926, 0
        %1971 = vmatprep.subr.mxu0 0.0
        %1972 = vmatpush1.xpose.msra.mxu0 %v1969
        %1973 = vmatprep.subr.mxu0 0.0
        %1974 = vmatpush1.xpose.msra.mxu0 0.0
        %1975 = vmatprep.subr.mxu0 0.0
        %1976 = vmatpush1.xpose.msra.mxu0 0.0
        %1977 = vmatprep.subr.mxu0 0.0
        %1978 = vmatpush1.xpose.msra.mxu0 0.0
        %1979 = vmatprep.subr.mxu0 0.0
        %1980 = vmatpush1.xpose.msra.mxu0 0.0
        %1981 = vmatprep.subr.mxu0 0.0
        %1982 = vmatpush1.xpose.msra.mxu0 0.0
        %1983 = vmatprep.subr.mxu0 0.0
        %1984 = vmatpush1.xpose.msra.mxu0 0.0
        %1985 = vmatprep.subr.mxu0 0.0
        %1986 = vmatpush1.xpose.msra.mxu0 0.0
        %1987 = vmatprep.subr.mxu0 0.0
        %1988 = vmatpush1.xpose.msra.mxu0 0.0
        %1989 = vmatprep.subr.mxu0 0.0
        %1990 = vmatpush1.xpose.msra.mxu0 0.0
        %1991 = vmatprep.subr.mxu0 0.0
        %1992 = vmatpush1.xpose.msra.mxu0 0.0
        %1993 = vmatprep.subr.mxu0 0.0
        %1994 = vmatpush1.xpose.msra.mxu0 0.0
        %1995 = vmatprep.subr.mxu0 0.0
        %1996 = vmatpush1.xpose.msra.mxu0 0.0
        %1997 = vmatprep.subr.mxu0 0.0
        %1998 = vmatpush1.xpose.msra.mxu0 0.0
        %1999 = vmatprep.subr.mxu0 0.0
        %2000 = vmatpush1.xpose.msra.mxu0 0.0
        %2001 = vmatprep.subr.mxu0 0.0
        %2002 = vmatpush1.xpose.msra.mxu0 0.0
        %2003 = vmatprep.subr.mxu0 0.0
        %2004 = vmatpush1.xpose.msra.mxu0 0.0
        %2005 = vmatprep.subr.mxu0 0.0
        %2006 = vmatpush1.xpose.msra.mxu0 0.0
        %2007 = vmatprep.subr.mxu0 0.0
        %2008 = vmatpush1.xpose.msra.mxu0 0.0
        %2009 = vmatprep.subr.mxu0 0.0
        %2010 = vmatpush1.xpose.msra.mxu0 0.0
        %2011 = vmatprep.subr.mxu0 0.0
        %2012 = vmatpush1.xpose.msra.mxu0 0.0
        %2013 = vmatprep.subr.mxu0 0.0
        %2014 = vmatpush1.xpose.msra.mxu0 0.0
        %2015 = vmatprep.subr.mxu0 0.0
        %2016 = vmatpush1.xpose.msra.mxu0 0.0
        %2017 = vmatprep.subr.mxu0 0.0
        %2018 = vmatpush1.xpose.msra.mxu0 0.0
        %2019 = vmatprep.subr.mxu0 0.0
        %2020 = vmatpush1.xpose.msra.mxu0 0.0
        %2021 = vmatprep.subr.mxu0 0.0
        %2022 = vmatpush1.xpose.msra.mxu0 0.0
        %2023 = vmatprep.subr.mxu0 0.0
        %2024 = vmatpush1.xpose.msra.mxu0 0.0
        %2025 = vmatprep.subr.mxu0 0.0
        %2026 = vmatpush1.xpose.msra.mxu0 0.0
        %2027 = vmatprep.subr.mxu0 0.0
        %2028 = vmatpush1.xpose.msra.mxu0 0.0
        %2029 = vmatprep.subr.mxu0 0.0
        %2030 = vmatpush1.xpose.msra.mxu0 0.0
        %2031 = vmatprep.subr.mxu0 0.0
        %2032 = vmatpush1.xpose.msra.mxu0 0.0
        %2033 = vmatprep.subr.mxu0 0.0
        %2034 = vmatpush1.xpose.msra.mxu0 0.0
        %2035 = vmatprep.mubr.f32.mxu0 0.0
        %2036 = vmatmul.mubr.f32.gmra.mrb[0].mxu0 %v1966
        %v2037 = vpop.f32.mrb[0].mxu0
        %v2038 = vadd.f32 0.0, %v2037
        %v2039 = vpop.f32.mrb[0].mxu0
        %2040 = vdwg.mxu0
        %v2042 = vsel %vm1084, %v1045, 0
        %v2045 = vsel %vm1084, %v1928, 0
        %2047 = vmatprep.subr.mxu0 0.0
        %2048 = vmatpush1.xpose.msra.mxu0 %v2045
        %2049 = vmatprep.subr.mxu0 0.0
        %2050 = vmatpush1.xpose.msra.mxu0 0.0
        %2051 = vmatprep.subr.mxu0 0.0
        %2052 = vmatpush1.xpose.msra.mxu0 0.0
        %2053 = vmatprep.subr.mxu0 0.0
        %2054 = vmatpush1.xpose.msra.mxu0 0.0
        %2055 = vmatprep.subr.mxu0 0.0
        %2056 = vmatpush1.xpose.msra.mxu0 0.0
        %2057 = vmatprep.subr.mxu0 0.0
        %2058 = vmatpush1.xpose.msra.mxu0 0.0
        %2059 = vmatprep.subr.mxu0 0.0
        %2060 = vmatpush1.xpose.msra.mxu0 0.0
        %2061 = vmatprep.subr.mxu0 0.0
        %2062 = vmatpush1.xpose.msra.mxu0 0.0
        %2063 = vmatprep.subr.mxu0 0.0
        %2064 = vmatpush1.xpose.msra.mxu0 0.0
        %2065 = vmatprep.subr.mxu0 0.0
        %2066 = vmatpush1.xpose.msra.mxu0 0.0
        %2067 = vmatprep.subr.mxu0 0.0
        %2068 = vmatpush1.xpose.msra.mxu0 0.0
        %2069 = vmatprep.subr.mxu0 0.0
        %2070 = vmatpush1.xpose.msra.mxu0 0.0
        %2071 = vmatprep.subr.mxu0 0.0
        %2072 = vmatpush1.xpose.msra.mxu0 0.0
        %2073 = vmatprep.subr.mxu0 0.0
        %2074 = vmatpush1.xpose.msra.mxu0 0.0
        %2075 = vmatprep.subr.mxu0 0.0
        %2076 = vmatpush1.xpose.msra.mxu0 0.0
        %2077 = vmatprep.subr.mxu0 0.0
        %2078 = vmatpush1.xpose.msra.mxu0 0.0
        %2079 = vmatprep.subr.mxu0 0.0
        %2080 = vmatpush1.xpose.msra.mxu0 0.0
        %2081 = vmatprep.subr.mxu0 0.0
        %2082 = vmatpush1.xpose.msra.mxu0 0.0
        %2083 = vmatprep.subr.mxu0 0.0
        %2084 = vmatpush1.xpose.msra.mxu0 0.0
        %2085 = vmatprep.subr.mxu0 0.0
        %2086 = vmatpush1.xpose.msra.mxu0 0.0
        %2087 = vmatprep.subr.mxu0 0.0
        %2088 = vmatpush1.xpose.msra.mxu0 0.0
        %2089 = vmatprep.subr.mxu0 0.0
        %2090 = vmatpush1.xpose.msra.mxu0 0.0
        %2091 = vmatprep.subr.mxu0 0.0
        %2092 = vmatpush1.xpose.msra.mxu0 0.0
        %2093 = vmatprep.subr.mxu0 0.0
        %2094 = vmatpush1.xpose.msra.mxu0 0.0
        %2095 = vmatprep.subr.mxu0 0.0
        %2096 = vmatpush1.xpose.msra.mxu0 0.0
        %2097 = vmatprep.subr.mxu0 0.0
        %2098 = vmatpush1.xpose.msra.mxu0 0.0
        %2099 = vmatprep.subr.mxu0 0.0
        %2100 = vmatpush1.xpose.msra.mxu0 0.0
        %2101 = vmatprep.subr.mxu0 0.0
        %2102 = vmatpush1.xpose.msra.mxu0 0.0
        %2103 = vmatprep.subr.mxu0 0.0
        %2104 = vmatpush1.xpose.msra.mxu0 0.0
        %2105 = vmatprep.subr.mxu0 0.0
        %2106 = vmatpush1.xpose.msra.mxu0 0.0
        %2107 = vmatprep.subr.mxu0 0.0
        %2108 = vmatpush1.xpose.msra.mxu0 0.0
        %2109 = vmatprep.subr.mxu0 0.0
        %2110 = vmatpush1.xpose.msra.mxu0 0.0
        %2111 = vmatprep.mubr.f32.mxu0 0.0
        %2112 = vmatmul.mubr.f32.gmra.mrb[0].mxu0 %v2042
        %v2113 = vpop.f32.mrb[0].mxu0
        %v2114 = vadd.f32 0.0, %v2113
        %v2115 = vpop.f32.mrb[0].mxu0
        %2116 = vdwg.mxu0
        %v2118 = vsel %vm1084, %v1046, 0
        %v2121 = vsel %vm1084, %v1930, 0
        %2123 = vmatprep.subr.mxu0 0.0
        %2124 = vmatpush1.xpose.msra.mxu0 %v2121
        %2125 = vmatprep.subr.mxu0 0.0
        %2126 = vmatpush1.xpose.msra.mxu0 0.0
        %2127 = vmatprep.subr.mxu0 0.0
        %2128 = vmatpush1.xpose.msra.mxu0 0.0
        %2129 = vmatprep.subr.mxu0 0.0
        %2130 = vmatpush1.xpose.msra.mxu0 0.0
        %2131 = vmatprep.subr.mxu0 0.0
        %2132 = vmatpush1.xpose.msra.mxu0 0.0
        %2133 = vmatprep.subr.mxu0 0.0
        %2134 = vmatpush1.xpose.msra.mxu0 0.0
        %2135 = vmatprep.subr.mxu0 0.0
        %2136 = vmatpush1.xpose.msra.mxu0 0.0
        %2137 = vmatprep.subr.mxu0 0.0
        %2138 = vmatpush1.xpose.msra.mxu0 0.0
        %2139 = vmatprep.subr.mxu0 0.0
        %2140 = vmatpush1.xpose.msra.mxu0 0.0
        %2141 = vmatprep.subr.mxu0 0.0
        %2142 = vmatpush1.xpose.msra.mxu0 0.0
        %2143 = vmatprep.subr.mxu0 0.0
        %2144 = vmatpush1.xpose.msra.mxu0 0.0
        %2145 = vmatprep.subr.mxu0 0.0
        %2146 = vmatpush1.xpose.msra.mxu0 0.0
        %2147 = vmatprep.subr.mxu0 0.0
        %2148 = vmatpush1.xpose.msra.mxu0 0.0
        %2149 = vmatprep.subr.mxu0 0.0
        %2150 = vmatpush1.xpose.msra.mxu0 0.0
        %2151 = vmatprep.subr.mxu0 0.0
        %2152 = vmatpush1.xpose.msra.mxu0 0.0
        %2153 = vmatprep.subr.mxu0 0.0
        %2154 = vmatpush1.xpose.msra.mxu0 0.0
        %2155 = vmatprep.subr.mxu0 0.0
        %2156 = vmatpush1.xpose.msra.mxu0 0.0
        %2157 = vmatprep.subr.mxu0 0.0
        %2158 = vmatpush1.xpose.msra.mxu0 0.0
        %2159 = vmatprep.subr.mxu0 0.0
        %2160 = vmatpush1.xpose.msra.mxu0 0.0
        %2161 = vmatprep.subr.mxu0 0.0
        %2162 = vmatpush1.xpose.msra.mxu0 0.0
        %2163 = vmatprep.subr.mxu0 0.0
        %2164 = vmatpush1.xpose.msra.mxu0 0.0
        %2165 = vmatprep.subr.mxu0 0.0
        %2166 = vmatpush1.xpose.msra.mxu0 0.0
        %2167 = vmatprep.subr.mxu0 0.0
        %2168 = vmatpush1.xpose.msra.mxu0 0.0
        %2169 = vmatprep.subr.mxu0 0.0
        %2170 = vmatpush1.xpose.msra.mxu0 0.0
        %2171 = vmatprep.subr.mxu0 0.0
        %2172 = vmatpush1.xpose.msra.mxu0 0.0
        %2173 = vmatprep.subr.mxu0 0.0
        %2174 = vmatpush1.xpose.msra.mxu0 0.0
        %2175 = vmatprep.subr.mxu0 0.0
        %2176 = vmatpush1.xpose.msra.mxu0 0.0
        %2177 = vmatprep.subr.mxu0 0.0
        %2178 = vmatpush1.xpose.msra.mxu0 0.0
        %2179 = vmatprep.subr.mxu0 0.0
        %2180 = vmatpush1.xpose.msra.mxu0 0.0
        %2181 = vmatprep.subr.mxu0 0.0
        %2182 = vmatpush1.xpose.msra.mxu0 0.0
        %2183 = vmatprep.subr.mxu0 0.0
        %2184 = vmatpush1.xpose.msra.mxu0 0.0
        %2185 = vmatprep.subr.mxu0 0.0
        %2186 = vmatpush1.xpose.msra.mxu0 0.0
        %2187 = vmatprep.mubr.f32.mxu0 0.0
        %2188 = vmatmul.mubr.f32.gmra.mrb[0].mxu0 %v2118
        %v2189 = vpop.f32.mrb[0].mxu0
        %v2190 = vadd.f32 0.0, %v2189
        %v2191 = vpop.f32.mrb[0].mxu0
        %2192 = vdwg.mxu0
        %v2194 = vsel %vm1084, %v1047, 0
        %v2197 = vsel %vm1084, %v1932, 0
        %2199 = vmatprep.subr.mxu0 0.0
        %2200 = vmatpush1.xpose.msra.mxu0 %v2197
        %2201 = vmatprep.subr.mxu0 0.0
        %2202 = vmatpush1.xpose.msra.mxu0 0.0
        %2203 = vmatprep.subr.mxu0 0.0
        %2204 = vmatpush1.xpose.msra.mxu0 0.0
        %2205 = vmatprep.subr.mxu0 0.0
        %2206 = vmatpush1.xpose.msra.mxu0 0.0
        %2207 = vmatprep.subr.mxu0 0.0
        %2208 = vmatpush1.xpose.msra.mxu0 0.0
        %2209 = vmatprep.subr.mxu0 0.0
        %2210 = vmatpush1.xpose.msra.mxu0 0.0
        %2211 = vmatprep.subr.mxu0 0.0
        %2212 = vmatpush1.xpose.msra.mxu0 0.0
        %2213 = vmatprep.subr.mxu0 0.0
        %2214 = vmatpush1.xpose.msra.mxu0 0.0
        %2215 = vmatprep.subr.mxu0 0.0
        %2216 = vmatpush1.xpose.msra.mxu0 0.0
        %2217 = vmatprep.subr.mxu0 0.0
        %2218 = vmatpush1.xpose.msra.mxu0 0.0
        %2219 = vmatprep.subr.mxu0 0.0
        %2220 = vmatpush1.xpose.msra.mxu0 0.0
        %2221 = vmatprep.subr.mxu0 0.0
        %2222 = vmatpush1.xpose.msra.mxu0 0.0
        %2223 = vmatprep.subr.mxu0 0.0
        %2224 = vmatpush1.xpose.msra.mxu0 0.0
        %2225 = vmatprep.subr.mxu0 0.0
        %2226 = vmatpush1.xpose.msra.mxu0 0.0
        %2227 = vmatprep.subr.mxu0 0.0
        %2228 = vmatpush1.xpose.msra.mxu0 0.0
        %2229 = vmatprep.subr.mxu0 0.0
        %2230 = vmatpush1.xpose.msra.mxu0 0.0
        %2231 = vmatprep.subr.mxu0 0.0
        %2232 = vmatpush1.xpose.msra.mxu0 0.0
        %2233 = vmatprep.subr.mxu0 0.0
        %2234 = vmatpush1.xpose.msra.mxu0 0.0
        %2235 = vmatprep.subr.mxu0 0.0
        %2236 = vmatpush1.xpose.msra.mxu0 0.0
        %2237 = vmatprep.subr.mxu0 0.0
        %2238 = vmatpush1.xpose.msra.mxu0 0.0
        %2239 = vmatprep.subr.mxu0 0.0
        %2240 = vmatpush1.xpose.msra.mxu0 0.0
        %2241 = vmatprep.subr.mxu0 0.0
        %2242 = vmatpush1.xpose.msra.mxu0 0.0
        %2243 = vmatprep.subr.mxu0 0.0
        %2244 = vmatpush1.xpose.msra.mxu0 0.0
        %2245 = vmatprep.subr.mxu0 0.0
        %2246 = vmatpush1.xpose.msra.mxu0 0.0
        %2247 = vmatprep.subr.mxu0 0.0
        %2248 = vmatpush1.xpose.msra.mxu0 0.0
        %2249 = vmatprep.subr.mxu0 0.0
        %2250 = vmatpush1.xpose.msra.mxu0 0.0
        %2251 = vmatprep.subr.mxu0 0.0
        %2252 = vmatpush1.xpose.msra.mxu0 0.0
        %2253 = vmatprep.subr.mxu0 0.0
        %2254 = vmatpush1.xpose.msra.mxu0 0.0
        %2255 = vmatprep.subr.mxu0 0.0
        %2256 = vmatpush1.xpose.msra.mxu0 0.0
        %2257 = vmatprep.subr.mxu0 0.0
        %2258 = vmatpush1.xpose.msra.mxu0 0.0
        %2259 = vmatprep.subr.mxu0 0.0
        %2260 = vmatpush1.xpose.msra.mxu0 0.0
        %2261 = vmatprep.subr.mxu0 0.0
        %2262 = vmatpush1.xpose.msra.mxu0 0.0
        %2263 = vmatprep.mubr.f32.mxu0 0.0
        %2264 = vmatmul.mubr.f32.gmra.mrb[0].mxu0 %v2194
        %v2265 = vpop.f32.mrb[0].mxu0
        %v2266 = vadd.f32 0.0, %v2265
        %v2267 = vpop.f32.mrb[0].mxu0
        %2268 = vdwg.mxu0
        %v2270 = vsel %vm1084, %v1048, 0
        %v2273 = vsel %vm1084, %v1934, 0
        %2275 = vmatprep.subr.mxu0 0.0
        %2276 = vmatpush1.xpose.msra.mxu0 %v2273
        %2277 = vmatprep.subr.mxu0 0.0
        %2278 = vmatpush1.xpose.msra.mxu0 0.0
        %2279 = vmatprep.subr.mxu0 0.0
        %2280 = vmatpush1.xpose.msra.mxu0 0.0
        %2281 = vmatprep.subr.mxu0 0.0
        %2282 = vmatpush1.xpose.msra.mxu0 0.0
        %2283 = vmatprep.subr.mxu0 0.0
        %2284 = vmatpush1.xpose.msra.mxu0 0.0
        %2285 = vmatprep.subr.mxu0 0.0
        %2286 = vmatpush1.xpose.msra.mxu0 0.0
        %2287 = vmatprep.subr.mxu0 0.0
        %2288 = vmatpush1.xpose.msra.mxu0 0.0
        %2289 = vmatprep.subr.mxu0 0.0
        %2290 = vmatpush1.xpose.msra.mxu0 0.0
        %2291 = vmatprep.subr.mxu0 0.0
        %2292 = vmatpush1.xpose.msra.mxu0 0.0
        %2293 = vmatprep.subr.mxu0 0.0
        %2294 = vmatpush1.xpose.msra.mxu0 0.0
        %2295 = vmatprep.subr.mxu0 0.0
        %2296 = vmatpush1.xpose.msra.mxu0 0.0
        %2297 = vmatprep.subr.mxu0 0.0
        %2298 = vmatpush1.xpose.msra.mxu0 0.0
        %2299 = vmatprep.subr.mxu0 0.0
        %2300 = vmatpush1.xpose.msra.mxu0 0.0
        %2301 = vmatprep.subr.mxu0 0.0
        %2302 = vmatpush1.xpose.msra.mxu0 0.0
        %2303 = vmatprep.subr.mxu0 0.0
        %2304 = vmatpush1.xpose.msra.mxu0 0.0
        %2305 = vmatprep.subr.mxu0 0.0
        %2306 = vmatpush1.xpose.msra.mxu0 0.0
        %2307 = vmatprep.subr.mxu0 0.0
        %2308 = vmatpush1.xpose.msra.mxu0 0.0
        %2309 = vmatprep.subr.mxu0 0.0
        %2310 = vmatpush1.xpose.msra.mxu0 0.0
        %2311 = vmatprep.subr.mxu0 0.0
        %2312 = vmatpush1.xpose.msra.mxu0 0.0
        %2313 = vmatprep.subr.mxu0 0.0
        %2314 = vmatpush1.xpose.msra.mxu0 0.0
        %2315 = vmatprep.subr.mxu0 0.0
        %2316 = vmatpush1.xpose.msra.mxu0 0.0
        %2317 = vmatprep.subr.mxu0 0.0
        %2318 = vmatpush1.xpose.msra.mxu0 0.0
        %2319 = vmatprep.subr.mxu0 0.0
        %2320 = vmatpush1.xpose.msra.mxu0 0.0
        %2321 = vmatprep.subr.mxu0 0.0
        %2322 = vmatpush1.xpose.msra.mxu0 0.0
        %2323 = vmatprep.subr.mxu0 0.0
        %2324 = vmatpush1.xpose.msra.mxu0 0.0
        %2325 = vmatprep.subr.mxu0 0.0
        %2326 = vmatpush1.xpose.msra.mxu0 0.0
        %2327 = vmatprep.subr.mxu0 0.0
        %2328 = vmatpush1.xpose.msra.mxu0 0.0
        %2329 = vmatprep.subr.mxu0 0.0
        %2330 = vmatpush1.xpose.msra.mxu0 0.0
        %2331 = vmatprep.subr.mxu0 0.0
        %2332 = vmatpush1.xpose.msra.mxu0 0.0
        %2333 = vmatprep.subr.mxu0 0.0
        %2334 = vmatpush1.xpose.msra.mxu0 0.0
        %2335 = vmatprep.subr.mxu0 0.0
        %2336 = vmatpush1.xpose.msra.mxu0 0.0
        %2337 = vmatprep.subr.mxu0 0.0
        %2338 = vmatpush1.xpose.msra.mxu0 0.0
        %2339 = vmatprep.mubr.f32.mxu0 0.0
        %2340 = vmatmul.mubr.f32.gmra.mrb[0].mxu0 %v2270
        %v2341 = vpop.f32.mrb[0].mxu0
        %v2342 = vadd.f32 0.0, %v2341
        %v2343 = vpop.f32.mrb[0].mxu0
        %2344 = vdwg.mxu0
        %v2346 = vsel %vm1084, %v1049, 0
        %v2349 = vsel %vm1084, %v1936, 0
        %2351 = vmatprep.subr.mxu0 0.0
        %2352 = vmatpush1.xpose.msra.mxu0 %v2349
        %2353 = vmatprep.subr.mxu0 0.0
        %2354 = vmatpush1.xpose.msra.mxu0 0.0
        %2355 = vmatprep.subr.mxu0 0.0
        %2356 = vmatpush1.xpose.msra.mxu0 0.0
        %2357 = vmatprep.subr.mxu0 0.0
        %2358 = vmatpush1.xpose.msra.mxu0 0.0
        %2359 = vmatprep.subr.mxu0 0.0
        %2360 = vmatpush1.xpose.msra.mxu0 0.0
        %2361 = vmatprep.subr.mxu0 0.0
        %2362 = vmatpush1.xpose.msra.mxu0 0.0
        %2363 = vmatprep.subr.mxu0 0.0
        %2364 = vmatpush1.xpose.msra.mxu0 0.0
        %2365 = vmatprep.subr.mxu0 0.0
        %2366 = vmatpush1.xpose.msra.mxu0 0.0
        %2367 = vmatprep.subr.mxu0 0.0
        %2368 = vmatpush1.xpose.msra.mxu0 0.0
        %2369 = vmatprep.subr.mxu0 0.0
        %2370 = vmatpush1.xpose.msra.mxu0 0.0
        %2371 = vmatprep.subr.mxu0 0.0
        %2372 = vmatpush1.xpose.msra.mxu0 0.0
        %2373 = vmatprep.subr.mxu0 0.0
        %2374 = vmatpush1.xpose.msra.mxu0 0.0
        %2375 = vmatprep.subr.mxu0 0.0
        %2376 = vmatpush1.xpose.msra.mxu0 0.0
        %2377 = vmatprep.subr.mxu0 0.0
        %2378 = vmatpush1.xpose.msra.mxu0 0.0
        %2379 = vmatprep.subr.mxu0 0.0
        %2380 = vmatpush1.xpose.msra.mxu0 0.0
        %2381 = vmatprep.subr.mxu0 0.0
        %2382 = vmatpush1.xpose.msra.mxu0 0.0
        %2383 = vmatprep.subr.mxu0 0.0
        %2384 = vmatpush1.xpose.msra.mxu0 0.0
        %2385 = vmatprep.subr.mxu0 0.0
        %2386 = vmatpush1.xpose.msra.mxu0 0.0
        %2387 = vmatprep.subr.mxu0 0.0
        %2388 = vmatpush1.xpose.msra.mxu0 0.0
        %2389 = vmatprep.subr.mxu0 0.0
        %2390 = vmatpush1.xpose.msra.mxu0 0.0
        %2391 = vmatprep.subr.mxu0 0.0
        %2392 = vmatpush1.xpose.msra.mxu0 0.0
        %2393 = vmatprep.subr.mxu0 0.0
        %2394 = vmatpush1.xpose.msra.mxu0 0.0
        %2395 = vmatprep.subr.mxu0 0.0
        %2396 = vmatpush1.xpose.msra.mxu0 0.0
        %2397 = vmatprep.subr.mxu0 0.0
        %2398 = vmatpush1.xpose.msra.mxu0 0.0
        %2399 = vmatprep.subr.mxu0 0.0
        %2400 = vmatpush1.xpose.msra.mxu0 0.0
        %2401 = vmatprep.subr.mxu0 0.0
        %2402 = vmatpush1.xpose.msra.mxu0 0.0
        %2403 = vmatprep.subr.mxu0 0.0
        %2404 = vmatpush1.xpose.msra.mxu0 0.0
        %2405 = vmatprep.subr.mxu0 0.0
        %2406 = vmatpush1.xpose.msra.mxu0 0.0
        %2407 = vmatprep.subr.mxu0 0.0
        %2408 = vmatpush1.xpose.msra.mxu0 0.0
        %2409 = vmatprep.subr.mxu0 0.0
        %2410 = vmatpush1.xpose.msra.mxu0 0.0
        %2411 = vmatprep.subr.mxu0 0.0
        %2412 = vmatpush1.xpose.msra.mxu0 0.0
        %2413 = vmatprep.subr.mxu0 0.0
        %2414 = vmatpush1.xpose.msra.mxu0 0.0
        %2415 = vmatprep.mubr.f32.mxu0 0.0
        %2416 = vmatmul.mubr.f32.gmra.mrb[0].mxu0 %v2346
        %v2417 = vpop.f32.mrb[0].mxu0
        %v2418 = vadd.f32 0.0, %v2417
        %v2419 = vpop.f32.mrb[0].mxu0
        %2420 = vdwg.mxu0
        %v2422 = vsel %vm1084, %v1050, 0
        %v2425 = vsel %vm1084, %v1938, 0
        %2427 = vmatprep.subr.mxu0 0.0
        %2428 = vmatpush1.xpose.msra.mxu0 %v2425
        %2429 = vmatprep.subr.mxu0 0.0
        %2430 = vmatpush1.xpose.msra.mxu0 0.0
        %2431 = vmatprep.subr.mxu0 0.0
        %2432 = vmatpush1.xpose.msra.mxu0 0.0
        %2433 = vmatprep.subr.mxu0 0.0
        %2434 = vmatpush1.xpose.msra.mxu0 0.0
        %2435 = vmatprep.subr.mxu0 0.0
        %2436 = vmatpush1.xpose.msra.mxu0 0.0
        %2437 = vmatprep.subr.mxu0 0.0
        %2438 = vmatpush1.xpose.msra.mxu0 0.0
        %2439 = vmatprep.subr.mxu0 0.0
        %2440 = vmatpush1.xpose.msra.mxu0 0.0
        %2441 = vmatprep.subr.mxu0 0.0
        %2442 = vmatpush1.xpose.msra.mxu0 0.0
        %2443 = vmatprep.subr.mxu0 0.0
        %2444 = vmatpush1.xpose.msra.mxu0 0.0
        %2445 = vmatprep.subr.mxu0 0.0
        %2446 = vmatpush1.xpose.msra.mxu0 0.0
        %2447 = vmatprep.subr.mxu0 0.0
        %2448 = vmatpush1.xpose.msra.mxu0 0.0
        %2449 = vmatprep.subr.mxu0 0.0
        %2450 = vmatpush1.xpose.msra.mxu0 0.0
        %2451 = vmatprep.subr.mxu0 0.0
        %2452 = vmatpush1.xpose.msra.mxu0 0.0
        %2453 = vmatprep.subr.mxu0 0.0
        %2454 = vmatpush1.xpose.msra.mxu0 0.0
        %2455 = vmatprep.subr.mxu0 0.0
        %2456 = vmatpush1.xpose.msra.mxu0 0.0
        %2457 = vmatprep.subr.mxu0 0.0
        %2458 = vmatpush1.xpose.msra.mxu0 0.0
        %2459 = vmatprep.subr.mxu0 0.0
        %2460 = vmatpush1.xpose.msra.mxu0 0.0
        %2461 = vmatprep.subr.mxu0 0.0
        %2462 = vmatpush1.xpose.msra.mxu0 0.0
        %2463 = vmatprep.subr.mxu0 0.0
        %2464 = vmatpush1.xpose.msra.mxu0 0.0
        %2465 = vmatprep.subr.mxu0 0.0
        %2466 = vmatpush1.xpose.msra.mxu0 0.0
        %2467 = vmatprep.subr.mxu0 0.0
        %2468 = vmatpush1.xpose.msra.mxu0 0.0
        %2469 = vmatprep.subr.mxu0 0.0
        %2470 = vmatpush1.xpose.msra.mxu0 0.0
        %2471 = vmatprep.subr.mxu0 0.0
        %2472 = vmatpush1.xpose.msra.mxu0 0.0
        %2473 = vmatprep.subr.mxu0 0.0
        %2474 = vmatpush1.xpose.msra.mxu0 0.0
        %2475 = vmatprep.subr.mxu0 0.0
        %2476 = vmatpush1.xpose.msra.mxu0 0.0
        %2477 = vmatprep.subr.mxu0 0.0
        %2478 = vmatpush1.xpose.msra.mxu0 0.0
        %2479 = vmatprep.subr.mxu0 0.0
        %2480 = vmatpush1.xpose.msra.mxu0 0.0
        %2481 = vmatprep.subr.mxu0 0.0
        %2482 = vmatpush1.xpose.msra.mxu0 0.0
        %2483 = vmatprep.subr.mxu0 0.0
        %2484 = vmatpush1.xpose.msra.mxu0 0.0
        %2485 = vmatprep.subr.mxu0 0.0
        %2486 = vmatpush1.xpose.msra.mxu0 0.0
        %2487 = vmatprep.subr.mxu0 0.0
        %2488 = vmatpush1.xpose.msra.mxu0 0.0
        %2489 = vmatprep.subr.mxu0 0.0
        %2490 = vmatpush1.xpose.msra.mxu0 0.0
        %2491 = vmatprep.mubr.f32.mxu0 0.0
        %2492 = vmatmul.mubr.f32.gmra.mrb[0].mxu0 %v2422
        %v2493 = vpop.f32.mrb[0].mxu0
        %v2494 = vadd.f32 0.0, %v2493
        %v2495 = vpop.f32.mrb[0].mxu0
        %2496 = vdwg.mxu0
        %v2498 = vsel %vm1084, %v1051, 0
        %v2501 = vsel %vm1084, %v1940, 0
        %2503 = vmatprep.subr.mxu0 0.0
        %2504 = vmatpush1.xpose.msra.mxu0 %v2501
        %2505 = vmatprep.subr.mxu0 0.0
        %2506 = vmatpush1.xpose.msra.mxu0 0.0
        %2507 = vmatprep.subr.mxu0 0.0
        %2508 = vmatpush1.xpose.msra.mxu0 0.0
        %2509 = vmatprep.subr.mxu0 0.0
        %2510 = vmatpush1.xpose.msra.mxu0 0.0
        %2511 = vmatprep.subr.mxu0 0.0
        %2512 = vmatpush1.xpose.msra.mxu0 0.0
        %2513 = vmatprep.subr.mxu0 0.0
        %2514 = vmatpush1.xpose.msra.mxu0 0.0
        %2515 = vmatprep.subr.mxu0 0.0
        %2516 = vmatpush1.xpose.msra.mxu0 0.0
        %2517 = vmatprep.subr.mxu0 0.0
        %2518 = vmatpush1.xpose.msra.mxu0 0.0
        %2519 = vmatprep.subr.mxu0 0.0
        %2520 = vmatpush1.xpose.msra.mxu0 0.0
        %2521 = vmatprep.subr.mxu0 0.0
        %2522 = vmatpush1.xpose.msra.mxu0 0.0
        %2523 = vmatprep.subr.mxu0 0.0
        %2524 = vmatpush1.xpose.msra.mxu0 0.0
        %2525 = vmatprep.subr.mxu0 0.0
        %2526 = vmatpush1.xpose.msra.mxu0 0.0
        %2527 = vmatprep.subr.mxu0 0.0
        %2528 = vmatpush1.xpose.msra.mxu0 0.0
        %2529 = vmatprep.subr.mxu0 0.0
        %2530 = vmatpush1.xpose.msra.mxu0 0.0
        %2531 = vmatprep.subr.mxu0 0.0
        %2532 = vmatpush1.xpose.msra.mxu0 0.0
        %2533 = vmatprep.subr.mxu0 0.0
        %2534 = vmatpush1.xpose.msra.mxu0 0.0
        %2535 = vmatprep.subr.mxu0 0.0
        %2536 = vmatpush1.xpose.msra.mxu0 0.0
        %2537 = vmatprep.subr.mxu0 0.0
        %2538 = vmatpush1.xpose.msra.mxu0 0.0
        %2539 = vmatprep.subr.mxu0 0.0
        %2540 = vmatpush1.xpose.msra.mxu0 0.0
        %2541 = vmatprep.subr.mxu0 0.0
        %2542 = vmatpush1.xpose.msra.mxu0 0.0
        %2543 = vmatprep.subr.mxu0 0.0
        %2544 = vmatpush1.xpose.msra.mxu0 0.0
        %2545 = vmatprep.subr.mxu0 0.0
        %2546 = vmatpush1.xpose.msra.mxu0 0.0
        %2547 = vmatprep.subr.mxu0 0.0
        %2548 = vmatpush1.xpose.msra.mxu0 0.0
        %2549 = vmatprep.subr.mxu0 0.0
        %2550 = vmatpush1.xpose.msra.mxu0 0.0
        %2551 = vmatprep.subr.mxu0 0.0
        %2552 = vmatpush1.xpose.msra.mxu0 0.0
        %2553 = vmatprep.subr.mxu0 0.0
        %2554 = vmatpush1.xpose.msra.mxu0 0.0
        %2555 = vmatprep.subr.mxu0 0.0
        %2556 = vmatpush1.xpose.msra.mxu0 0.0
        %2557 = vmatprep.subr.mxu0 0.0
        %2558 = vmatpush1.xpose.msra.mxu0 0.0
        %2559 = vmatprep.subr.mxu0 0.0
        %2560 = vmatpush1.xpose.msra.mxu0 0.0
        %2561 = vmatprep.subr.mxu0 0.0
        %2562 = vmatpush1.xpose.msra.mxu0 0.0
        %2563 = vmatprep.subr.mxu0 0.0
        %2564 = vmatpush1.xpose.msra.mxu0 0.0
        %2565 = vmatprep.subr.mxu0 0.0
        %2566 = vmatpush1.xpose.msra.mxu0 0.0
        %2567 = vmatprep.mubr.f32.mxu0 0.0
        %2568 = vmatmul.mubr.f32.gmra.mrb[0].mxu0 %v2498
        %v2569 = vpop.f32.mrb[0].mxu0
        %v2570 = vadd.f32 0.0, %v2569
        %v2571 = vpop.f32.mrb[0].mxu0
        %2572 = vdwg.mxu0
        %v2573 = vrcp.pop %v1943
        %v2574 = vrcp.pop %v1946
        %v2575 = vrcp.pop %v1949
        %v2576 = vrcp.pop %v1952
        %v2577 = vrcp.pop %v1955
        %v2578 = vrcp.pop %v1958
        %v2579 = vrcp.pop %v1961
        %v2580 = vrcp.pop %v1964
        %v2589 = vlaneseq
        %v2590 = vand.u32 %v2589, 127
        %v2591 = vlaneseq
        %v2592 = vshrl.u32 %v2591, 7
        %v2593 = vsub.s32 %v2590, %v2592
        %v2594 = vrot.slane %v2573, %v2593
        %v2595 = vlaneseq
        %v2596 = vshrl.u32 %v2595, 7
        %v2597 = vsub.s32 %v2590, %v2596
        %v2598 = vrot.slane %v2574, %v2597
        %v2599 = vlaneseq
        %v2600 = vshrl.u32 %v2599, 7
        %v2601 = vsub.s32 %v2590, %v2600
        %v2602 = vrot.slane %v2575, %v2601
        %v2603 = vlaneseq
        %v2604 = vshrl.u32 %v2603, 7
        %v2605 = vsub.s32 %v2590, %v2604
        %v2606 = vrot.slane %v2576, %v2605
        %v2607 = vlaneseq
        %v2608 = vshrl.u32 %v2607, 7
        %v2609 = vsub.s32 %v2590, %v2608
        %v2610 = vrot.slane %v2577, %v2609
        %v2611 = vlaneseq
        %v2612 = vshrl.u32 %v2611, 7
        %v2613 = vsub.s32 %v2590, %v2612
        %v2614 = vrot.slane %v2578, %v2613
        %v2615 = vlaneseq
        %v2616 = vshrl.u32 %v2615, 7
        %v2617 = vsub.s32 %v2590, %v2616
        %v2618 = vrot.slane %v2579, %v2617
        %v2619 = vlaneseq
        %v2620 = vshrl.u32 %v2619, 7
        %v2621 = vsub.s32 %v2590, %v2620
        %v2622 = vrot.slane %v2580, %v2621
        %vm2623 = vcmask 1042434
        %v2624 = vsel %vm2623, %v2594, %v2594
        %vm2625 = vcmask 1043459
        %v2626 = vsel %vm2625, %v2594, %v2624
        %vm2627 = vcmask 1044484
        %v2628 = vsel %vm2627, %v2594, %v2626
        %vm2629 = vcmask 1045509
        %v2630 = vsel %vm2629, %v2594, %v2628
        %vm2631 = vcmask 1046534
        %v2632 = vsel %vm2631, %v2594, %v2630
        %vm2633 = vcmask 1047559
        %v2634 = vsel %vm2633, %v2594, %v2632
        %v2635 = vsel %vm2623, %v2598, %v2598
        %v2636 = vsel %vm2625, %v2598, %v2635
        %v2637 = vsel %vm2627, %v2598, %v2636
        %v2638 = vsel %vm2629, %v2598, %v2637
        %v2639 = vsel %vm2631, %v2598, %v2638
        %v2640 = vsel %vm2633, %v2598, %v2639
        %v2641 = vsel %vm2623, %v2602, %v2602
        %v2642 = vsel %vm2625, %v2602, %v2641
        %v2643 = vsel %vm2627, %v2602, %v2642
        %v2644 = vsel %vm2629, %v2602, %v2643
        %v2645 = vsel %vm2631, %v2602, %v2644
        %v2646 = vsel %vm2633, %v2602, %v2645
        %v2647 = vsel %vm2623, %v2606, %v2606
        %v2648 = vsel %vm2625, %v2606, %v2647
        %v2649 = vsel %vm2627, %v2606, %v2648
        %v2650 = vsel %vm2629, %v2606, %v2649
        %v2651 = vsel %vm2631, %v2606, %v2650
        %v2652 = vsel %vm2633, %v2606, %v2651
        %v2653 = vsel %vm2623, %v2610, %v2610
        %v2654 = vsel %vm2625, %v2610, %v2653
        %v2655 = vsel %vm2627, %v2610, %v2654
        %v2656 = vsel %vm2629, %v2610, %v2655
        %v2657 = vsel %vm2631, %v2610, %v2656
        %v2658 = vsel %vm2633, %v2610, %v2657
        %v2659 = vsel %vm2623, %v2614, %v2614
        %v2660 = vsel %vm2625, %v2614, %v2659
        %v2661 = vsel %vm2627, %v2614, %v2660
        %v2662 = vsel %vm2629, %v2614, %v2661
        %v2663 = vsel %vm2631, %v2614, %v2662
        %v2664 = vsel %vm2633, %v2614, %v2663
        %v2665 = vsel %vm2623, %v2618, %v2618
        %v2666 = vsel %vm2625, %v2618, %v2665
        %v2667 = vsel %vm2627, %v2618, %v2666
        %v2668 = vsel %vm2629, %v2618, %v2667
        %v2669 = vsel %vm2631, %v2618, %v2668
        %v2670 = vsel %vm2633, %v2618, %v2669
        %v2671 = vsel %vm2623, %v2622, %v2622
        %v2672 = vsel %vm2625, %v2622, %v2671
        %v2673 = vsel %vm2627, %v2622, %v2672
        %v2674 = vsel %vm2629, %v2622, %v2673
        %v2675 = vsel %vm2631, %v2622, %v2674
        %v2676 = vsel %vm2633, %v2622, %v2675
        %v2685 = vmul.f32 %v2038, %v2634
        %v2686 = vmul.f32 %v2114, %v2640
        %v2687 = vmul.f32 %v2190, %v2646
        %v2688 = vmul.f32 %v2266, %v2652
        %v2689 = vmul.f32 %v2342, %v2658
        %v2690 = vmul.f32 %v2418, %v2664
        %v2691 = vmul.f32 %v2494, %v2670
        %v2692 = vmul.f32 %v2570, %v2676
        %v2693 = vld [vmem:[#allocation7] sm:$0xff]
        %v2694 = vld [vmem:[#allocation7 + $0x8] sm:$0xff]
        %v2695 = vld [vmem:[#allocation7 + $0x10] sm:$0xff]
        %v2696 = vld [vmem:[#allocation7 + $0x18] sm:$0xff]
        %v2697 = vld [vmem:[#allocation7 + $0x20] sm:$0xff]
        %v2698 = vld [vmem:[#allocation7 + $0x28] sm:$0xff]
        %v2699 = vld [vmem:[#allocation7 + $0x30] sm:$0xff]
        %v2700 = vld [vmem:[#allocation7 + $0x38] sm:$0xff]
        %v2701 = vld [vmem:[%s7] sm:$0x1]
        %v2703 = vlaneseq
        %v2704 = vshrl.u32 %v2703, 7
        %v2705 = vsub.s32 0, %v2704
        %v2706 = vrot.slane %v2701, %v2705
        %2708 = vxpose.xlu0.b32.start [1/16] %v2685, 128
        %2709 = vxpose.xlu0.b32.cont [2/16] %v2686, 128
        %2710 = vxpose.xlu0.b32.cont [3/16] %v2687, 128
        %2711 = vxpose.xlu0.b32.cont [4/16] %v2688, 128
        %2712 = vxpose.xlu0.b32.cont [5/16] %v2689, 128
        %2713 = vxpose.xlu0.b32.cont [6/16] %v2690, 128
        %2714 = vxpose.xlu0.b32.cont [7/16] %v2691, 128
        %2715 = vxpose.xlu0.b32.cont [8/16] %v2692, 128
        %2716 = vxpose.xlu0.b32.cont [9/16] 0.0, 128
        %2717 = vxpose.xlu0.b32.cont [10/16] 0.0, 128
        %2718 = vxpose.xlu0.b32.cont [11/16] 0.0, 128
        %2719 = vxpose.xlu0.b32.cont [12/16] 0.0, 128
        %2720 = vxpose.xlu0.b32.cont [13/16] 0.0, 128
        %2721 = vxpose.xlu0.b32.cont [14/16] 0.0, 128
        %2722 = vxpose.xlu0.b32.cont [15/16] 0.0, 128
        %2723 = vxpose.xlu0.b32.end [16/16] 0.0, 128
        %v2724 = vpop.trf.xlu0
        %v2725 = vpop.trf.xlu0
        %v2726 = vpop.trf.xlu0
        %v2727 = vpop.trf.xlu0
        %v2728 = vpop.trf.xlu0
        %v2729 = vpop.trf.xlu0
        %v2730 = vpop.trf.xlu0
        %v2731 = vpop.trf.xlu0
        %v2732 = vpop.trf.xlu0
        %v2733 = vpop.trf.xlu0
        %v2734 = vpop.trf.xlu0
        %v2735 = vpop.trf.xlu0
        %v2736 = vpop.trf.xlu0
        %v2737 = vpop.trf.xlu0
        %v2738 = vpop.trf.xlu0
        %v2739 = vpop.trf.xlu0
        %v2741 = vsel %vm864, %v2724, 0
        %v2744 = vsel %vm864, %v2693, 0
        %v2747 = vsel %vm864, %v2694, 0
        %v2750 = vsel %vm864, %v2695, 0
        %v2753 = vsel %vm864, %v2696, 0
        %v2756 = vsel %vm864, %v2697, 0
        %v2759 = vsel %vm864, %v2698, 0
        %v2762 = vsel %vm864, %v2699, 0
        %v2765 = vsel %vm864, %v2700, 0
        %2767 = vmatprep.subr.mxu0 0.0
        %2768 = vmatpush1.xpose.msra.mxu0 %v2744
        %2769 = vmatprep.subr.mxu0 0.0
        %2770 = vmatpush1.xpose.msra.mxu0 %v2747
        %2771 = vmatprep.subr.mxu0 0.0
        %2772 = vmatpush1.xpose.msra.mxu0 %v2750
        %2773 = vmatprep.subr.mxu0 0.0
        %2774 = vmatpush1.xpose.msra.mxu0 %v2753
        %2775 = vmatprep.subr.mxu0 0.0
        %2776 = vmatpush1.xpose.msra.mxu0 %v2756
        %2777 = vmatprep.subr.mxu0 0.0
        %2778 = vmatpush1.xpose.msra.mxu0 %v2759
        %2779 = vmatprep.subr.mxu0 0.0
        %2780 = vmatpush1.xpose.msra.mxu0 %v2762
        %2781 = vmatprep.subr.mxu0 0.0
        %2782 = vmatpush1.xpose.msra.mxu0 %v2765
        %2783 = vmatprep.subr.mxu0 0.0
        %2784 = vmatpush1.xpose.msra.mxu0 0.0
        %2785 = vmatprep.subr.mxu0 0.0
        %2786 = vmatpush1.xpose.msra.mxu0 0.0
        %2787 = vmatprep.subr.mxu0 0.0
        %2788 = vmatpush1.xpose.msra.mxu0 0.0
        %2789 = vmatprep.subr.mxu0 0.0
        %2790 = vmatpush1.xpose.msra.mxu0 0.0
        %2791 = vmatprep.subr.mxu0 0.0
        %2792 = vmatpush1.xpose.msra.mxu0 0.0
        %2793 = vmatprep.subr.mxu0 0.0
        %2794 = vmatpush1.xpose.msra.mxu0 0.0
        %2795 = vmatprep.subr.mxu0 0.0
        %2796 = vmatpush1.xpose.msra.mxu0 0.0
        %2797 = vmatprep.subr.mxu0 0.0
        %2798 = vmatpush1.xpose.msra.mxu0 0.0
        %2799 = vmatprep.subr.mxu0 0.0
        %2800 = vmatpush1.xpose.msra.mxu0 0.0
        %2801 = vmatprep.subr.mxu0 0.0
        %2802 = vmatpush1.xpose.msra.mxu0 0.0
        %2803 = vmatprep.subr.mxu0 0.0
        %2804 = vmatpush1.xpose.msra.mxu0 0.0
        %2805 = vmatprep.subr.mxu0 0.0
        %2806 = vmatpush1.xpose.msra.mxu0 0.0
        %2807 = vmatprep.subr.mxu0 0.0
        %2808 = vmatpush1.xpose.msra.mxu0 0.0
        %2809 = vmatprep.subr.mxu0 0.0
        %2810 = vmatpush1.xpose.msra.mxu0 0.0
        %2811 = vmatprep.subr.mxu0 0.0
        %2812 = vmatpush1.xpose.msra.mxu0 0.0
        %2813 = vmatprep.subr.mxu0 0.0
        %2814 = vmatpush1.xpose.msra.mxu0 0.0
        %2815 = vmatprep.subr.mxu0 0.0
        %2816 = vmatpush1.xpose.msra.mxu0 0.0
        %2817 = vmatprep.subr.mxu0 0.0
        %2818 = vmatpush1.xpose.msra.mxu0 0.0
        %2819 = vmatprep.subr.mxu0 0.0
        %2820 = vmatpush1.xpose.msra.mxu0 0.0
        %2821 = vmatprep.subr.mxu0 0.0
        %2822 = vmatpush1.xpose.msra.mxu0 0.0
        %2823 = vmatprep.subr.mxu0 0.0
        %2824 = vmatpush1.xpose.msra.mxu0 0.0
        %2825 = vmatprep.subr.mxu0 0.0
        %2826 = vmatpush1.xpose.msra.mxu0 0.0
        %2827 = vmatprep.subr.mxu0 0.0
        %2828 = vmatpush1.xpose.msra.mxu0 0.0
        %2829 = vmatprep.subr.mxu0 0.0
        %2830 = vmatpush1.xpose.msra.mxu0 0.0
        %2831 = vmatprep.mubr.f32.mxu0 0.0
        %2832 = vmatmul.mubr.f32.gmra.mrb[0].mxu0 %v2741
        %v2833 = vpop.f32.mrb[0].mxu0
        %v2834 = vadd.f32 %v2706, %v2833
        %v2835 = vpop.f32.mrb[0].mxu0
        %2836 = vdwg.mxu0
        %v2837 = vadd.f32 %v861, %v2834
        %v2838 = vld [vmem:[%s8] sm:$0x1]
        %v2839 = vld [vmem:[%s9] sm:$0x1]
        %v2840 = vsel %vm864, %v2837, 0.0
        %2841 = vadd.xlane.f32.xlu0 %v2840
        %v2842 = vpop.xlane.xlu0 %2841
        %v2843 = vmul.f32 %v2842, %v868
        %v2844 = vmul.f32 %v2837, %v2837
        %v2845 = vsel %vm864, %v2844, 0.0
        %2846 = vadd.xlane.f32.xlu0 %v2845
        %v2847 = vpop.xlane.xlu0 %2846
        %v2848 = vmul.f32 %v2847, %v868
        %v2849 = vmul.f32 %v2843, %v2843
        %v2850 = vsub.f32 %v2848, %v2849
        %v2851 = vmax.f32 %v2850, 0.0
        %v2852 = vsub.f32 %v2837, %v2843
        %v2853 = vadd.f32 %v2851, 1e-05
        %v2854 = vrsqrt.pop %v2853
        %v2855 = vmul.f32 %v2852, %v2854
        %v2857 = vlaneseq
        %v2858 = vshrl.u32 %v2857, 7
        %v2859 = vsub.s32 0, %v2858
        %v2860 = vrot.slane %v2838, %v2859
        %v2862 = vmul.f32 %v2855, %v2860
        %v2864 = vlaneseq
        %v2865 = vshrl.u32 %v2864, 7
        %v2866 = vsub.s32 0, %v2865
        %v2867 = vrot.slane %v2839, %v2866
        %v2869 = vadd.f32 %v2862, %v2867
        %v2870 = vld [vmem:[#allocation9] sm:$0xff]
        %v2871 = vld [vmem:[#allocation9 + $0x8] sm:$0xff]
        %v2872 = vld [vmem:[#allocation9 + $0x10] sm:$0xff]
        %v2873 = vld [vmem:[#allocation9 + $0x18] sm:$0xff]
        %v2874 = vld [vmem:[#allocation9 + $0x20] sm:$0xff]
        %v2875 = vld [vmem:[#allocation9 + $0x28] sm:$0xff]
        %v2876 = vld [vmem:[#allocation9 + $0x30] sm:$0xff]
        %v2877 = vld [vmem:[#allocation9 + $0x38] sm:$0xff]
        %v2878 = vld [vmem:[%s11] sm:$0x1]
        %v2880 = vlaneseq
        %v2881 = vshrl.u32 %v2880, 7
        %v2882 = vsub.s32 0, %v2881
        %v2883 = vrot.slane %v2878, %v2882
        %v2886 = vsel %vm864, %v2869, 0
        %2888 = vmatprep.subr.mxu0 0.0
        %2889 = vmatpush1.msra.mxu0 %v2870
        %2890 = vmatprep.subr.mxu0 0.0
        %2891 = vmatpush1.msra.mxu0 %v2871
        %2892 = vmatprep.subr.mxu0 0.0
        %2893 = vmatpush1.msra.mxu0 %v2872
        %2894 = vmatprep.subr.mxu0 0.0
        %2895 = vmatpush1.msra.mxu0 %v2873
        %2896 = vmatprep.subr.mxu0 0.0
        %2897 = vmatpush1.msra.mxu0 %v2874
        %2898 = vmatprep.subr.mxu0 0.0
        %2899 = vmatpush1.msra.mxu0 %v2875
        %2900 = vmatprep.subr.mxu0 0.0
        %2901 = vmatpush1.msra.mxu0 %v2876
        %2902 = vmatprep.subr.mxu0 0.0
        %2903 = vmatpush1.msra.mxu0 %v2877
        %2904 = vmatprep.subr.mxu0 0.0
        %2905 = vmatpush1.msra.mxu0 0.0
        %2906 = vmatprep.subr.mxu0 0.0
        %2907 = vmatpush1.msra.mxu0 0.0
        %2908 = vmatprep.subr.mxu0 0.0
        %2909 = vmatpush1.msra.mxu0 0.0
        %2910 = vmatprep.subr.mxu0 0.0
        %2911 = vmatpush1.msra.mxu0 0.0
        %2912 = vmatprep.subr.mxu0 0.0
        %2913 = vmatpush1.msra.mxu0 0.0
        %2914 = vmatprep.subr.mxu0 0.0
        %2915 = vmatpush1.msra.mxu0 0.0
        %2916 = vmatprep.subr.mxu0 0.0
        %2917 = vmatpush1.msra.mxu0 0.0
        %2918 = vmatprep.subr.mxu0 0.0
        %2919 = vmatpush1.msra.mxu0 0.0
        %2920 = vmatprep.subr.mxu0 0.0
        %2921 = vmatpush1.msra.mxu0 0.0
        %2922 = vmatprep.subr.mxu0 0.0
        %2923 = vmatpush1.msra.mxu0 0.0
        %2924 = vmatprep.subr.mxu0 0.0
        %2925 = vmatpush1.msra.mxu0 0.0
        %2926 = vmatprep.subr.mxu0 0.0
        %2927 = vmatpush1.msra.mxu0 0.0
        %2928 = vmatprep.subr.mxu0 0.0
        %2929 = vmatpush1.msra.mxu0 0.0
        %2930 = vmatprep.subr.mxu0 0.0
        %2931 = vmatpush1.msra.mxu0 0.0
        %2932 = vmatprep.subr.mxu0 0.0
        %2933 = vmatpush1.msra.mxu0 0.0
        %2934 = vmatprep.subr.mxu0 0.0
        %2935 = vmatpush1.msra.mxu0 0.0
        %2936 = vmatprep.subr.mxu0 0.0
        %2937 = vmatpush1.msra.mxu0 0.0
        %2938 = vmatprep.subr.mxu0 0.0
        %2939 = vmatpush1.msra.mxu0 0.0
        %2940 = vmatprep.subr.mxu0 0.0
        %2941 = vmatpush1.msra.mxu0 0.0
        %2942 = vmatprep.subr.mxu0 0.0
        %2943 = vmatpush1.msra.mxu0 0.0
        %2944 = vmatprep.subr.mxu0 0.0
        %2945 = vmatpush1.msra.mxu0 0.0
        %2946 = vmatprep.subr.mxu0 0.0
        %2947 = vmatpush1.msra.mxu0 0.0
        %2948 = vmatprep.subr.mxu0 0.0
        %2949 = vmatpush1.msra.mxu0 0.0
        %2950 = vmatprep.subr.mxu0 0.0
        %2951 = vmatpush1.msra.mxu0 0.0
        %2952 = vmatprep.mubr.f32.mxu0 0.0
        %2953 = vmatmul.mubr.f32.gmra.mrb[0].mxu0 %v2886
        %v2954 = vpop.f32.mrb[0].mxu0
        %v2955 = vadd.f32 %v2883, %v2954
        %v2956 = vpop.f32.mrb[0].mxu0
        %2957 = vdwg.mxu0
        %v2958 = vmul.f32 %v2955, 0.5
        %v2959 = vmul.f32 %v2955, 0.70710677
        %v2960 = verf.f32.pop %v2959
        %v2961 = vadd.f32 %v2960, 1.0
        %v2962 = vmul.f32 %v2958, %v2961
        %v2963 = vld [vmem:[%s12] sm:$0xff]
        %v2964 = vld [vmem:[%s12 + $0x8] sm:$0xff]
        %v2965 = vld [vmem:[%s12 + $0x10] sm:$0xff]
        %v2966 = vld [vmem:[%s12 + $0x18] sm:$0xff]
        %v2967 = vld [vmem:[%s12 + $0x20] sm:$0xff]
        %v2968 = vld [vmem:[%s12 + $0x28] sm:$0xff]
        %v2969 = vld [vmem:[%s12 + $0x30] sm:$0xff]
        %v2970 = vld [vmem:[%s12 + $0x38] sm:$0xff]
        %v2971 = vld [vmem:[%s12 + $0x40] sm:$0xff]
        %v2972 = vld [vmem:[%s12 + $0x48] sm:$0xff]
        %v2973 = vld [vmem:[%s12 + $0x50] sm:$0xff]
        %v2974 = vld [vmem:[%s12 + $0x58] sm:$0xff]
        %v2975 = vld [vmem:[%s12 + $0x60] sm:$0xff]
        %v2976 = vld [vmem:[%s12 + $0x68] sm:$0xff]
        %v2977 = vld [vmem:[%s12 + $0x70] sm:$0xff]
        %v2978 = vld [vmem:[%s12 + $0x78] sm:$0xff]
        %v2979 = vld [vmem:[%s13] sm:$0x1]
        %v2981 = vlaneseq
        %v2982 = vshrl.u32 %v2981, 7
        %v2983 = vsub.s32 0, %v2982
        %v2984 = vrot.slane %v2979, %v2983
        %2986 = vmatprep.subr.mxu0 0.0
        %2987 = vmatpush1.msra.mxu0 %v2963
        %2988 = vmatprep.subr.mxu0 0.0
        %2989 = vmatpush1.msra.mxu0 %v2964
        %2990 = vmatprep.subr.mxu0 0.0
        %2991 = vmatpush1.msra.mxu0 %v2965
        %2992 = vmatprep.subr.mxu0 0.0
        %2993 = vmatpush1.msra.mxu0 %v2966
        %2994 = vmatprep.subr.mxu0 0.0
        %2995 = vmatpush1.msra.mxu0 %v2967
        %2996 = vmatprep.subr.mxu0 0.0
        %2997 = vmatpush1.msra.mxu0 %v2968
        %2998 = vmatprep.subr.mxu0 0.0
        %2999 = vmatpush1.msra.mxu0 %v2969
        %3000 = vmatprep.subr.mxu0 0.0
        %3001 = vmatpush1.msra.mxu0 %v2970
        %3002 = vmatprep.subr.mxu0 0.0
        %3003 = vmatpush1.msra.mxu0 %v2971
        %3004 = vmatprep.subr.mxu0 0.0
        %3005 = vmatpush1.msra.mxu0 %v2972
        %3006 = vmatprep.subr.mxu0 0.0
        %3007 = vmatpush1.msra.mxu0 %v2973
        %3008 = vmatprep.subr.mxu0 0.0
        %3009 = vmatpush1.msra.mxu0 %v2974
        %3010 = vmatprep.subr.mxu0 0.0
        %3011 = vmatpush1.msra.mxu0 %v2975
        %3012 = vmatprep.subr.mxu0 0.0
        %3013 = vmatpush1.msra.mxu0 %v2976
        %3014 = vmatprep.subr.mxu0 0.0
        %3015 = vmatpush1.msra.mxu0 %v2977
        %3016 = vmatprep.subr.mxu0 0.0
        %3017 = vmatpush1.msra.mxu0 %v2978
        %3018 = vmatprep.subr.mxu0 0.0
        %3019 = vmatpush1.msra.mxu0 0.0
        %3020 = vmatprep.subr.mxu0 0.0
        %3021 = vmatpush1.msra.mxu0 0.0
        %3022 = vmatprep.subr.mxu0 0.0
        %3023 = vmatpush1.msra.mxu0 0.0
        %3024 = vmatprep.subr.mxu0 0.0
        %3025 = vmatpush1.msra.mxu0 0.0
        %3026 = vmatprep.subr.mxu0 0.0
        %3027 = vmatpush1.msra.mxu0 0.0
        %3028 = vmatprep.subr.mxu0 0.0
        %3029 = vmatpush1.msra.mxu0 0.0
        %3030 = vmatprep.subr.mxu0 0.0
        %3031 = vmatpush1.msra.mxu0 0.0
        %3032 = vmatprep.subr.mxu0 0.0
        %3033 = vmatpush1.msra.mxu0 0.0
        %3034 = vmatprep.subr.mxu0 0.0
        %3035 = vmatpush1.msra.mxu0 0.0
        %3036 = vmatprep.subr.mxu0 0.0
        %3037 = vmatpush1.msra.mxu0 0.0
        %3038 = vmatprep.subr.mxu0 0.0
        %3039 = vmatpush1.msra.mxu0 0.0
        %3040 = vmatprep.subr.mxu0 0.0
        %3041 = vmatpush1.msra.mxu0 0.0
        %3042 = vmatprep.subr.mxu0 0.0
        %3043 = vmatpush1.msra.mxu0 0.0
        %3044 = vmatprep.subr.mxu0 0.0
        %3045 = vmatpush1.msra.mxu0 0.0
        %3046 = vmatprep.subr.mxu0 0.0
        %3047 = vmatpush1.msra.mxu0 0.0
        %3048 = vmatprep.subr.mxu0 0.0
        %3049 = vmatpush1.msra.mxu0 0.0
        %3050 = vmatprep.mubr.f32.mxu0 0.0
        %3051 = vmatmul.mubr.f32.gmra.mrb[0].mxu0 %v2962
        %v3052 = vpop.f32.mrb[0].mxu0
        %v3053 = vadd.f32 %v2984, %v3052
        %v3054 = vpop.f32.mrb[0].mxu0
        %3055 = vdwg.mxu0
        %v3056 = vadd.f32 %v2837, %v3053
        %3057 = vst.msk [vmem:[%s525] sm:$0xff] %vm864, %v3056
        %s3058 = sand.u32 %s353, 1
        %s3059 = scalar_lea.sflag [#allocation6], %s3058
        %s3060 = sand.u32 %s353, 1
        %s3061 = smul.addr %s3060, 8
        %s3062 = scalar_lea.vmem [#allocation10], %s3061
        // Predicated region
        $region93: #{tpu_custom_call.1} parent=75 // pred_check
          %p3063 = pneg %p363
        $region94: #{tpu_custom_call.1} parent=75 // pred_check_branch
          %3065 = sbr.rel (%p3063) target = $region96
        $region95: #{tpu_custom_call.1} parent=75 // pred_region
          %s3067 = ssub.s32 128, 128
          %3068 = vsyncadd %s3059, %s3067
          %s3069 = sadd.s32 %s37, %s36
          %s3070 = smul.addr %s3069, 128
          %s3071 = scalar_lea.hbm %s14, %s3070
          %s3073 = sshll.u32 %s3062, 4
          %s3074 = int_to_ptr.vmem [resolvable:$true] %s3073
          %3076 = dma.vmem_to_hbm [thread:$0]  %s3074, 128, %s3071, %s3059
        $region96: #{tpu_custom_call.1} parent=75 // pred_fallthru
          _
      $region76: #{tpu_custom_call.1} parent=5 // pred_fallthru
        _
      %p3077 = scmp.le.s32.totalorder 2, %s27
      // Predicated region
      $region97: #{tpu_custom_call.1} parent=5 // pred_check
        %p3078 = pneg %p3077
      $region98: #{tpu_custom_call.1} parent=5 // pred_check_branch
        %3080 = sbr.rel (%p3078) target = $region100
      $region99: #{tpu_custom_call.1} parent=5 // pred_region
        %s3081 = ssub.s32 %s27, 2
        // Predicated region
        $region101: #{tpu_custom_call.1} parent=99 // pred_check
          %p3082 = pneg %p369
        $region102: #{tpu_custom_call.1} parent=99 // pred_check_branch
          %3084 = sbr.rel (%p3082) target = $region104
        $region103: #{tpu_custom_call.1} parent=99 // pred_region
          %s3085 = sand.u32 %s354, 1
          %s3086 = scalar_lea.sflag [#allocation6], %s3085
          %s3087 = sand.u32 %s354, 1
          %s3088 = smul.addr %s3087, 8
          %s3089 = scalar_lea.vmem [#allocation10], %s3088
          %3090 = dma.done %s3086, 128
        $region104: #{tpu_custom_call.1} parent=99 // pred_fallthru
          _
      $region100: #{tpu_custom_call.1} parent=5 // pred_fallthru
        _
    $region6: #{tpu_custom_call.1} parent=1 // loop_footer
      %s31 = sadd.s32 1, %s27
    $region7: #{tpu_custom_call.1} parent=1 // loop_footer_branch
      %26 = sbr.rel target = $region3
    $region8: #{tpu_custom_call.1} parent=1 // loop_exit
      _
    %3091 = vsyncpa [#allocation5], 1
    %s3092 = scalar_lea.sflag [#allocation5], 1
    %3093 = vsyncpa %s3092, 1
    %3094 = vsyncpa [#allocation8], 1
    %3095 = vsyncpa [#allocation6], 1
    %s3096 = scalar_lea.sflag [#allocation6], 1
    %3097 = vsyncpa %s3096, 1

</llo_original>
